<compile_context>
chip_gen: v6e
topology: v6e:2x2x1
jax: 0.10.0
libtpu: 0.0.40
codegen_flags: <defaults>
</compile_context>

<pallas_src>
import functools
import math

import jax
import jax.numpy as jnp
from jax import lax
from jax.experimental import pallas as pl
from jax.experimental.pallas import tpu as pltpu

_VMEM_LIMIT = 40 * 1024 * 1024  # leaves headroom on v7x (64 MiB); fine on v5e/v6e

_SMEM_SPEC = pl.BlockSpec(memory_space=pltpu.MemorySpace.SMEM)


# ----------------------------------------------------------------------------
# tiling helpers
# ----------------------------------------------------------------------------

def _round_up(x, m):
    return ((x + m - 1) // m) * m


def _tiles_for(dim, max_tile):
    """(tile, padded) for a lane-major (last) dimension."""
    if dim <= max_tile:
        return dim, dim                       # single full-extent tile, no padding
    padded = _round_up(dim, 128)
    tile = (max_tile // 128) * 128
    while padded % tile != 0:
        tile -= 128
    return tile, padded


def _m_tiles(m, cap=256):
    """(tile, padded) for the activation row (sublane) dimension; 16-aligned."""
    if m <= cap:
        mp = _round_up(m, 16)                 # bf16 packs 16 rows per sublane reg
        return mp, mp
    mp = _round_up(m, cap)
    return cap, mp


def _maybe_pad2d(x, rows, cols):
    r, c = x.shape
    if r == rows and c == cols:
        return x
    return jnp.pad(x, ((0, rows - r), (0, cols - c)))


# ----------------------------------------------------------------------------
# one-time parameter preparation (pad + cast ONCE, not per forward)
# ----------------------------------------------------------------------------

def _prep_linear(w, b, *, max_tk=512, max_tn=512):
    k_dim, n_dim = w.shape
    tk, kp = _tiles_for(k_dim, max_tk)
    tn, np_ = _tiles_for(n_dim, max_tn)
    wp = _maybe_pad2d(jnp.asarray(w, jnp.float32), kp, np_).astype(jnp.bfloat16)
    bp = jnp.pad(jnp.asarray(b, jnp.float32), (0, np_ - n_dim)).reshape(1, np_)
    return {"w": wp, "b": bp, "K": k_dim, "N": n_dim,
            "Kp": kp, "Np": np_, "tk": tk, "tn": tn}


def _prep_linear_ln(w, b, gamma, beta, *, max_tk=512):
    lin = _prep_linear(w, b, max_tk=max_tk, max_tn=4096)
    assert lin["tn"] == lin["Np"] == lin["N"], "fused LN needs one full-width N tile"
    lin["g"] = jnp.asarray(gamma, jnp.float32).reshape(1, -1)
    lin["bb"] = jnp.asarray(beta, jnp.float32).reshape(1, -1)
    return lin


# ----------------------------------------------------------------------------
# Pallas kernels
# ----------------------------------------------------------------------------

def _linear_kernel(x_ref, w_ref, b_ref, o_ref, acc_ref, *, relu, relu_input, n_k):
    """y = [relu](relu_input(x) @ w + b); f32 accumulator, K axis last/arbitrary."""
    @pl.when(pl.program_id(2) == 0)
    def _():
        acc_ref[...] = jnp.zeros_like(acc_ref)

    x = x_ref[...]
    if relu_input:                                  # fused channel-decoder ReLU
        x = jnp.maximum(x, 0.0)
    acc_ref[...] += jnp.dot(x.astype(jnp.bfloat16), w_ref[...],
                            preferred_element_type=jnp.float32)

    @pl.when(pl.program_id(2) == n_k - 1)
    def _():
        y = acc_ref[...] + b_ref[...]
        if relu:
            y = jnp.maximum(y, 0.0)
        o_ref[...] = y.astype(o_ref.dtype)


def linear_pallas(x2d, lin, *, relu=False, relu_input=False, out_dtype=jnp.float32):
    m, k_dim = x2d.shape
    assert k_dim == lin["K"]
    tm, mp = _m_tiles(m)
    kp, np_, tk, tn, n_dim = lin["Kp"], lin["Np"], lin["tk"], lin["tn"], lin["N"]
    xp = _maybe_pad2d(x2d, mp, kp)
    n_k = kp // tk
    out = pl.pallas_call(
        functools.partial(_linear_kernel, relu=relu, relu_input=relu_input, n_k=n_k),
        grid=(mp // tm, np_ // tn, n_k),
        in_specs=[
            pl.BlockSpec((tm, tk), lambda i, j, k: (i, k)),
            pl.BlockSpec((tk, tn), lambda i, j, k: (k, j)),
            pl.BlockSpec((1, tn), lambda i, j, k: (0, j)),
        ],
        out_specs=pl.BlockSpec((tm, tn), lambda i, j, k: (i, j)),
        out_shape=jax.ShapeDtypeStruct((mp, np_), out_dtype),
        scratch_shapes=[pltpu.VMEM((tm, tn), jnp.float32)],
        compiler_params=pltpu.CompilerParams(
            dimension_semantics=("parallel", "parallel", "arbitrary"),
            vmem_limit_bytes=_VMEM_LIMIT),
    )(xp, lin["w"], lin["b"])
    if mp == m and np_ == n_dim:
        return out
    return out[:m, :n_dim]


def _linear_res_ln_kernel(x_ref, w_ref, b_ref, r_ref, g_ref, bb_ref, o_ref,
                          acc_ref, *, n_k, eps):
    """nn.LayerNorm(residual + x @ w + b) fused into the matmul epilogue."""
    @pl.when(pl.program_id(1) == 0)
    def _():
        acc_ref[...] = jnp.zeros_like(acc_ref)

    acc_ref[...] += jnp.dot(x_ref[...].astype(jnp.bfloat16), w_ref[...],
                            preferred_element_type=jnp.float32)

    @pl.when(pl.program_id(1) == n_k - 1)
    def _():
        y = acc_ref[...] + b_ref[...] + r_ref[...]
        mean = jnp.mean(y, axis=-1, keepdims=True)
        d = y - mean
        var = jnp.mean(d * d, axis=-1, keepdims=True)
        o_ref[...] = (d * lax.rsqrt(var + eps) * g_ref[...] + bb_ref[...]
                      ).astype(o_ref.dtype)


def linear_res_ln_pallas(x2d, lin, residual2d, *, eps=1e-6):
    m, k_dim = x2d.shape
    assert k_dim == lin["K"]
    n_dim, kp, tk = lin["N"], lin["Kp"], lin["tk"]
    tm, mp = _m_tiles(m)
    xp = _maybe_pad2d(x2d, mp, kp)
    rp = _maybe_pad2d(residual2d, mp, n_dim)
    n_k = kp // tk
    out = pl.pallas_call(
        functools.partial(_linear_res_ln_kernel, n_k=n_k, eps=eps),
        grid=(mp // tm, n_k),
        in_specs=[
            pl.BlockSpec((tm, tk), lambda i, k: (i, k)),
            pl.BlockSpec((tk, n_dim), lambda i, k: (k, 0)),
            pl.BlockSpec((1, n_dim), lambda i, k: (0, 0)),
            pl.BlockSpec((tm, n_dim), lambda i, k: (i, 0)),
            pl.BlockSpec((1, n_dim), lambda i, k: (0, 0)),
            pl.BlockSpec((1, n_dim), lambda i, k: (0, 0)),
        ],
        out_specs=pl.BlockSpec((tm, n_dim), lambda i, k: (i, 0)),
        out_shape=jax.ShapeDtypeStruct((mp, n_dim), jnp.float32),
        scratch_shapes=[pltpu.VMEM((tm, n_dim), jnp.float32)],
        compiler_params=pltpu.CompilerParams(
            dimension_semantics=("parallel", "arbitrary"),
            vmem_limit_bytes=_VMEM_LIMIT),
    )(xp, lin["w"], lin["b"], rp, lin["g"], lin["bb"])
    return out if mp == m else out[:m]


def _attn_heads(q, kv, bias, o_ref, *, scale, n_heads, dh, k_off, v_off):
    """Per-head attention; each head's result is stored directly into its slice."""
    for h in range(n_heads):
        qh = q[:, h * dh:(h + 1) * dh]
        kh = kv[:, k_off + h * dh:k_off + (h + 1) * dh]
        vh = kv[:, v_off + h * dh:v_off + (h + 1) * dh]
        s = lax.dot_general(qh, kh, (((1,), (1,)), ((), ())),
                            preferred_element_type=jnp.float32) * scale + bias
        s = s - jnp.max(s, axis=-1, keepdims=True)
        p = jnp.exp(s)
        p = p * pl.reciprocal(jnp.sum(p, axis=-1, keepdims=True), approx=True)
        o_ref[0, :, h * dh:(h + 1) * dh] = jnp.dot(
            p.astype(kv.dtype), vh, preferred_element_type=jnp.float32
        ).astype(o_ref.dtype)


def _self_attn_kernel(qkv_ref, bias_ref, o_ref, *, scale, n_heads, dh, d, tq, n_q):
    kvq = qkv_ref[0]                              # (Sk, 3D[+pad]) bf16 - k/v rows
    if n_q == 1:
        q = kvq[:, :d]
    else:
        start = pl.multiple_of(pl.program_id(1) * tq, tq)
        q = qkv_ref[0, pl.ds(start, tq), :][:, :d]
    _attn_heads(q, kvq, bias_ref[0], o_ref, scale=scale, n_heads=n_heads,
                dh=dh, k_off=d, v_off=2 * d)


def _cross_attn_kernel(q_ref, kv_ref, bias_ref, o_ref, *, scale, n_heads, dh, d):
    _attn_heads(q_ref[0], kv_ref[0], bias_ref[0], o_ref, scale=scale,
                n_heads=n_heads, dh=dh, k_off=0, v_off=d)


def _seq_tile(s):
    if s <= 256:
        return s
    for t in (256, 128):
        if s % t == 0:
            return t
    return s  # odd lengths: single tile (keys are never padded)


def self_attention_pallas(qkv, bias, n_heads, d_model):
    """qkv: (B, S, 3*D[+pad]) bf16, bias: (B, S, S) f32 -> (B, S, D) bf16."""
    b, s, w = qkv.shape
    dh = d_model // n_heads
    tq = _seq_tile(s)
    n_q = s // tq
    return pl.pallas_call(
        functools.partial(_self_attn_kernel, scale=1.0 / math.sqrt(dh),
                          n_heads=n_heads, dh=dh, d=d_model, tq=tq, n_q=n_q),
        grid=(b, n_q),
        in_specs=[
            pl.BlockSpec((1, s, w), lambda bi, qi: (bi, 0, 0)),
            pl.BlockSpec((1, tq, s), lambda bi, qi: (bi, qi, 0)),
        ],
        out_specs=pl.BlockSpec((1, tq, d_model), lambda bi, qi: (bi, qi, 0)),
        out_shape=jax.ShapeDtypeStruct((b, s, d_model), jnp.bfloat16),
        compiler_params=pltpu.CompilerParams(
            dimension_semantics=("parallel", "parallel"),
            vmem_limit_bytes=_VMEM_LIMIT),
    )(qkv, bias)


def cross_attention_pallas(q, kv, bias, n_heads, d_model):
    """q: (B, Sq, D[+pad]), kv: (B, Sk, 2D[+pad]) bf16, bias: (B, Sq, Sk) f32."""
    b, sq, wq = q.shape
    sk, wkv = kv.shape[1], kv.shape[2]
    dh = d_model // n_heads
    tq = _seq_tile(sq)
    return pl.pallas_call(
        functools.partial(_cross_attn_kernel, scale=1.0 / math.sqrt(dh),
                          n_heads=n_heads, dh=dh, d=d_model),
        grid=(b, sq // tq),
        in_specs=[
            pl.BlockSpec((1, tq, wq), lambda bi, qi: (bi, qi, 0)),
            pl.BlockSpec((1, sk, wkv), lambda bi, qi: (bi, 0, 0)),
            pl.BlockSpec((1, tq, sk), lambda bi, qi: (bi, qi, 0)),
        ],
        out_specs=pl.BlockSpec((1, tq, d_model), lambda bi, qi: (bi, qi, 0)),
        out_shape=jax.ShapeDtypeStruct((b, sq, d_model), jnp.bfloat16),
        compiler_params=pltpu.CompilerParams(
            dimension_semantics=("parallel", "parallel"),
            vmem_limit_bytes=_VMEM_LIMIT),
    )(q, kv, bias)


def _scalar_ln_kernel(wb_ref, x_ref, o_ref, *, eps, d):
    # Custom LayerNormalization: scalar weight/bias, torch .std() (Bessel), eps on std.
    x = x_ref[...]
    mean = jnp.mean(x, axis=-1, keepdims=True)
    diff = x - mean
    std = jnp.sqrt(jnp.sum(diff * diff, axis=-1, keepdims=True) * (1.0 / (d - 1)))
    o_ref[...] = wb_ref[0] * diff / (std + eps) + wb_ref[1]


def scalar_layernorm_pallas(x2d, wb, *, eps=1e-6):
    m, d = x2d.shape
    tm, mp = _m_tiles(m, cap=512)
    xp = _maybe_pad2d(x2d, mp, d)
    out = pl.pallas_call(
        functools.partial(_scalar_ln_kernel, eps=eps, d=d),
        grid=(mp // tm,),
        in_specs=[_SMEM_SPEC, pl.BlockSpec((tm, d), lambda i: (i, 0))],
        out_specs=pl.BlockSpec((tm, d), lambda i: (i, 0)),
        out_shape=jax.ShapeDtypeStruct((mp, d), jnp.float32),
        compiler_params=pltpu.CompilerParams(
            dimension_semantics=("parallel",),
            vmem_limit_bytes=_VMEM_LIMIT),
    )(wb, xp)
    return out if mp == m else out[:m]


def _sumsq_kernel(x_ref, o_ref):
    # Global sum-of-squares (pass 1 of PowerNormalize); grid-carried accumulator.
    @pl.when(pl.program_id(0) == 0)
    def _():
        o_ref[...] = jnp.zeros_like(o_ref)
    x = x_ref[...]
    o_ref[...] += jnp.sum(x * x)


def sumsq_pallas(x2d):
    m, c = x2d.shape
    tm, mp = _m_tiles(m, cap=512)
    xp = _maybe_pad2d(x2d, mp, c)          # zero-padded rows contribute nothing
    return pl.pallas_call(
        _sumsq_kernel,
        grid=(mp // tm,),
        in_specs=[pl.BlockSpec((tm, c), lambda i: (i, 0))],
        out_specs=pl.BlockSpec((1, 1), lambda i: (0, 0)),
        out_shape=jax.ShapeDtypeStruct((1, 1), jnp.float32),
        compiler_params=pltpu.CompilerParams(
            dimension_semantics=("arbitrary",),
            vmem_limit_bytes=_VMEM_LIMIT),
    )(xp)


def _scale_noise_kernel(s_ref, x_ref, n_ref, o_ref, *, noise_std):
    # PowerNormalize pass 2 fused with the AWGN channel: x*scale + noise_std*noise.
    o_ref[...] = x_ref[...] * s_ref[0] + noise_std * n_ref[...]


def scale_add_noise_pallas(x2d, noise, scale1, noise_std):
    m, c = x2d.shape
    tm, mp = _m_tiles(m, cap=512)
    xp = _maybe_pad2d(x2d, mp, c)
    np_ = _maybe_pad2d(noise, mp, c)
    out = pl.pallas_call(
        functools.partial(_scale_noise_kernel, noise_std=float(noise_std)),
        grid=(mp // tm,),
        in_specs=[
            _SMEM_SPEC,
            pl.BlockSpec((tm, c), lambda i: (i, 0)),
            pl.BlockSpec((tm, c), lambda i: (i, 0)),
        ],
        out_specs=pl.BlockSpec((tm, c), lambda i: (i, 0)),
        out_shape=jax.ShapeDtypeStruct((mp, c), jnp.float32),
        compiler_params=pltpu.CompilerParams(
            dimension_semantics=("parallel",),
            vmem_limit_bytes=_VMEM_LIMIT),
    )(scale1, xp, np_)
    return out if mp == m else out[:m]


# ----------------------------------------------------------------------------
# model glue (reshapes / parameter plumbing in plain JAX)
# ----------------------------------------------------------------------------

def _mask_to_bias(mask, b, sq, sk):
    m = jnp.broadcast_to(mask, (b, sq, sk))
    return jnp.where(m > 0, 0.0, -1e9).astype(jnp.float32)


def mha_self(x, bias, p, n_heads):
    b, s, d = x.shape
    qkv = linear_pallas(x.reshape(-1, d), p["qkv"], out_dtype=jnp.bfloat16)
    return self_attention_pallas(qkv.reshape(b, s, -1), bias, n_heads, d)


def encoder_block(x, bias, p, n_heads):
    b, s, d = x.shape
    x2d = x.reshape(-1, d)
    a = mha_self(x, bias, p, n_heads)                                   # bf16
    x2d = linear_res_ln_pallas(a.reshape(-1, d), p["o_ln"], x2d)
    f = linear_pallas(x2d, p["ff1"], relu=True, out_dtype=jnp.bfloat16)
    x2d = linear_res_ln_pallas(f, p["ff2_ln"], x2d)
    return x2d.reshape(b, s, d)


def decoder_block(x, enc_out, self_bias, cross_bias, p, n_heads):
    b, s, d = x.shape
    sk = enc_out.shape[1]
    x2d = x.reshape(-1, d)
    a = mha_self(x, self_bias, p, n_heads)
    x2d = linear_res_ln_pallas(a.reshape(-1, d), p["self_o_ln"], x2d)
    q = linear_pallas(x2d, p["q"], out_dtype=jnp.bfloat16).reshape(b, s, -1)
    kv = linear_pallas(enc_out.reshape(-1, d), p["kv"],
                       out_dtype=jnp.bfloat16).reshape(b, sk, -1)
    c = cross_attention_pallas(q, kv, cross_bias, n_heads, d)
    x2d = linear_res_ln_pallas(c.reshape(-1, d), p["cross_o_ln"], x2d)
    f = linear_pallas(x2d, p["ff1"], relu=True, out_dtype=jnp.bfloat16)
    x2d = linear_res_ln_pallas(f, p["ff2_ln"], x2d)
    return x2d.reshape(b, s, d)


def positional_encoding(seq_len, d_model):
    position = jnp.arange(seq_len, dtype=jnp.float32)[:, None]
    div_term = jnp.exp(jnp.arange(0, d_model, 2, dtype=jnp.float32)
                       * (-math.log(10000.0) / d_model))
    pe = jnp.zeros((seq_len, d_model), jnp.float32)
    pe = pe.at[:, 0::2].set(jnp.sin(position * div_term))
    pe = pe.at[:, 1::2].set(jnp.cos(position * div_term))
    return pe[None]


def deepsc_forward(params, src, src_mask, tgt, tgt_mask, noise_key, *,
                   noise_std, n_heads):
    d_model = params["d_model"]
    batch, s_src = src.shape
    s_tgt = tgt.shape[1]

    # Attention masks -> additive f32 bias, computed ONCE and shared by all layers.
    enc_bias = _mask_to_bias(src_mask, batch, s_src, s_src)
    dec_self_bias = _mask_to_bias(tgt_mask, batch, s_tgt, s_tgt)
    dec_cross_bias = _mask_to_bias(src_mask, batch, s_tgt, s_src)

    # ---- encode(src, src_mask) ----
    x = jnp.take(params["src_emb"], src, axis=0) * math.sqrt(d_model)   # glue
    x = x + params["pe"][:, :s_src, :]                                  # dropout p=0
    for lp in params["enc_layers"]:
        x = encoder_block(x, enc_bias, lp, n_heads)
    x2d = scalar_layernorm_pallas(x.reshape(-1, d_model), params["enc_norm"])

    # ---- channel_encode: relu(l1), l2, PowerNormalize ----
    ce = params["ch_enc"]
    h = linear_pallas(x2d, ce["l1"], relu=True, out_dtype=jnp.bfloat16)
    h = linear_pallas(h, ce["l2"])                                      # (M, ch_out) f32
    ssq = sumsq_pallas(h)
    power = jnp.sqrt(ssq[0, 0] / h.size)
    scale = jnp.where(power > 1.0, 1.0 / power, 1.0).astype(jnp.float32).reshape(1)
    # ---- channel_transmit (AWGN) fused with the PowerNormalize scaling ----
    noise = jax.random.normal(noise_key, h.shape, jnp.float32)
    tx = scale_add_noise_pallas(h, noise, scale, noise_std)

    # ---- channel_decode: x1=l1(x); relu; l2; relu; l3; LN(x1 + .) ----
    cd = params["ch_dec"]
    x1 = linear_pallas(tx, cd["l1"])                                    # pre-ReLU residual
    hh = linear_pallas(x1, cd["l2"], relu_input=True, relu=True,
                       out_dtype=jnp.bfloat16)                          # ReLU fused in
    enc_out2d = linear_res_ln_pallas(hh, cd["l3_ln"], x1, eps=1e-6)
    enc_out = enc_out2d.reshape(batch, s_src, d_model)

    # ---- decode(enc_out, src_mask, tgt, tgt_mask) ----
    y = jnp.take(params["tgt_emb"], tgt, axis=0) * math.sqrt(d_model)
    y = y + params["pe"][:, :s_tgt, :]
    for lp in params["dec_layers"]:
        y = decoder_block(y, enc_out, dec_self_bias, dec_cross_bias, lp, n_heads)
    y2d = scalar_layernorm_pallas(y.reshape(-1, d_model), params["dec_norm"])

    # ---- project ----
    out = linear_pallas(y2d, params["proj"])
    return out.reshape(batch, s_tgt, params["proj"]["N"])


# ----------------------------------------------------------------------------
# deterministic parameter init (weights stored pre-fused, pre-padded, pre-cast)
# ----------------------------------------------------------------------------

def init_params(key, *, vocab, d_model, d_ff, n_layers, seq_len,
                ch_l1, ch_out, chd_l2):
    keys = iter(jax.random.split(key, 1024))

    def raw_lin(d_in, d_out):
        kw, kb = jax.random.split(next(keys))
        lim = 1.0 / math.sqrt(d_in)
        w = jax.random.uniform(kw, (d_in, d_out), jnp.float32, -lim, lim)
        b = jax.random.uniform(kb, (d_out,), jnp.float32, -lim, lim)
        return w, b

    def lin(d_in, d_out):
        return _prep_linear(*raw_lin(d_in, d_out))

    def lin_ln(d_in, d_out):
        w, b = raw_lin(d_in, d_out)
        return _prep_linear_ln(w, b, jnp.ones((d_out,), jnp.float32),
                               jnp.zeros((d_out,), jnp.float32))

    def fused(d_in, d_outs):
        ws, bs = zip(*(raw_lin(d_in, d) for d in d_outs))
        return _prep_linear(jnp.concatenate(ws, axis=1), jnp.concatenate(bs, axis=0))

    def enc_layer():
        return {"qkv": fused(d_model, [d_model] * 3),
                "o_ln": lin_ln(d_model, d_model),
                "ff1": lin(d_model, d_ff),
                "ff2_ln": lin_ln(d_ff, d_model)}

    def dec_layer():
        return {"qkv": fused(d_model, [d_model] * 3),
                "self_o_ln": lin_ln(d_model, d_model),
                "q": lin(d_model, d_model),
                "kv": fused(d_model, [d_model] * 2),
                "cross_o_ln": lin_ln(d_model, d_model),
                "ff1": lin(d_model, d_ff),
                "ff2_ln": lin_ln(d_ff, d_model)}

    return {
        "d_model": d_model,
        "src_emb": jax.random.normal(next(keys), (vocab, d_model), jnp.float32),
        "tgt_emb": jax.random.normal(next(keys), (vocab, d_model), jnp.float32),
        "pe": positional_encoding(seq_len, d_model),
        "enc_layers": [enc_layer() for _ in range(n_layers)],
        "dec_layers": [dec_layer() for _ in range(n_layers)],
        # LayerNormalization scalar weight & bias are both initialized to 1 (torch).
        "enc_norm": jnp.ones((2,), jnp.float32),
        "dec_norm": jnp.ones((2,), jnp.float32),
        "proj": lin(d_model, vocab),
        "ch_enc": {"l1": lin(d_model, ch_l1), "l2": lin(ch_l1, ch_out)},
        "ch_dec": {"l1": lin(ch_out, d_model), "l2": lin(d_model, chd_l2),
                   "l3_ln": lin_ln(chd_l2, d_model)},
    }


# ----------------------------------------------------------------------------
if __name__ == "__main__":
    B, S, d_model = 2, 8, 32
    vocab, n_heads, d_ff, n_layers = 32, 4, 64, 2
    ch_l1, ch_out, chd_l2 = 64, 16, 64
    noise_std = 0.1

    root = jax.random.PRNGKey(0)
    k_param, k_src, k_tgt, k_noise = jax.random.split(root, 4)

    params = init_params(k_param, vocab=vocab, d_model=d_model, d_ff=d_ff,
                         n_layers=n_layers, seq_len=S,
                         ch_l1=ch_l1, ch_out=ch_out, chd_l2=chd_l2)

    src = jax.random.randint(k_src, (B, S), 0, vocab)
    tgt = jax.random.randint(k_tgt, (B, S), 0, vocab)
    src_mask = jnp.ones((B, 1, S), jnp.float32)                          # all valid
    tgt_mask = jnp.broadcast_to(jnp.tril(jnp.ones((S, S), jnp.float32)), (B, S, S))

    fwd = jax.jit(lambda s_, sm_, t_, tm_, nk_: deepsc_forward(
        params, s_, sm_, t_, tm_, nk_, noise_std=noise_std, n_heads=n_heads))

    out = fwd(src, src_mask, tgt, tgt_mask, k_noise)
    jax.block_until_ready(out)
    assert out.shape == (B, S, vocab)
    assert bool(jnp.all(jnp.isfinite(out)))
    print("KERNEL_OK")
</pallas_src>

<mosaic_0001>
module attributes {stable_mosaic.version = 11 : i64} {
  func.func @_self_attn_kernel(%arg0: i32, %arg1: i32, %arg2: memref<1x8x96xbf16, #tpu.memory_space<vmem>>, %arg3: memref<1x8x8xf32, #tpu.memory_space<vmem>>, %arg4: memref<1x8x32xbf16, #tpu.memory_space<vmem>>) attributes {dimension_semantics = [#tpu.dimension_semantics<parallel>, #tpu.dimension_semantics<parallel>], iteration_bounds = array<i64: 2, 1>, scalar_prefetch = 0 : i64, scratch_operands = 0 : i64, tpu.core_type = #tpu.core_type<tc>, window_params = [{transform_indices = @transform_0, window_bounds = array<i64: 1, 8, 96>}, {transform_indices = @transform_1, window_bounds = array<i64: 1, 8, 8>}, {transform_indices = @transform_2, window_bounds = array<i64: 1, 8, 32>}]} {
    %c0 = arith.constant 0 : index
    %c0_0 = arith.constant 0 : index
    %c0_1 = arith.constant 0 : index
    %0 = vector.load %arg2[%c0, %c0_0, %c0_1] : memref<1x8x96xbf16, #tpu.memory_space<vmem>>, vector<1x8x96xbf16>
    %1 = vector.shape_cast %0 : vector<1x8x96xbf16> to vector<8x96xbf16>
    %2 = vector.extract_strided_slice %1 {offsets = [0, 0], sizes = [8, 32], strides = [1, 1]} : vector<8x96xbf16> to vector<8x32xbf16>
    %c0_2 = arith.constant 0 : index
    %c0_3 = arith.constant 0 : index
    %c0_4 = arith.constant 0 : index
    %3 = vector.load %arg3[%c0_2, %c0_3, %c0_4] : memref<1x8x8xf32, #tpu.memory_space<vmem>>, vector<1x8x8xf32>
    %4 = vector.shape_cast %3 : vector<1x8x8xf32> to vector<8x8xf32>
    %5 = vector.extract_strided_slice %2 {offsets = [0, 0], sizes = [8, 8], strides = [1, 1]} : vector<8x32xbf16> to vector<8x8xbf16>
    %6 = vector.extract_strided_slice %1 {offsets = [0, 32], sizes = [8, 8], strides = [1, 1]} : vector<8x96xbf16> to vector<8x8xbf16>
    %7 = vector.extract_strided_slice %1 {offsets = [0, 64], sizes = [8, 8], strides = [1, 1]} : vector<8x96xbf16> to vector<8x8xbf16>
    %cst = arith.constant dense<0.000000e+00> : vector<8x8xf32>
    %8 = tpu.matmul %5, %6, %cst {dimension_numbers = #tpu.dot_dimension_numbers<[1], [1], [0], [0], [0, 0, 1, 0], [], []>} : vector<8x8xbf16>, vector<8x8xbf16>, vector<8x8xf32> -> vector<8x8xf32>
    %cst_5 = arith.constant 0.353553385 : f32
    %9 = vector.broadcast %cst_5 : f32 to vector<8x8xf32>
    %10 = arith.mulf %8, %9 : vector<8x8xf32>
    %11 = arith.addf %10, %4 : vector<8x8xf32>
    %cst_6 = arith.constant dense<0xFF800000> : vector<8xf32>
    %12 = vector.multi_reduction <maximumf>, %11, %cst_6 [1] : vector<8x8xf32> to vector<8xf32>
    %13 = vector.shape_cast %12 : vector<8xf32> to vector<8x1xf32>
    %14 = vector.broadcast %13 : vector<8x1xf32> to vector<8x8xf32>
    %15 = arith.subf %11, %14 : vector<8x8xf32>
    %16 = math.exp %15 : vector<8x8xf32>
    %cst_7 = arith.constant dense<0.000000e+00> : vector<8xf32>
    %17 = vector.multi_reduction <add>, %16, %cst_7 [1] : vector<8x8xf32> to vector<8xf32>
    %18 = vector.shape_cast %17 : vector<8xf32> to vector<8x1xf32>
    %19 = tpu.reciprocal %18 {approx = true} : vector<8x1xf32> -> vector<8x1xf32>
    %20 = vector.broadcast %19 : vector<8x1xf32> to vector<8x8xf32>
    %21 = arith.mulf %16, %20 : vector<8x8xf32>
    %22 = arith.truncf %21 : vector<8x8xf32> to vector<8x8xbf16>
    %cst_8 = arith.constant dense<0.000000e+00> : vector<8x8xf32>
    %23 = tpu.matmul %22, %7, %cst_8 {dimension_numbers = #tpu.dot_dimension_numbers<[1], [0], [0], [1], [0, 0, 1, 1], [], []>} : vector<8x8xbf16>, vector<8x8xbf16>, vector<8x8xf32> -> vector<8x8xf32>
    %24 = arith.truncf %23 : vector<8x8xf32> to vector<8x8xbf16>
    %c0_9 = arith.constant 0 : index
    %c0_10 = arith.constant 0 : index
    %c0_11 = arith.constant 0 : index
    %25 = vector.load %arg4[%c0_9, %c0_10, %c0_11] : memref<1x8x32xbf16, #tpu.memory_space<vmem>>, vector<1x8x8xbf16>
    %26 = vector.shape_cast %25 : vector<1x8x8xbf16> to vector<8x8xbf16>
    %27 = vector.shape_cast %24 : vector<8x8xbf16> to vector<1x8x8xbf16>
    tpu.vector_store %arg4[%c0_9, %c0_10, %c0_11], %27 {strides = array<i32>} : memref<1x8x32xbf16, #tpu.memory_space<vmem>>, vector<1x8x8xbf16>,
    %28 = vector.extract_strided_slice %2 {offsets = [0, 8], sizes = [8, 8], strides = [1, 1]} : vector<8x32xbf16> to vector<8x8xbf16>
    %29 = vector.extract_strided_slice %1 {offsets = [0, 40], sizes = [8, 8], strides = [1, 1]} : vector<8x96xbf16> to vector<8x8xbf16>
    %30 = vector.extract_strided_slice %1 {offsets = [0, 72], sizes = [8, 8], strides = [1, 1]} : vector<8x96xbf16> to vector<8x8xbf16>
    %cst_12 = arith.constant dense<0.000000e+00> : vector<8x8xf32>
    %31 = tpu.matmul %28, %29, %cst_12 {dimension_numbers = #tpu.dot_dimension_numbers<[1], [1], [0], [0], [0, 0, 1, 0], [], []>} : vector<8x8xbf16>, vector<8x8xbf16>, vector<8x8xf32> -> vector<8x8xf32>
    %cst_13 = arith.constant 0.353553385 : f32
    %32 = vector.broadcast %cst_13 : f32 to vector<8x8xf32>
    %33 = arith.mulf %31, %32 : vector<8x8xf32>
    %34 = arith.addf %33, %4 : vector<8x8xf32>
    %cst_14 = arith.constant dense<0xFF800000> : vector<8xf32>
    %35 = vector.multi_reduction <maximumf>, %34, %cst_14 [1] : vector<8x8xf32> to vector<8xf32>
    %36 = vector.shape_cast %35 : vector<8xf32> to vector<8x1xf32>
    %37 = vector.broadcast %36 : vector<8x1xf32> to vector<8x8xf32>
    %38 = arith.subf %34, %37 : vector<8x8xf32>
    %39 = math.exp %38 : vector<8x8xf32>
    %cst_15 = arith.constant dense<0.000000e+00> : vector<8xf32>
    %40 = vector.multi_reduction <add>, %39, %cst_15 [1] : vector<8x8xf32> to vector<8xf32>
    %41 = vector.shape_cast %40 : vector<8xf32> to vector<8x1xf32>
    %42 = tpu.reciprocal %41 {approx = true} : vector<8x1xf32> -> vector<8x1xf32>
    %43 = vector.broadcast %42 : vector<8x1xf32> to vector<8x8xf32>
    %44 = arith.mulf %39, %43 : vector<8x8xf32>
    %45 = arith.truncf %44 : vector<8x8xf32> to vector<8x8xbf16>
    %cst_16 = arith.constant dense<0.000000e+00> : vector<8x8xf32>
    %46 = tpu.matmul %45, %30, %cst_16 {dimension_numbers = #tpu.dot_dimension_numbers<[1], [0], [0], [1], [0, 0, 1, 1], [], []>} : vector<8x8xbf16>, vector<8x8xbf16>, vector<8x8xf32> -> vector<8x8xf32>
    %47 = arith.truncf %46 : vector<8x8xf32> to vector<8x8xbf16>
    %c0_17 = arith.constant 0 : index
    %c0_18 = arith.constant 0 : index
    %c8 = arith.constant 8 : index
    %48 = vector.load %arg4[%c0_17, %c0_18, %c8] : memref<1x8x32xbf16, #tpu.memory_space<vmem>>, vector<1x8x8xbf16>
    %49 = vector.shape_cast %48 : vector<1x8x8xbf16> to vector<8x8xbf16>
    %50 = vector.shape_cast %47 : vector<8x8xbf16> to vector<1x8x8xbf16>
    tpu.vector_store %arg4[%c0_17, %c0_18, %c8], %50 {strides = array<i32>} : memref<1x8x32xbf16, #tpu.memory_space<vmem>>, vector<1x8x8xbf16>,
    %51 = vector.extract_strided_slice %2 {offsets = [0, 16], sizes = [8, 8], strides = [1, 1]} : vector<8x32xbf16> to vector<8x8xbf16>
    %52 = vector.extract_strided_slice %1 {offsets = [0, 48], sizes = [8, 8], strides = [1, 1]} : vector<8x96xbf16> to vector<8x8xbf16>
    %53 = vector.extract_strided_slice %1 {offsets = [0, 80], sizes = [8, 8], strides = [1, 1]} : vector<8x96xbf16> to vector<8x8xbf16>
    %cst_19 = arith.constant dense<0.000000e+00> : vector<8x8xf32>
    %54 = tpu.matmul %51, %52, %cst_19 {dimension_numbers = #tpu.dot_dimension_numbers<[1], [1], [0], [0], [0, 0, 1, 0], [], []>} : vector<8x8xbf16>, vector<8x8xbf16>, vector<8x8xf32> -> vector<8x8xf32>
    %cst_20 = arith.constant 0.353553385 : f32
    %55 = vector.broadcast %cst_20 : f32 to vector<8x8xf32>
    %56 = arith.mulf %54, %55 : vector<8x8xf32>
    %57 = arith.addf %56, %4 : vector<8x8xf32>
    %cst_21 = arith.constant dense<0xFF800000> : vector<8xf32>
    %58 = vector.multi_reduction <maximumf>, %57, %cst_21 [1] : vector<8x8xf32> to vector<8xf32>
    %59 = vector.shape_cast %58 : vector<8xf32> to vector<8x1xf32>
    %60 = vector.broadcast %59 : vector<8x1xf32> to vector<8x8xf32>
    %61 = arith.subf %57, %60 : vector<8x8xf32>
    %62 = math.exp %61 : vector<8x8xf32>
    %cst_22 = arith.constant dense<0.000000e+00> : vector<8xf32>
    %63 = vector.multi_reduction <add>, %62, %cst_22 [1] : vector<8x8xf32> to vector<8xf32>
    %64 = vector.shape_cast %63 : vector<8xf32> to vector<8x1xf32>
    %65 = tpu.reciprocal %64 {approx = true} : vector<8x1xf32> -> vector<8x1xf32>
    %66 = vector.broadcast %65 : vector<8x1xf32> to vector<8x8xf32>
    %67 = arith.mulf %62, %66 : vector<8x8xf32>
    %68 = arith.truncf %67 : vector<8x8xf32> to vector<8x8xbf16>
    %cst_23 = arith.constant dense<0.000000e+00> : vector<8x8xf32>
    %69 = tpu.matmul %68, %53, %cst_23 {dimension_numbers = #tpu.dot_dimension_numbers<[1], [0], [0], [1], [0, 0, 1, 1], [], []>} : vector<8x8xbf16>, vector<8x8xbf16>, vector<8x8xf32> -> vector<8x8xf32>
    %70 = arith.truncf %69 : vector<8x8xf32> to vector<8x8xbf16>
    %c0_24 = arith.constant 0 : index
    %c0_25 = arith.constant 0 : index
    %c16 = arith.constant 16 : index
    %71 = vector.load %arg4[%c0_24, %c0_25, %c16] : memref<1x8x32xbf16, #tpu.memory_space<vmem>>, vector<1x8x8xbf16>
    %72 = vector.shape_cast %71 : vector<1x8x8xbf16> to vector<8x8xbf16>
    %73 = vector.shape_cast %70 : vector<8x8xbf16> to vector<1x8x8xbf16>
    tpu.vector_store %arg4[%c0_24, %c0_25, %c16], %73 {strides = array<i32>} : memref<1x8x32xbf16, #tpu.memory_space<vmem>>, vector<1x8x8xbf16>,
    %74 = vector.extract_strided_slice %2 {offsets = [0, 24], sizes = [8, 8], strides = [1, 1]} : vector<8x32xbf16> to vector<8x8xbf16>
    %75 = vector.extract_strided_slice %1 {offsets = [0, 56], sizes = [8, 8], strides = [1, 1]} : vector<8x96xbf16> to vector<8x8xbf16>
    %76 = vector.extract_strided_slice %1 {offsets = [0, 88], sizes = [8, 8], strides = [1, 1]} : vector<8x96xbf16> to vector<8x8xbf16>
    %cst_26 = arith.constant dense<0.000000e+00> : vector<8x8xf32>
    %77 = tpu.matmul %74, %75, %cst_26 {dimension_numbers = #tpu.dot_dimension_numbers<[1], [1], [0], [0], [0, 0, 1, 0], [], []>} : vector<8x8xbf16>, vector<8x8xbf16>, vector<8x8xf32> -> vector<8x8xf32>
    %cst_27 = arith.constant 0.353553385 : f32
    %78 = vector.broadcast %cst_27 : f32 to vector<8x8xf32>
    %79 = arith.mulf %77, %78 : vector<8x8xf32>
    %80 = arith.addf %79, %4 : vector<8x8xf32>
    %cst_28 = arith.constant dense<0xFF800000> : vector<8xf32>
    %81 = vector.multi_reduction <maximumf>, %80, %cst_28 [1] : vector<8x8xf32> to vector<8xf32>
    %82 = vector.shape_cast %81 : vector<8xf32> to vector<8x1xf32>
    %83 = vector.broadcast %82 : vector<8x1xf32> to vector<8x8xf32>
    %84 = arith.subf %80, %83 : vector<8x8xf32>
    %85 = math.exp %84 : vector<8x8xf32>
    %cst_29 = arith.constant dense<0.000000e+00> : vector<8xf32>
    %86 = vector.multi_reduction <add>, %85, %cst_29 [1] : vector<8x8xf32> to vector<8xf32>
    %87 = vector.shape_cast %86 : vector<8xf32> to vector<8x1xf32>
    %88 = tpu.reciprocal %87 {approx = true} : vector<8x1xf32> -> vector<8x1xf32>
    %89 = vector.broadcast %88 : vector<8x1xf32> to vector<8x8xf32>
    %90 = arith.mulf %85, %89 : vector<8x8xf32>
    %91 = arith.truncf %90 : vector<8x8xf32> to vector<8x8xbf16>
    %cst_30 = arith.constant dense<0.000000e+00> : vector<8x8xf32>
    %92 = tpu.matmul %91, %76, %cst_30 {dimension_numbers = #tpu.dot_dimension_numbers<[1], [0], [0], [1], [0, 0, 1, 1], [], []>} : vector<8x8xbf16>, vector<8x8xbf16>, vector<8x8xf32> -> vector<8x8xf32>
    %93 = arith.truncf %92 : vector<8x8xf32> to vector<8x8xbf16>
    %c0_31 = arith.constant 0 : index
    %c0_32 = arith.constant 0 : index
    %c24 = arith.constant 24 : index
    %94 = vector.load %arg4[%c0_31, %c0_32, %c24] : memref<1x8x32xbf16, #tpu.memory_space<vmem>>, vector<1x8x8xbf16>
    %95 = vector.shape_cast %94 : vector<1x8x8xbf16> to vector<8x8xbf16>
    %96 = vector.shape_cast %93 : vector<8x8xbf16> to vector<1x8x8xbf16>
    tpu.vector_store %arg4[%c0_31, %c0_32, %c24], %96 {strides = array<i32>} : memref<1x8x32xbf16, #tpu.memory_space<vmem>>, vector<1x8x8xbf16>,
    return
  }
  func.func @transform_0(%arg0: i32, %arg1: i32) -> (i32, i32, i32) {
    %c0_i32 = arith.constant 0 : i32
    %c0_i32_0 = arith.constant 0 : i32
    %c0_i32_1 = arith.constant 0 : i32
    return %arg0, %c0_i32, %c0_i32_0 : i32, i32, i32
  }
  func.func @transform_1(%arg0: i32, %arg1: i32) -> (i32, i32, i32) {
    %c0_i32 = arith.constant 0 : i32
    %c0_i32_0 = arith.constant 0 : i32
    return %arg0, %arg1, %c0_i32 : i32, i32, i32
  }
  func.func @transform_2(%arg0: i32, %arg1: i32) -> (i32, i32, i32) {
    %c0_i32 = arith.constant 0 : i32
    %c0_i32_0 = arith.constant 0 : i32
    return %arg0, %arg1, %c0_i32 : i32, i32, i32
  }
}

module attributes {stable_mosaic.version = 11 : i64} {
  func.func @_linear_kernel(%arg0: i32, %arg1: i32, %arg2: i32, %arg3: memref<16x32xf32, #tpu.memory_space<vmem>>, %arg4: memref<32x96xbf16, #tpu.memory_space<vmem>>, %arg5: memref<1x96xf32, #tpu.memory_space<vmem>>, %arg6: memref<16x96xbf16, #tpu.memory_space<vmem>>, %arg7: memref<16x96xf32, #tpu.memory_space<vmem>>) attributes {dimension_semantics = [#tpu.dimension_semantics<parallel>, #tpu.dimension_semantics<parallel>, #tpu.dimension_semantics<arbitrary>], iteration_bounds = array<i64: 1, 1, 1>, scalar_prefetch = 0 : i64, scratch_operands = 1 : i64, tpu.core_type = #tpu.core_type<tc>, window_params = [{transform_indices = @transform_0, window_bounds = array<i64: 16, 32>}, {transform_indices = @transform_1, window_bounds = array<i64: 32, 96>}, {transform_indices = @transform_2, window_bounds = array<i64: 1, 96>}, {transform_indices = @transform_3, window_bounds = array<i64: 16, 96>}]} {
    %c0_i32 = arith.constant 0 : i32
    %0 = arith.cmpi eq, %arg2, %c0_i32 : i32
    %1 = arith.extui %0 : i1 to i32
    %c0_i32_0 = arith.constant 0 : i32
    %2 = arith.cmpi ne, %1, %c0_i32_0 : i32
    scf.if %2 {
      %cst_10 = arith.constant 0.000000e+00 : f32
      %13 = vector.broadcast %cst_10 : f32 to vector<16x96xf32>
      %c0_11 = arith.constant 0 : index
      %c0_12 = arith.constant 0 : index
      %14 = vector.load %arg7[%c0_11, %c0_12] : memref<16x96xf32, #tpu.memory_space<vmem>>, vector<16x96xf32>
      tpu.vector_store %arg7[%c0_11, %c0_12], %13 {strides = array<i32>} : memref<16x96xf32, #tpu.memory_space<vmem>>, vector<16x96xf32>,
    } else {
    }
    %c0 = arith.constant 0 : index
    %c0_1 = arith.constant 0 : index
    %3 = vector.load %arg3[%c0, %c0_1] : memref<16x32xf32, #tpu.memory_space<vmem>>, vector<16x32xf32>
    %c0_2 = arith.constant 0 : index
    %c0_3 = arith.constant 0 : index
    %4 = vector.load %arg7[%c0_2, %c0_3] : memref<16x96xf32, #tpu.memory_space<vmem>>, vector<16x96xf32>
    %5 = arith.truncf %3 : vector<16x32xf32> to vector<16x32xbf16>
    %c0_4 = arith.constant 0 : index
    %c0_5 = arith.constant 0 : index
    %6 = vector.load %arg4[%c0_4, %c0_5] : memref<32x96xbf16, #tpu.memory_space<vmem>>, vector<32x96xbf16>
    %cst = arith.constant dense<0.000000e+00> : vector<16x96xf32>
    %7 = tpu.matmul %5, %6, %cst {dimension_numbers = #tpu.dot_dimension_numbers<[1], [0], [0], [1], [0, 0, 1, 1], [], []>} : vector<16x32xbf16>, vector<32x96xbf16>, vector<16x96xf32> -> vector<16x96xf32>
    %8 = arith.addf %4, %7 : vector<16x96xf32>
    %c0_6 = arith.constant 0 : index
    %c0_7 = arith.constant 0 : index
    %9 = vector.load %arg7[%c0_6, %c0_7] : memref<16x96xf32, #tpu.memory_space<vmem>>, vector<16x96xf32>
    tpu.vector_store %arg7[%c0_6, %c0_7], %8 {strides = array<i32>} : memref<16x96xf32, #tpu.memory_space<vmem>>, vector<16x96xf32>,
    %c0_i32_8 = arith.constant 0 : i32
    %10 = arith.cmpi eq, %arg2, %c0_i32_8 : i32
    %11 = arith.extui %10 : i1 to i32
    %c0_i32_9 = arith.constant 0 : i32
    %12 = arith.cmpi ne, %11, %c0_i32_9 : i32
    scf.if %12 {
      %c0_10 = arith.constant 0 : index
      %c0_11 = arith.constant 0 : index
      %13 = vector.load %arg7[%c0_10, %c0_11] : memref<16x96xf32, #tpu.memory_space<vmem>>, vector<16x96xf32>
      %c0_12 = arith.constant 0 : index
      %c0_13 = arith.constant 0 : index
      %14 = vector.load %arg5[%c0_12, %c0_13] : memref<1x96xf32, #tpu.memory_space<vmem>>, vector<1x96xf32>
      %15 = vector.broadcast %14 : vector<1x96xf32> to vector<16x96xf32>
      %16 = arith.addf %13, %15 : vector<16x96xf32>
      %17 = arith.truncf %16 : vector<16x96xf32> to vector<16x96xbf16>
      %c0_14 = arith.constant 0 : index
      %c0_15 = arith.constant 0 : index
      %18 = vector.load %arg6[%c0_14, %c0_15] : memref<16x96xbf16, #tpu.memory_space<vmem>>, vector<16x96xbf16>
      tpu.vector_store %arg6[%c0_14, %c0_15], %17 {strides = array<i32>} : memref<16x96xbf16, #tpu.memory_space<vmem>>, vector<16x96xbf16>,
    } else {
    }
    return
  }
  func.func @transform_0(%arg0: i32, %arg1: i32, %arg2: i32) -> (i32, i32) {
    %c0_i32 = arith.constant 0 : i32
    return %arg0, %arg2 : i32, i32
  }
  func.func @transform_1(%arg0: i32, %arg1: i32, %arg2: i32) -> (i32, i32) {
    %c0_i32 = arith.constant 0 : i32
    return %arg2, %arg1 : i32, i32
  }
  func.func @transform_2(%arg0: i32, %arg1: i32, %arg2: i32) -> (i32, i32) {
    %c0_i32 = arith.constant 0 : i32
    %c0_i32_0 = arith.constant 0 : i32
    return %c0_i32, %arg1 : i32, i32
  }
  func.func @transform_3(%arg0: i32, %arg1: i32, %arg2: i32) -> (i32, i32) {
    %c0_i32 = arith.constant 0 : i32
    return %arg0, %arg1 : i32, i32
  }
}

module attributes {stable_mosaic.version = 11 : i64} {
  func.func @_linear_res_ln_kernel(%arg0: i32, %arg1: i32, %arg2: memref<16x32xbf16, #tpu.memory_space<vmem>>, %arg3: memref<32x32xbf16, #tpu.memory_space<vmem>>, %arg4: memref<1x32xf32, #tpu.memory_space<vmem>>, %arg5: memref<16x32xf32, #tpu.memory_space<vmem>>, %arg6: memref<1x32xf32, #tpu.memory_space<vmem>>, %arg7: memref<1x32xf32, #tpu.memory_space<vmem>>, %arg8: memref<16x32xf32, #tpu.memory_space<vmem>>, %arg9: memref<16x32xf32, #tpu.memory_space<vmem>>) attributes {dimension_semantics = [#tpu.dimension_semantics<parallel>, #tpu.dimension_semantics<arbitrary>], iteration_bounds = array<i64: 1, 1>, scalar_prefetch = 0 : i64, scratch_operands = 1 : i64, tpu.core_type = #tpu.core_type<tc>, window_params = [{transform_indices = @transform_0, window_bounds = array<i64: 16, 32>}, {transform_indices = @transform_1, window_bounds = array<i64: 32, 32>}, {pipeline_mode = #tpu.pipeline_mode<synchronous>, transform_indices = @transform_2, window_bounds = array<i64: 1, 32>}, {transform_indices = @transform_3, window_bounds = array<i64: 16, 32>}, {pipeline_mode = #tpu.pipeline_mode<synchronous>, transform_indices = @transform_4, window_bounds = array<i64: 1, 32>}, {pipeline_mode = #tpu.pipeline_mode<synchronous>, transform_indices = @transform_5, window_bounds = array<i64: 1, 32>}, {transform_indices = @transform_6, window_bounds = array<i64: 16, 32>}]} {
    %c0_i32 = arith.constant 0 : i32
    %0 = arith.cmpi eq, %arg1, %c0_i32 : i32
    %1 = arith.extui %0 : i1 to i32
    %c0_i32_0 = arith.constant 0 : i32
    %2 = arith.cmpi ne, %1, %c0_i32_0 : i32
    scf.if %2 {
      %cst_10 = arith.constant 0.000000e+00 : f32
      %12 = vector.broadcast %cst_10 : f32 to vector<16x32xf32>
      %c0_11 = arith.constant 0 : index
      %c0_12 = arith.constant 0 : index
      %13 = vector.load %arg9[%c0_11, %c0_12] : memref<16x32xf32, #tpu.memory_space<vmem>>, vector<16x32xf32>
      tpu.vector_store %arg9[%c0_11, %c0_12], %12 {strides = array<i32>} : memref<16x32xf32, #tpu.memory_space<vmem>>, vector<16x32xf32>,
    } else {
    }
    %c0 = arith.constant 0 : index
    %c0_1 = arith.constant 0 : index
    %3 = vector.load %arg9[%c0, %c0_1] : memref<16x32xf32, #tpu.memory_space<vmem>>, vector<16x32xf32>
    %c0_2 = arith.constant 0 : index
    %c0_3 = arith.constant 0 : index
    %4 = vector.load %arg2[%c0_2, %c0_3] : memref<16x32xbf16, #tpu.memory_space<vmem>>, vector<16x32xbf16>
    %c0_4 = arith.constant 0 : index
    %c0_5 = arith.constant 0 : index
    %5 = vector.load %arg3[%c0_4, %c0_5] : memref<32x32xbf16, #tpu.memory_space<vmem>>, vector<32x32xbf16>
    %cst = arith.constant dense<0.000000e+00> : vector<16x32xf32>
    %6 = tpu.matmul %4, %5, %cst {dimension_numbers = #tpu.dot_dimension_numbers<[1], [0], [0], [1], [0, 0, 1, 1], [], []>} : vector<16x32xbf16>, vector<32x32xbf16>, vector<16x32xf32> -> vector<16x32xf32>
    %7 = arith.addf %3, %6 : vector<16x32xf32>
    %c0_6 = arith.constant 0 : index
    %c0_7 = arith.constant 0 : index
    %8 = vector.load %arg9[%c0_6, %c0_7] : memref<16x32xf32, #tpu.memory_space<vmem>>, vector<16x32xf32>
    tpu.vector_store %arg9[%c0_6, %c0_7], %7 {strides = array<i32>} : memref<16x32xf32, #tpu.memory_space<vmem>>, vector<16x32xf32>,
    %c0_i32_8 = arith.constant 0 : i32
    %9 = arith.cmpi eq, %arg1, %c0_i32_8 : i32
    %10 = arith.extui %9 : i1 to i32
    %c0_i32_9 = arith.constant 0 : i32
    %11 = arith.cmpi ne, %10, %c0_i32_9 : i32
    scf.if %11 {
      %c0_10 = arith.constant 0 : index
      %c0_11 = arith.constant 0 : index
      %12 = vector.load %arg9[%c0_10, %c0_11] : memref<16x32xf32, #tpu.memory_space<vmem>>, vector<16x32xf32>
      %c0_12 = arith.constant 0 : index
      %c0_13 = arith.constant 0 : index
      %13 = vector.load %arg4[%c0_12, %c0_13] : memref<1x32xf32, #tpu.memory_space<vmem>>, vector<1x32xf32>
      %14 = vector.broadcast %13 : vector<1x32xf32> to vector<16x32xf32>
      %15 = arith.addf %12, %14 : vector<16x32xf32>
      %c0_14 = arith.constant 0 : index
      %c0_15 = arith.constant 0 : index
      %16 = vector.load %arg5[%c0_14, %c0_15] : memref<16x32xf32, #tpu.memory_space<vmem>>, vector<16x32xf32>
      %17 = arith.addf %15, %16 : vector<16x32xf32>
      %cst_16 = arith.constant dense<0.000000e+00> : vector<16xf32>
      %18 = vector.multi_reduction <add>, %17, %cst_16 [1] : vector<16x32xf32> to vector<16xf32>
      %19 = vector.shape_cast %18 : vector<16xf32> to vector<16x1xf32>
      %cst_17 = arith.constant 3.200000e+01 : f32
      %20 = vector.broadcast %cst_17 : f32 to vector<16x1xf32>
      %21 = arith.divf %19, %20 : vector<16x1xf32>
      %22 = vector.broadcast %21 : vector<16x1xf32> to vector<16x32xf32>
      %23 = arith.subf %17, %22 : vector<16x32xf32>
      %24 = arith.mulf %23, %23 : vector<16x32xf32>
      %cst_18 = arith.constant dense<0.000000e+00> : vector<16xf32>
      %25 = vector.multi_reduction <add>, %24, %cst_18 [1] : vector<16x32xf32> to vector<16xf32>
      %26 = vector.shape_cast %25 : vector<16xf32> to vector<16x1xf32>
      %cst_19 = arith.constant 3.200000e+01 : f32
      %27 = vector.broadcast %cst_19 : f32 to vector<16x1xf32>
      %28 = arith.divf %26, %27 : vector<16x1xf32>
      %cst_20 = arith.constant 9.99999997E-7 : f32
      %29 = vector.broadcast %cst_20 : f32 to vector<16x1xf32>
      %30 = arith.addf %28, %29 : vector<16x1xf32>
      %31 = math.rsqrt %30 : vector<16x1xf32>
      %32 = vector.broadcast %31 : vector<16x1xf32> to vector<16x32xf32>
      %33 = arith.mulf %23, %32 : vector<16x32xf32>
      %c0_21 = arith.constant 0 : index
      %c0_22 = arith.constant 0 : index
      %34 = vector.load %arg6[%c0_21, %c0_22] : memref<1x32xf32, #tpu.memory_space<vmem>>, vector<1x32xf32>
      %35 = vector.broadcast %34 : vector<1x32xf32> to vector<16x32xf32>
      %36 = arith.mulf %33, %35 : vector<16x32xf32>
      %c0_23 = arith.constant 0 : index
      %c0_24 = arith.constant 0 : index
      %37 = vector.load %arg7[%c0_23, %c0_24] : memref<1x32xf32, #tpu.memory_space<vmem>>, vector<1x32xf32>
      %38 = vector.broadcast %37 : vector<1x32xf32> to vector<16x32xf32>
      %39 = arith.addf %36, %38 : vector<16x32xf32>
      %c0_25 = arith.constant 0 : index
      %c0_26 = arith.constant 0 : index
      %40 = vector.load %arg8[%c0_25, %c0_26] : memref<16x32xf32, #tpu.memory_space<vmem>>, vector<16x32xf32>
      tpu.vector_store %arg8[%c0_25, %c0_26], %39 {strides = array<i32>} : memref<16x32xf32, #tpu.memory_space<vmem>>, vector<16x32xf32>,
    } else {
    }
    return
  }
  func.func @transform_0(%arg0: i32, %arg1: i32) -> (i32, i32) {
    %c0_i32 = arith.constant 0 : i32
    return %arg0, %arg1 : i32, i32
  }
  func.func @transform_1(%arg0: i32, %arg1: i32) -> (i32, i32) {
    %c0_i32 = arith.constant 0 : i32
    %c0_i32_0 = arith.constant 0 : i32
    return %arg1, %c0_i32 : i32, i32
  }
  func.func @transform_2(%arg0: i32, %arg1: i32) -> (i32, i32) {
    %c0_i32 = arith.constant 0 : i32
    %c0_i32_0 = arith.constant 0 : i32
    %c0_i32_1 = arith.constant 0 : i32
    return %c0_i32, %c0_i32_0 : i32, i32
  }
  func.func @transform_3(%arg0: i32, %arg1: i32) -> (i32, i32) {
    %c0_i32 = arith.constant 0 : i32
    %c0_i32_0 = arith.constant 0 : i32
    return %arg0, %c0_i32 : i32, i32
  }
  func.func @transform_4(%arg0: i32, %arg1: i32) -> (i32, i32) {
    %c0_i32 = arith.constant 0 : i32
    %c0_i32_0 = arith.constant 0 : i32
    %c0_i32_1 = arith.constant 0 : i32
    return %c0_i32, %c0_i32_0 : i32, i32
  }
  func.func @transform_5(%arg0: i32, %arg1: i32) -> (i32, i32) {
    %c0_i32 = arith.constant 0 : i32
    %c0_i32_0 = arith.constant 0 : i32
    %c0_i32_1 = arith.constant 0 : i32
    return %c0_i32, %c0_i32_0 : i32, i32
  }
  func.func @transform_6(%arg0: i32, %arg1: i32) -> (i32, i32) {
    %c0_i32 = arith.constant 0 : i32
    %c0_i32_0 = arith.constant 0 : i32
    return %arg0, %c0_i32 : i32, i32
  }
}

module attributes {stable_mosaic.version = 11 : i64} {
  func.func @_linear_kernel(%arg0: i32, %arg1: i32, %arg2: i32, %arg3: memref<16x32xf32, #tpu.memory_space<vmem>>, %arg4: memref<32x64xbf16, #tpu.memory_space<vmem>>, %arg5: memref<1x64xf32, #tpu.memory_space<vmem>>, %arg6: memref<16x64xbf16, #tpu.memory_space<vmem>>, %arg7: memref<16x64xf32, #tpu.memory_space<vmem>>) attributes {dimension_semantics = [#tpu.dimension_semantics<parallel>, #tpu.dimension_semantics<parallel>, #tpu.dimension_semantics<arbitrary>], iteration_bounds = array<i64: 1, 1, 1>, scalar_prefetch = 0 : i64, scratch_operands = 1 : i64, tpu.core_type = #tpu.core_type<tc>, window_params = [{transform_indices = @transform_0, window_bounds = array<i64: 16, 32>}, {transform_indices = @transform_1, window_bounds = array<i64: 32, 64>}, {transform_indices = @transform_2, window_bounds = array<i64: 1, 64>}, {transform_indices = @transform_3, window_bounds = array<i64: 16, 64>}]} {
    %c0_i32 = arith.constant 0 : i32
    %0 = arith.cmpi eq, %arg2, %c0_i32 : i32
    %1 = arith.extui %0 : i1 to i32
    %c0_i32_0 = arith.constant 0 : i32
    %2 = arith.cmpi ne, %1, %c0_i32_0 : i32
    scf.if %2 {
      %cst_10 = arith.constant 0.000000e+00 : f32
      %13 = vector.broadcast %cst_10 : f32 to vector<16x64xf32>
      %c0_11 = arith.constant 0 : index
      %c0_12 = arith.constant 0 : index
      %14 = vector.load %arg7[%c0_11, %c0_12] : memref<16x64xf32, #tpu.memory_space<vmem>>, vector<16x64xf32>
      tpu.vector_store %arg7[%c0_11, %c0_12], %13 {strides = array<i32>} : memref<16x64xf32, #tpu.memory_space<vmem>>, vector<16x64xf32>,
    } else {
    }
    %c0 = arith.constant 0 : index
    %c0_1 = arith.constant 0 : index
    %3 = vector.load %arg3[%c0, %c0_1] : memref<16x32xf32, #tpu.memory_space<vmem>>, vector<16x32xf32>
    %c0_2 = arith.constant 0 : index
    %c0_3 = arith.constant 0 : index
    %4 = vector.load %arg7[%c0_2, %c0_3] : memref<16x64xf32, #tpu.memory_space<vmem>>, vector<16x64xf32>
    %5 = arith.truncf %3 : vector<16x32xf32> to vector<16x32xbf16>
    %c0_4 = arith.constant 0 : index
    %c0_5 = arith.constant 0 : index
    %6 = vector.load %arg4[%c0_4, %c0_5] : memref<32x64xbf16, #tpu.memory_space<vmem>>, vector<32x64xbf16>
    %cst = arith.constant dense<0.000000e+00> : vector<16x64xf32>
    %7 = tpu.matmul %5, %6, %cst {dimension_numbers = #tpu.dot_dimension_numbers<[1], [0], [0], [1], [0, 0, 1, 1], [], []>} : vector<16x32xbf16>, vector<32x64xbf16>, vector<16x64xf32> -> vector<16x64xf32>
    %8 = arith.addf %4, %7 : vector<16x64xf32>
    %c0_6 = arith.constant 0 : index
    %c0_7 = arith.constant 0 : index
    %9 = vector.load %arg7[%c0_6, %c0_7] : memref<16x64xf32, #tpu.memory_space<vmem>>, vector<16x64xf32>
    tpu.vector_store %arg7[%c0_6, %c0_7], %8 {strides = array<i32>} : memref<16x64xf32, #tpu.memory_space<vmem>>, vector<16x64xf32>,
    %c0_i32_8 = arith.constant 0 : i32
    %10 = arith.cmpi eq, %arg2, %c0_i32_8 : i32
    %11 = arith.extui %10 : i1 to i32
    %c0_i32_9 = arith.constant 0 : i32
    %12 = arith.cmpi ne, %11, %c0_i32_9 : i32
    scf.if %12 {
      %c0_10 = arith.constant 0 : index
      %c0_11 = arith.constant 0 : index
      %13 = vector.load %arg7[%c0_10, %c0_11] : memref<16x64xf32, #tpu.memory_space<vmem>>, vector<16x64xf32>
      %c0_12 = arith.constant 0 : index
      %c0_13 = arith.constant 0 : index
      %14 = vector.load %arg5[%c0_12, %c0_13] : memref<1x64xf32, #tpu.memory_space<vmem>>, vector<1x64xf32>
      %15 = vector.broadcast %14 : vector<1x64xf32> to vector<16x64xf32>
      %16 = arith.addf %13, %15 : vector<16x64xf32>
      %cst_14 = arith.constant 0.000000e+00 : f32
      %17 = vector.broadcast %cst_14 : f32 to vector<16x64xf32>
      %18 = arith.maximumf %16, %17 : vector<16x64xf32>
      %19 = arith.truncf %18 : vector<16x64xf32> to vector<16x64xbf16>
      %c0_15 = arith.constant 0 : index
      %c0_16 = arith.constant 0 : index
      %20 = vector.load %arg6[%c0_15, %c0_16] : memref<16x64xbf16, #tpu.memory_space<vmem>>, vector<16x64xbf16>
      tpu.vector_store %arg6[%c0_15, %c0_16], %19 {strides = array<i32>} : memref<16x64xbf16, #tpu.memory_space<vmem>>, vector<16x64xbf16>,
    } else {
    }
    return
  }
  func.func @transform_0(%arg0: i32, %arg1: i32, %arg2: i32) -> (i32, i32) {
    %c0_i32 = arith.constant 0 : i32
    return %arg0, %arg2 : i32, i32
  }
  func.func @transform_1(%arg0: i32, %arg1: i32, %arg2: i32) -> (i32, i32) {
    %c0_i32 = arith.constant 0 : i32
    return %arg2, %arg1 : i32, i32
  }
  func.func @transform_2(%arg0: i32, %arg1: i32, %arg2: i32) -> (i32, i32) {
    %c0_i32 = arith.constant 0 : i32
    %c0_i32_0 = arith.constant 0 : i32
    return %c0_i32, %arg1 : i32, i32
  }
  func.func @transform_3(%arg0: i32, %arg1: i32, %arg2: i32) -> (i32, i32) {
    %c0_i32 = arith.constant 0 : i32
    return %arg0, %arg1 : i32, i32
  }
}

module attributes {stable_mosaic.version = 11 : i64} {
  func.func @_linear_res_ln_kernel(%arg0: i32, %arg1: i32, %arg2: memref<16x64xbf16, #tpu.memory_space<vmem>>, %arg3: memref<64x32xbf16, #tpu.memory_space<vmem>>, %arg4: memref<1x32xf32, #tpu.memory_space<vmem>>, %arg5: memref<16x32xf32, #tpu.memory_space<vmem>>, %arg6: memref<1x32xf32, #tpu.memory_space<vmem>>, %arg7: memref<1x32xf32, #tpu.memory_space<vmem>>, %arg8: memref<16x32xf32, #tpu.memory_space<vmem>>, %arg9: memref<16x32xf32, #tpu.memory_space<vmem>>) attributes {dimension_semantics = [#tpu.dimension_semantics<parallel>, #tpu.dimension_semantics<arbitrary>], iteration_bounds = array<i64: 1, 1>, scalar_prefetch = 0 : i64, scratch_operands = 1 : i64, tpu.core_type = #tpu.core_type<tc>, window_params = [{transform_indices = @transform_0, window_bounds = array<i64: 16, 64>}, {transform_indices = @transform_1, window_bounds = array<i64: 64, 32>}, {pipeline_mode = #tpu.pipeline_mode<synchronous>, transform_indices = @transform_2, window_bounds = array<i64: 1, 32>}, {transform_indices = @transform_3, window_bounds = array<i64: 16, 32>}, {pipeline_mode = #tpu.pipeline_mode<synchronous>, transform_indices = @transform_4, window_bounds = array<i64: 1, 32>}, {pipeline_mode = #tpu.pipeline_mode<synchronous>, transform_indices = @transform_5, window_bounds = array<i64: 1, 32>}, {transform_indices = @transform_6, window_bounds = array<i64: 16, 32>}]} {
    %c0_i32 = arith.constant 0 : i32
    %0 = arith.cmpi eq, %arg1, %c0_i32 : i32
    %1 = arith.extui %0 : i1 to i32
    %c0_i32_0 = arith.constant 0 : i32
    %2 = arith.cmpi ne, %1, %c0_i32_0 : i32
    scf.if %2 {
      %cst_10 = arith.constant 0.000000e+00 : f32
      %12 = vector.broadcast %cst_10 : f32 to vector<16x32xf32>
      %c0_11 = arith.constant 0 : index
      %c0_12 = arith.constant 0 : index
      %13 = vector.load %arg9[%c0_11, %c0_12] : memref<16x32xf32, #tpu.memory_space<vmem>>, vector<16x32xf32>
      tpu.vector_store %arg9[%c0_11, %c0_12], %12 {strides = array<i32>} : memref<16x32xf32, #tpu.memory_space<vmem>>, vector<16x32xf32>,
    } else {
    }
    %c0 = arith.constant 0 : index
    %c0_1 = arith.constant 0 : index
    %3 = vector.load %arg9[%c0, %c0_1] : memref<16x32xf32, #tpu.memory_space<vmem>>, vector<16x32xf32>
    %c0_2 = arith.constant 0 : index
    %c0_3 = arith.constant 0 : index
    %4 = vector.load %arg2[%c0_2, %c0_3] : memref<16x64xbf16, #tpu.memory_space<vmem>>, vector<16x64xbf16>
    %c0_4 = arith.constant 0 : index
    %c0_5 = arith.constant 0 : index
    %5 = vector.load %arg3[%c0_4, %c0_5] : memref<64x32xbf16, #tpu.memory_space<vmem>>, vector<64x32xbf16>
    %cst = arith.constant dense<0.000000e+00> : vector<16x32xf32>
    %6 = tpu.matmul %4, %5, %cst {dimension_numbers = #tpu.dot_dimension_numbers<[1], [0], [0], [1], [0, 0, 1, 1], [], []>} : vector<16x64xbf16>, vector<64x32xbf16>, vector<16x32xf32> -> vector<16x32xf32>
    %7 = arith.addf %3, %6 : vector<16x32xf32>
    %c0_6 = arith.constant 0 : index
    %c0_7 = arith.constant 0 : index
    %8 = vector.load %arg9[%c0_6, %c0_7] : memref<16x32xf32, #tpu.memory_space<vmem>>, vector<16x32xf32>
    tpu.vector_store %arg9[%c0_6, %c0_7], %7 {strides = array<i32>} : memref<16x32xf32, #tpu.memory_space<vmem>>, vector<16x32xf32>,
    %c0_i32_8 = arith.constant 0 : i32
    %9 = arith.cmpi eq, %arg1, %c0_i32_8 : i32
    %10 = arith.extui %9 : i1 to i32
    %c0_i32_9 = arith.constant 0 : i32
    %11 = arith.cmpi ne, %10, %c0_i32_9 : i32
    scf.if %11 {
      %c0_10 = arith.constant 0 : index
      %c0_11 = arith.constant 0 : index
      %12 = vector.load %arg9[%c0_10, %c0_11] : memref<16x32xf32, #tpu.memory_space<vmem>>, vector<16x32xf32>
      %c0_12 = arith.constant 0 : index
      %c0_13 = arith.constant 0 : index
      %13 = vector.load %arg4[%c0_12, %c0_13] : memref<1x32xf32, #tpu.memory_space<vmem>>, vector<1x32xf32>
      %14 = vector.broadcast %13 : vector<1x32xf32> to vector<16x32xf32>
      %15 = arith.addf %12, %14 : vector<16x32xf32>
      %c0_14 = arith.constant 0 : index
      %c0_15 = arith.constant 0 : index
      %16 = vector.load %arg5[%c0_14, %c0_15] : memref<16x32xf32, #tpu.memory_space<vmem>>, vector<16x32xf32>
      %17 = arith.addf %15, %16 : vector<16x32xf32>
      %cst_16 = arith.constant dense<0.000000e+00> : vector<16xf32>
      %18 = vector.multi_reduction <add>, %17, %cst_16 [1] : vector<16x32xf32> to vector<16xf32>
      %19 = vector.shape_cast %18 : vector<16xf32> to vector<16x1xf32>
      %cst_17 = arith.constant 3.200000e+01 : f32
      %20 = vector.broadcast %cst_17 : f32 to vector<16x1xf32>
      %21 = arith.divf %19, %20 : vector<16x1xf32>
      %22 = vector.broadcast %21 : vector<16x1xf32> to vector<16x32xf32>
      %23 = arith.subf %17, %22 : vector<16x32xf32>
      %24 = arith.mulf %23, %23 : vector<16x32xf32>
      %cst_18 = arith.constant dense<0.000000e+00> : vector<16xf32>
      %25 = vector.multi_reduction <add>, %24, %cst_18 [1] : vector<16x32xf32> to vector<16xf32>
      %26 = vector.shape_cast %25 : vector<16xf32> to vector<16x1xf32>
      %cst_19 = arith.constant 3.200000e+01 : f32
      %27 = vector.broadcast %cst_19 : f32 to vector<16x1xf32>
      %28 = arith.divf %26, %27 : vector<16x1xf32>
      %cst_20 = arith.constant 9.99999997E-7 : f32
      %29 = vector.broadcast %cst_20 : f32 to vector<16x1xf32>
      %30 = arith.addf %28, %29 : vector<16x1xf32>
      %31 = math.rsqrt %30 : vector<16x1xf32>
      %32 = vector.broadcast %31 : vector<16x1xf32> to vector<16x32xf32>
      %33 = arith.mulf %23, %32 : vector<16x32xf32>
      %c0_21 = arith.constant 0 : index
      %c0_22 = arith.constant 0 : index
      %34 = vector.load %arg6[%c0_21, %c0_22] : memref<1x32xf32, #tpu.memory_space<vmem>>, vector<1x32xf32>
      %35 = vector.broadcast %34 : vector<1x32xf32> to vector<16x32xf32>
      %36 = arith.mulf %33, %35 : vector<16x32xf32>
      %c0_23 = arith.constant 0 : index
      %c0_24 = arith.constant 0 : index
      %37 = vector.load %arg7[%c0_23, %c0_24] : memref<1x32xf32, #tpu.memory_space<vmem>>, vector<1x32xf32>
      %38 = vector.broadcast %37 : vector<1x32xf32> to vector<16x32xf32>
      %39 = arith.addf %36, %38 : vector<16x32xf32>
      %c0_25 = arith.constant 0 : index
      %c0_26 = arith.constant 0 : index
      %40 = vector.load %arg8[%c0_25, %c0_26] : memref<16x32xf32, #tpu.memory_space<vmem>>, vector<16x32xf32>
      tpu.vector_store %arg8[%c0_25, %c0_26], %39 {strides = array<i32>} : memref<16x32xf32, #tpu.memory_space<vmem>>, vector<16x32xf32>,
    } else {
    }
    return
  }
  func.func @transform_0(%arg0: i32, %arg1: i32) -> (i32, i32) {
    %c0_i32 = arith.constant 0 : i32
    return %arg0, %arg1 : i32, i32
  }
  func.func @transform_1(%arg0: i32, %arg1: i32) -> (i32, i32) {
    %c0_i32 = arith.constant 0 : i32
    %c0_i32_0 = arith.constant 0 : i32
    return %arg1, %c0_i32 : i32, i32
  }
  func.func @transform_2(%arg0: i32, %arg1: i32) -> (i32, i32) {
    %c0_i32 = arith.constant 0 : i32
    %c0_i32_0 = arith.constant 0 : i32
    %c0_i32_1 = arith.constant 0 : i32
    return %c0_i32, %c0_i32_0 : i32, i32
  }
  func.func @transform_3(%arg0: i32, %arg1: i32) -> (i32, i32) {
    %c0_i32 = arith.constant 0 : i32
    %c0_i32_0 = arith.constant 0 : i32
    return %arg0, %c0_i32 : i32, i32
  }
  func.func @transform_4(%arg0: i32, %arg1: i32) -> (i32, i32) {
    %c0_i32 = arith.constant 0 : i32
    %c0_i32_0 = arith.constant 0 : i32
    %c0_i32_1 = arith.constant 0 : i32
    return %c0_i32, %c0_i32_0 : i32, i32
  }
  func.func @transform_5(%arg0: i32, %arg1: i32) -> (i32, i32) {
    %c0_i32 = arith.constant 0 : i32
    %c0_i32_0 = arith.constant 0 : i32
    %c0_i32_1 = arith.constant 0 : i32
    return %c0_i32, %c0_i32_0 : i32, i32
  }
  func.func @transform_6(%arg0: i32, %arg1: i32) -> (i32, i32) {
    %c0_i32 = arith.constant 0 : i32
    %c0_i32_0 = arith.constant 0 : i32
    return %arg0, %c0_i32 : i32, i32
  }
}

module attributes {stable_mosaic.version = 11 : i64} {
  func.func @_scalar_ln_kernel(%arg0: i32, %arg1: memref<2xf32, #tpu.memory_space<smem>>, %arg2: memref<16x32xf32, #tpu.memory_space<vmem>>, %arg3: memref<16x32xf32, #tpu.memory_space<vmem>>) attributes {dimension_semantics = [#tpu.dimension_semantics<parallel>], iteration_bounds = array<i64: 1>, scalar_prefetch = 0 : i64, scratch_operands = 0 : i64, tpu.core_type = #tpu.core_type<tc>, window_params = [{transform_indices = @transform_0, window_bounds = array<i64: 2>}, {transform_indices = @transform_1, window_bounds = array<i64: 16, 32>}, {transform_indices = @transform_2, window_bounds = array<i64: 16, 32>}]} {
    %c0 = arith.constant 0 : index
    %c0_0 = arith.constant 0 : index
    %0 = vector.load %arg2[%c0, %c0_0] : memref<16x32xf32, #tpu.memory_space<vmem>>, vector<16x32xf32>
    %cst = arith.constant dense<0.000000e+00> : vector<16xf32>
    %1 = vector.multi_reduction <add>, %0, %cst [1] : vector<16x32xf32> to vector<16xf32>
    %2 = vector.shape_cast %1 : vector<16xf32> to vector<16x1xf32>
    %cst_1 = arith.constant 3.200000e+01 : f32
    %3 = vector.broadcast %cst_1 : f32 to vector<16x1xf32>
    %4 = arith.divf %2, %3 : vector<16x1xf32>
    %5 = vector.broadcast %4 : vector<16x1xf32> to vector<16x32xf32>
    %6 = arith.subf %0, %5 : vector<16x32xf32>
    %7 = arith.mulf %6, %6 : vector<16x32xf32>
    %cst_2 = arith.constant dense<0.000000e+00> : vector<16xf32>
    %8 = vector.multi_reduction <add>, %7, %cst_2 [1] : vector<16x32xf32> to vector<16xf32>
    %9 = vector.shape_cast %8 : vector<16xf32> to vector<16x1xf32>
    %cst_3 = arith.constant 0.0322580636 : f32
    %10 = vector.broadcast %cst_3 : f32 to vector<16x1xf32>
    %11 = arith.mulf %9, %10 : vector<16x1xf32>
    %12 = math.sqrt %11 : vector<16x1xf32>
    %c0_4 = arith.constant 0 : index
    %13 = memref.load %arg1[%c0_4] : memref<2xf32, #tpu.memory_space<smem>>
    %14 = vector.broadcast %13 : f32 to vector<16x32xf32>
    %15 = arith.mulf %14, %6 : vector<16x32xf32>
    %cst_5 = arith.constant 9.99999997E-7 : f32
    %16 = vector.broadcast %cst_5 : f32 to vector<16x1xf32>
    %17 = arith.addf %12, %16 : vector<16x1xf32>
    %18 = vector.broadcast %17 : vector<16x1xf32> to vector<16x32xf32>
    %19 = arith.divf %15, %18 : vector<16x32xf32>
    %c1 = arith.constant 1 : index
    %20 = memref.load %arg1[%c1] : memref<2xf32, #tpu.memory_space<smem>>
    %21 = vector.broadcast %20 : f32 to vector<16x32xf32>
    %22 = arith.addf %19, %21 : vector<16x32xf32>
    %c0_6 = arith.constant 0 : index
    %c0_7 = arith.constant 0 : index
    %23 = vector.load %arg3[%c0_6, %c0_7] : memref<16x32xf32, #tpu.memory_space<vmem>>, vector<16x32xf32>
    tpu.vector_store %arg3[%c0_6, %c0_7], %22 {strides = array<i32>} : memref<16x32xf32, #tpu.memory_space<vmem>>, vector<16x32xf32>,
    return
  }
  func.func @transform_0(%arg0: i32) -> i32 {
    %c0_i32 = arith.constant 0 : i32
    %c0_i32_0 = arith.constant 0 : i32
    return %c0_i32 : i32
  }
  func.func @transform_1(%arg0: i32) -> (i32, i32) {
    %c0_i32 = arith.constant 0 : i32
    %c0_i32_0 = arith.constant 0 : i32
    return %arg0, %c0_i32 : i32, i32
  }
  func.func @transform_2(%arg0: i32) -> (i32, i32) {
    %c0_i32 = arith.constant 0 : i32
    %c0_i32_0 = arith.constant 0 : i32
    return %arg0, %c0_i32 : i32, i32
  }
}

module attributes {stable_mosaic.version = 11 : i64} {
  func.func @_sumsq_kernel(%arg0: i32, %arg1: memref<16x16xf32, #tpu.memory_space<vmem>>, %arg2: memref<1x1xf32, #tpu.memory_space<vmem>>) attributes {dimension_semantics = [#tpu.dimension_semantics<arbitrary>], iteration_bounds = array<i64: 1>, scalar_prefetch = 0 : i64, scratch_operands = 0 : i64, tpu.core_type = #tpu.core_type<tc>, window_params = [{transform_indices = @transform_0, window_bounds = array<i64: 16, 16>}, {pipeline_mode = #tpu.pipeline_mode<synchronous>, transform_indices = @transform_1, window_bounds = array<i64: 1, 1>}]} {
    %c0_i32 = arith.constant 0 : i32
    %0 = arith.cmpi eq, %arg0, %c0_i32 : i32
    %1 = arith.extui %0 : i1 to i32
    %c0_i32_0 = arith.constant 0 : i32
    %2 = arith.cmpi ne, %1, %c0_i32_0 : i32
    scf.if %2 {
      %cst_6 = arith.constant 0.000000e+00 : f32
      %13 = vector.broadcast %cst_6 : f32 to vector<1x1xf32>
      %c0_7 = arith.constant 0 : index
      %c0_8 = arith.constant 0 : index
      %14 = vector.load %arg2[%c0_7, %c0_8] : memref<1x1xf32, #tpu.memory_space<vmem>>, vector<1x1xf32>
      tpu.vector_store %arg2[%c0_7, %c0_8], %13 {strides = array<i32>} : memref<1x1xf32, #tpu.memory_space<vmem>>, vector<1x1xf32>,
    } else {
    }
    %c0 = arith.constant 0 : index
    %c0_1 = arith.constant 0 : index
    %3 = vector.load %arg1[%c0, %c0_1] : memref<16x16xf32, #tpu.memory_space<vmem>>, vector<16x16xf32>
    %c0_2 = arith.constant 0 : index
    %c0_3 = arith.constant 0 : index
    %4 = vector.load %arg2[%c0_2, %c0_3] : memref<1x1xf32, #tpu.memory_space<vmem>>, vector<1x1xf32>
    %5 = arith.mulf %3, %3 : vector<16x16xf32>
    %6 = vector.shape_cast %5 : vector<16x16xf32> to vector<1x16x16xf32>
    %cst = arith.constant dense<0.000000e+00> : vector<1xf32>
    %7 = vector.multi_reduction <add>, %6, %cst [1, 2] : vector<1x16x16xf32> to vector<1xf32>
    %8 = vector.shape_cast %7 : vector<1xf32> to vector<1x1x1xf32>
    %9 = vector.extract %8[0, 0, 0] : f32 from vector<1x1x1xf32>
    %10 = vector.broadcast %9 : f32 to vector<1x1xf32>
    %11 = arith.addf %4, %10 : vector<1x1xf32>
    %c0_4 = arith.constant 0 : index
    %c0_5 = arith.constant 0 : index
    %12 = vector.load %arg2[%c0_4, %c0_5] : memref<1x1xf32, #tpu.memory_space<vmem>>, vector<1x1xf32>
    tpu.vector_store %arg2[%c0_4, %c0_5], %11 {strides = array<i32>} : memref<1x1xf32, #tpu.memory_space<vmem>>, vector<1x1xf32>,
    return
  }
  func.func @transform_0(%arg0: i32) -> (i32, i32) {
    %c0_i32 = arith.constant 0 : i32
    %c0_i32_0 = arith.constant 0 : i32
    return %arg0, %c0_i32 : i32, i32
  }
  func.func @transform_1(%arg0: i32) -> (i32, i32) {
    %c0_i32 = arith.constant 0 : i32
    %c0_i32_0 = arith.constant 0 : i32
    %c0_i32_1 = arith.constant 0 : i32
    return %c0_i32, %c0_i32_0 : i32, i32
  }
}

module attributes {stable_mosaic.version = 11 : i64} {
  func.func @_linear_kernel(%arg0: i32, %arg1: i32, %arg2: i32, %arg3: memref<16x64xbf16, #tpu.memory_space<vmem>>, %arg4: memref<64x16xbf16, #tpu.memory_space<vmem>>, %arg5: memref<1x16xf32, #tpu.memory_space<vmem>>, %arg6: memref<16x16xf32, #tpu.memory_space<vmem>>, %arg7: memref<16x16xf32, #tpu.memory_space<vmem>>) attributes {dimension_semantics = [#tpu.dimension_semantics<parallel>, #tpu.dimension_semantics<parallel>, #tpu.dimension_semantics<arbitrary>], iteration_bounds = array<i64: 1, 1, 1>, scalar_prefetch = 0 : i64, scratch_operands = 1 : i64, tpu.core_type = #tpu.core_type<tc>, window_params = [{transform_indices = @transform_0, window_bounds = array<i64: 16, 64>}, {transform_indices = @transform_1, window_bounds = array<i64: 64, 16>}, {transform_indices = @transform_2, window_bounds = array<i64: 1, 16>}, {transform_indices = @transform_3, window_bounds = array<i64: 16, 16>}]} {
    %c0_i32 = arith.constant 0 : i32
    %0 = arith.cmpi eq, %arg2, %c0_i32 : i32
    %1 = arith.extui %0 : i1 to i32
    %c0_i32_0 = arith.constant 0 : i32
    %2 = arith.cmpi ne, %1, %c0_i32_0 : i32
    scf.if %2 {
      %cst_10 = arith.constant 0.000000e+00 : f32
      %12 = vector.broadcast %cst_10 : f32 to vector<16x16xf32>
      %c0_11 = arith.constant 0 : index
      %c0_12 = arith.constant 0 : index
      %13 = vector.load %arg7[%c0_11, %c0_12] : memref<16x16xf32, #tpu.memory_space<vmem>>, vector<16x16xf32>
      tpu.vector_store %arg7[%c0_11, %c0_12], %12 {strides = array<i32>} : memref<16x16xf32, #tpu.memory_space<vmem>>, vector<16x16xf32>,
    } else {
    }
    %c0 = arith.constant 0 : index
    %c0_1 = arith.constant 0 : index
    %3 = vector.load %arg3[%c0, %c0_1] : memref<16x64xbf16, #tpu.memory_space<vmem>>, vector<16x64xbf16>
    %c0_2 = arith.constant 0 : index
    %c0_3 = arith.constant 0 : index
    %4 = vector.load %arg7[%c0_2, %c0_3] : memref<16x16xf32, #tpu.memory_space<vmem>>, vector<16x16xf32>
    %c0_4 = arith.constant 0 : index
    %c0_5 = arith.constant 0 : index
    %5 = vector.load %arg4[%c0_4, %c0_5] : memref<64x16xbf16, #tpu.memory_space<vmem>>, vector<64x16xbf16>
    %cst = arith.constant dense<0.000000e+00> : vector<16x16xf32>
    %6 = tpu.matmul %3, %5, %cst {dimension_numbers = #tpu.dot_dimension_numbers<[1], [0], [0], [1], [0, 0, 1, 1], [], []>} : vector<16x64xbf16>, vector<64x16xbf16>, vector<16x16xf32> -> vector<16x16xf32>
    %7 = arith.addf %4, %6 : vector<16x16xf32>
    %c0_6 = arith.constant 0 : index
    %c0_7 = arith.constant 0 : index
    %8 = vector.load %arg7[%c0_6, %c0_7] : memref<16x16xf32, #tpu.memory_space<vmem>>, vector<16x16xf32>
    tpu.vector_store %arg7[%c0_6, %c0_7], %7 {strides = array<i32>} : memref<16x16xf32, #tpu.memory_space<vmem>>, vector<16x16xf32>,
    %c0_i32_8 = arith.constant 0 : i32
    %9 = arith.cmpi eq, %arg2, %c0_i32_8 : i32
    %10 = arith.extui %9 : i1 to i32
    %c0_i32_9 = arith.constant 0 : i32
    %11 = arith.cmpi ne, %10, %c0_i32_9 : i32
    scf.if %11 {
      %c0_10 = arith.constant 0 : index
      %c0_11 = arith.constant 0 : index
      %12 = vector.load %arg7[%c0_10, %c0_11] : memref<16x16xf32, #tpu.memory_space<vmem>>, vector<16x16xf32>
      %c0_12 = arith.constant 0 : index
      %c0_13 = arith.constant 0 : index
      %13 = vector.load %arg5[%c0_12, %c0_13] : memref<1x16xf32, #tpu.memory_space<vmem>>, vector<1x16xf32>
      %14 = vector.broadcast %13 : vector<1x16xf32> to vector<16x16xf32>
      %15 = arith.addf %12, %14 : vector<16x16xf32>
      %c0_14 = arith.constant 0 : index
      %c0_15 = arith.constant 0 : index
      %16 = vector.load %arg6[%c0_14, %c0_15] : memref<16x16xf32, #tpu.memory_space<vmem>>, vector<16x16xf32>
      tpu.vector_store %arg6[%c0_14, %c0_15], %15 {strides = array<i32>} : memref<16x16xf32, #tpu.memory_space<vmem>>, vector<16x16xf32>,
    } else {
    }
    return
  }
  func.func @transform_0(%arg0: i32, %arg1: i32, %arg2: i32) -> (i32, i32) {
    %c0_i32 = arith.constant 0 : i32
    return %arg0, %arg2 : i32, i32
  }
  func.func @transform_1(%arg0: i32, %arg1: i32, %arg2: i32) -> (i32, i32) {
    %c0_i32 = arith.constant 0 : i32
    return %arg2, %arg1 : i32, i32
  }
  func.func @transform_2(%arg0: i32, %arg1: i32, %arg2: i32) -> (i32, i32) {
    %c0_i32 = arith.constant 0 : i32
    %c0_i32_0 = arith.constant 0 : i32
    return %c0_i32, %arg1 : i32, i32
  }
  func.func @transform_3(%arg0: i32, %arg1: i32, %arg2: i32) -> (i32, i32) {
    %c0_i32 = arith.constant 0 : i32
    return %arg0, %arg1 : i32, i32
  }
}

module attributes {stable_mosaic.version = 11 : i64} {
  func.func @_scale_noise_kernel(%arg0: i32, %arg1: memref<1xf32, #tpu.memory_space<smem>>, %arg2: memref<16x16xf32, #tpu.memory_space<vmem>>, %arg3: memref<16x16xf32, #tpu.memory_space<vmem>>, %arg4: memref<16x16xf32, #tpu.memory_space<vmem>>) attributes {dimension_semantics = [#tpu.dimension_semantics<parallel>], iteration_bounds = array<i64: 1>, scalar_prefetch = 0 : i64, scratch_operands = 0 : i64, tpu.core_type = #tpu.core_type<tc>, window_params = [{transform_indices = @transform_0, window_bounds = array<i64: 1>}, {transform_indices = @transform_1, window_bounds = array<i64: 16, 16>}, {transform_indices = @transform_2, window_bounds = array<i64: 16, 16>}, {transform_indices = @transform_3, window_bounds = array<i64: 16, 16>}]} {
    %c0 = arith.constant 0 : index
    %c0_0 = arith.constant 0 : index
    %0 = vector.load %arg2[%c0, %c0_0] : memref<16x16xf32, #tpu.memory_space<vmem>>, vector<16x16xf32>
    %c0_1 = arith.constant 0 : index
    %1 = memref.load %arg1[%c0_1] : memref<1xf32, #tpu.memory_space<smem>>
    %2 = vector.broadcast %1 : f32 to vector<16x16xf32>
    %3 = arith.mulf %0, %2 : vector<16x16xf32>
    %c0_2 = arith.constant 0 : index
    %c0_3 = arith.constant 0 : index
    %4 = vector.load %arg3[%c0_2, %c0_3] : memref<16x16xf32, #tpu.memory_space<vmem>>, vector<16x16xf32>
    %cst = arith.constant 1.000000e-01 : f32
    %5 = vector.broadcast %cst : f32 to vector<16x16xf32>
    %6 = arith.mulf %5, %4 : vector<16x16xf32>
    %7 = arith.addf %3, %6 : vector<16x16xf32>
    %c0_4 = arith.constant 0 : index
    %c0_5 = arith.constant 0 : index
    %8 = vector.load %arg4[%c0_4, %c0_5] : memref<16x16xf32, #tpu.memory_space<vmem>>, vector<16x16xf32>
    tpu.vector_store %arg4[%c0_4, %c0_5], %7 {strides = array<i32>} : memref<16x16xf32, #tpu.memory_space<vmem>>, vector<16x16xf32>,
    return
  }
  func.func @transform_0(%arg0: i32) -> i32 {
    %c0_i32 = arith.constant 0 : i32
    %c0_i32_0 = arith.constant 0 : i32
    return %c0_i32 : i32
  }
  func.func @transform_1(%arg0: i32) -> (i32, i32) {
    %c0_i32 = arith.constant 0 : i32
    %c0_i32_0 = arith.constant 0 : i32
    return %arg0, %c0_i32 : i32, i32
  }
  func.func @transform_2(%arg0: i32) -> (i32, i32) {
    %c0_i32 = arith.constant 0 : i32
    %c0_i32_0 = arith.constant 0 : i32
    return %arg0, %c0_i32 : i32, i32
  }
  func.func @transform_3(%arg0: i32) -> (i32, i32) {
    %c0_i32 = arith.constant 0 : i32
    %c0_i32_0 = arith.constant 0 : i32
    return %arg0, %c0_i32 : i32, i32
  }
}

module attributes {stable_mosaic.version = 11 : i64} {
  func.func @_linear_kernel(%arg0: i32, %arg1: i32, %arg2: i32, %arg3: memref<16x32xf32, #tpu.memory_space<vmem>>, %arg4: memref<32x64xbf16, #tpu.memory_space<vmem>>, %arg5: memref<1x64xf32, #tpu.memory_space<vmem>>, %arg6: memref<16x64xbf16, #tpu.memory_space<vmem>>, %arg7: memref<16x64xf32, #tpu.memory_space<vmem>>) attributes {dimension_semantics = [#tpu.dimension_semantics<parallel>, #tpu.dimension_semantics<parallel>, #tpu.dimension_semantics<arbitrary>], iteration_bounds = array<i64: 1, 1, 1>, scalar_prefetch = 0 : i64, scratch_operands = 1 : i64, tpu.core_type = #tpu.core_type<tc>, window_params = [{transform_indices = @transform_0, window_bounds = array<i64: 16, 32>}, {transform_indices = @transform_1, window_bounds = array<i64: 32, 64>}, {transform_indices = @transform_2, window_bounds = array<i64: 1, 64>}, {transform_indices = @transform_3, window_bounds = array<i64: 16, 64>}]} {
    %c0_i32 = arith.constant 0 : i32
    %0 = arith.cmpi eq, %arg2, %c0_i32 : i32
    %1 = arith.extui %0 : i1 to i32
    %c0_i32_0 = arith.constant 0 : i32
    %2 = arith.cmpi ne, %1, %c0_i32_0 : i32
    scf.if %2 {
      %cst_11 = arith.constant 0.000000e+00 : f32
      %15 = vector.broadcast %cst_11 : f32 to vector<16x64xf32>
      %c0_12 = arith.constant 0 : index
      %c0_13 = arith.constant 0 : index
      %16 = vector.load %arg7[%c0_12, %c0_13] : memref<16x64xf32, #tpu.memory_space<vmem>>, vector<16x64xf32>
      tpu.vector_store %arg7[%c0_12, %c0_13], %15 {strides = array<i32>} : memref<16x64xf32, #tpu.memory_space<vmem>>, vector<16x64xf32>,
    } else {
    }
    %c0 = arith.constant 0 : index
    %c0_1 = arith.constant 0 : index
    %3 = vector.load %arg3[%c0, %c0_1] : memref<16x32xf32, #tpu.memory_space<vmem>>, vector<16x32xf32>
    %cst = arith.constant 0.000000e+00 : f32
    %4 = vector.broadcast %cst : f32 to vector<16x32xf32>
    %5 = arith.maximumf %3, %4 : vector<16x32xf32>
    %c0_2 = arith.constant 0 : index
    %c0_3 = arith.constant 0 : index
    %6 = vector.load %arg7[%c0_2, %c0_3] : memref<16x64xf32, #tpu.memory_space<vmem>>, vector<16x64xf32>
    %7 = arith.truncf %5 : vector<16x32xf32> to vector<16x32xbf16>
    %c0_4 = arith.constant 0 : index
    %c0_5 = arith.constant 0 : index
    %8 = vector.load %arg4[%c0_4, %c0_5] : memref<32x64xbf16, #tpu.memory_space<vmem>>, vector<32x64xbf16>
    %cst_6 = arith.constant dense<0.000000e+00> : vector<16x64xf32>
    %9 = tpu.matmul %7, %8, %cst_6 {dimension_numbers = #tpu.dot_dimension_numbers<[1], [0], [0], [1], [0, 0, 1, 1], [], []>} : vector<16x32xbf16>, vector<32x64xbf16>, vector<16x64xf32> -> vector<16x64xf32>
    %10 = arith.addf %6, %9 : vector<16x64xf32>
    %c0_7 = arith.constant 0 : index
    %c0_8 = arith.constant 0 : index
    %11 = vector.load %arg7[%c0_7, %c0_8] : memref<16x64xf32, #tpu.memory_space<vmem>>, vector<16x64xf32>
    tpu.vector_store %arg7[%c0_7, %c0_8], %10 {strides = array<i32>} : memref<16x64xf32, #tpu.memory_space<vmem>>, vector<16x64xf32>,
    %c0_i32_9 = arith.constant 0 : i32
    %12 = arith.cmpi eq, %arg2, %c0_i32_9 : i32
    %13 = arith.extui %12 : i1 to i32
    %c0_i32_10 = arith.constant 0 : i32
    %14 = arith.cmpi ne, %13, %c0_i32_10 : i32
    scf.if %14 {
      %c0_11 = arith.constant 0 : index
      %c0_12 = arith.constant 0 : index
      %15 = vector.load %arg7[%c0_11, %c0_12] : memref<16x64xf32, #tpu.memory_space<vmem>>, vector<16x64xf32>
      %c0_13 = arith.constant 0 : index
      %c0_14 = arith.constant 0 : index
      %16 = vector.load %arg5[%c0_13, %c0_14] : memref<1x64xf32, #tpu.memory_space<vmem>>, vector<1x64xf32>
      %17 = vector.broadcast %16 : vector<1x64xf32> to vector<16x64xf32>
      %18 = arith.addf %15, %17 : vector<16x64xf32>
      %cst_15 = arith.constant 0.000000e+00 : f32
      %19 = vector.broadcast %cst_15 : f32 to vector<16x64xf32>
      %20 = arith.maximumf %18, %19 : vector<16x64xf32>
      %21 = arith.truncf %20 : vector<16x64xf32> to vector<16x64xbf16>
      %c0_16 = arith.constant 0 : index
      %c0_17 = arith.constant 0 : index
      %22 = vector.load %arg6[%c0_16, %c0_17] : memref<16x64xbf16, #tpu.memory_space<vmem>>, vector<16x64xbf16>
      tpu.vector_store %arg6[%c0_16, %c0_17], %21 {strides = array<i32>} : memref<16x64xbf16, #tpu.memory_space<vmem>>, vector<16x64xbf16>,
    } else {
    }
    return
  }
  func.func @transform_0(%arg0: i32, %arg1: i32, %arg2: i32) -> (i32, i32) {
    %c0_i32 = arith.constant 0 : i32
    return %arg0, %arg2 : i32, i32
  }
  func.func @transform_1(%arg0: i32, %arg1: i32, %arg2: i32) -> (i32, i32) {
    %c0_i32 = arith.constant 0 : i32
    return %arg2, %arg1 : i32, i32
  }
  func.func @transform_2(%arg0: i32, %arg1: i32, %arg2: i32) -> (i32, i32) {
    %c0_i32 = arith.constant 0 : i32
    %c0_i32_0 = arith.constant 0 : i32
    return %c0_i32, %arg1 : i32, i32
  }
  func.func @transform_3(%arg0: i32, %arg1: i32, %arg2: i32) -> (i32, i32) {
    %c0_i32 = arith.constant 0 : i32
    return %arg0, %arg1 : i32, i32
  }
}

module attributes {stable_mosaic.version = 11 : i64} {
  func.func @_linear_kernel(%arg0: i32, %arg1: i32, %arg2: i32, %arg3: memref<16x16xf32, #tpu.memory_space<vmem>>, %arg4: memref<16x32xbf16, #tpu.memory_space<vmem>>, %arg5: memref<1x32xf32, #tpu.memory_space<vmem>>, %arg6: memref<16x32xf32, #tpu.memory_space<vmem>>, %arg7: memref<16x32xf32, #tpu.memory_space<vmem>>) attributes {dimension_semantics = [#tpu.dimension_semantics<parallel>, #tpu.dimension_semantics<parallel>, #tpu.dimension_semantics<arbitrary>], iteration_bounds = array<i64: 1, 1, 1>, scalar_prefetch = 0 : i64, scratch_operands = 1 : i64, tpu.core_type = #tpu.core_type<tc>, window_params = [{transform_indices = @transform_0, window_bounds = array<i64: 16, 16>}, {transform_indices = @transform_1, window_bounds = array<i64: 16, 32>}, {transform_indices = @transform_2, window_bounds = array<i64: 1, 32>}, {transform_indices = @transform_3, window_bounds = array<i64: 16, 32>}]} {
    %c0_i32 = arith.constant 0 : i32
    %0 = arith.cmpi eq, %arg2, %c0_i32 : i32
    %1 = arith.extui %0 : i1 to i32
    %c0_i32_0 = arith.constant 0 : i32
    %2 = arith.cmpi ne, %1, %c0_i32_0 : i32
    scf.if %2 {
      %cst_10 = arith.constant 0.000000e+00 : f32
      %13 = vector.broadcast %cst_10 : f32 to vector<16x32xf32>
      %c0_11 = arith.constant 0 : index
      %c0_12 = arith.constant 0 : index
      %14 = vector.load %arg7[%c0_11, %c0_12] : memref<16x32xf32, #tpu.memory_space<vmem>>, vector<16x32xf32>
      tpu.vector_store %arg7[%c0_11, %c0_12], %13 {strides = array<i32>} : memref<16x32xf32, #tpu.memory_space<vmem>>, vector<16x32xf32>,
    } else {
    }
    %c0 = arith.constant 0 : index
    %c0_1 = arith.constant 0 : index
    %3 = vector.load %arg3[%c0, %c0_1] : memref<16x16xf32, #tpu.memory_space<vmem>>, vector<16x16xf32>
    %c0_2 = arith.constant 0 : index
    %c0_3 = arith.constant 0 : index
    %4 = vector.load %arg7[%c0_2, %c0_3] : memref<16x32xf32, #tpu.memory_space<vmem>>, vector<16x32xf32>
    %5 = arith.truncf %3 : vector<16x16xf32> to vector<16x16xbf16>
    %c0_4 = arith.constant 0 : index
    %c0_5 = arith.constant 0 : index
    %6 = vector.load %arg4[%c0_4, %c0_5] : memref<16x32xbf16, #tpu.memory_space<vmem>>, vector<16x32xbf16>
    %cst = arith.constant dense<0.000000e+00> : vector<16x32xf32>
    %7 = tpu.matmul %5, %6, %cst {dimension_numbers = #tpu.dot_dimension_numbers<[1], [0], [0], [1], [0, 0, 1, 1], [], []>} : vector<16x16xbf16>, vector<16x32xbf16>, vector<16x32xf32> -> vector<16x32xf32>
    %8 = arith.addf %4, %7 : vector<16x32xf32>
    %c0_6 = arith.constant 0 : index
    %c0_7 = arith.constant 0 : index
    %9 = vector.load %arg7[%c0_6, %c0_7] : memref<16x32xf32, #tpu.memory_space<vmem>>, vector<16x32xf32>
    tpu.vector_store %arg7[%c0_6, %c0_7], %8 {strides = array<i32>} : memref<16x32xf32, #tpu.memory_space<vmem>>, vector<16x32xf32>,
    %c0_i32_8 = arith.constant 0 : i32
    %10 = arith.cmpi eq, %arg2, %c0_i32_8 : i32
    %11 = arith.extui %10 : i1 to i32
    %c0_i32_9 = arith.constant 0 : i32
    %12 = arith.cmpi ne, %11, %c0_i32_9 : i32
    scf.if %12 {
      %c0_10 = arith.constant 0 : index
      %c0_11 = arith.constant 0 : index
      %13 = vector.load %arg7[%c0_10, %c0_11] : memref<16x32xf32, #tpu.memory_space<vmem>>, vector<16x32xf32>
      %c0_12 = arith.constant 0 : index
      %c0_13 = arith.constant 0 : index
      %14 = vector.load %arg5[%c0_12, %c0_13] : memref<1x32xf32, #tpu.memory_space<vmem>>, vector<1x32xf32>
      %15 = vector.broadcast %14 : vector<1x32xf32> to vector<16x32xf32>
      %16 = arith.addf %13, %15 : vector<16x32xf32>
      %c0_14 = arith.constant 0 : index
      %c0_15 = arith.constant 0 : index
      %17 = vector.load %arg6[%c0_14, %c0_15] : memref<16x32xf32, #tpu.memory_space<vmem>>, vector<16x32xf32>
      tpu.vector_store %arg6[%c0_14, %c0_15], %16 {strides = array<i32>} : memref<16x32xf32, #tpu.memory_space<vmem>>, vector<16x32xf32>,
    } else {
    }
    return
  }
  func.func @transform_0(%arg0: i32, %arg1: i32, %arg2: i32) -> (i32, i32) {
    %c0_i32 = arith.constant 0 : i32
    return %arg0, %arg2 : i32, i32
  }
  func.func @transform_1(%arg0: i32, %arg1: i32, %arg2: i32) -> (i32, i32) {
    %c0_i32 = arith.constant 0 : i32
    return %arg2, %arg1 : i32, i32
  }
  func.func @transform_2(%arg0: i32, %arg1: i32, %arg2: i32) -> (i32, i32) {
    %c0_i32 = arith.constant 0 : i32
    %c0_i32_0 = arith.constant 0 : i32
    return %c0_i32, %arg1 : i32, i32
  }
  func.func @transform_3(%arg0: i32, %arg1: i32, %arg2: i32) -> (i32, i32) {
    %c0_i32 = arith.constant 0 : i32
    return %arg0, %arg1 : i32, i32
  }
}

module attributes {stable_mosaic.version = 11 : i64} {
  func.func @_linear_kernel(%arg0: i32, %arg1: i32, %arg2: i32, %arg3: memref<16x32xf32, #tpu.memory_space<vmem>>, %arg4: memref<32x64xbf16, #tpu.memory_space<vmem>>, %arg5: memref<1x64xf32, #tpu.memory_space<vmem>>, %arg6: memref<16x64xbf16, #tpu.memory_space<vmem>>, %arg7: memref<16x64xf32, #tpu.memory_space<vmem>>) attributes {dimension_semantics = [#tpu.dimension_semantics<parallel>, #tpu.dimension_semantics<parallel>, #tpu.dimension_semantics<arbitrary>], iteration_bounds = array<i64: 1, 1, 1>, scalar_prefetch = 0 : i64, scratch_operands = 1 : i64, tpu.core_type = #tpu.core_type<tc>, window_params = [{transform_indices = @transform_0, window_bounds = array<i64: 16, 32>}, {transform_indices = @transform_1, window_bounds = array<i64: 32, 64>}, {transform_indices = @transform_2, window_bounds = array<i64: 1, 64>}, {transform_indices = @transform_3, window_bounds = array<i64: 16, 64>}]} {
    %c0_i32 = arith.constant 0 : i32
    %0 = arith.cmpi eq, %arg2, %c0_i32 : i32
    %1 = arith.extui %0 : i1 to i32
    %c0_i32_0 = arith.constant 0 : i32
    %2 = arith.cmpi ne, %1, %c0_i32_0 : i32
    scf.if %2 {
      %cst_10 = arith.constant 0.000000e+00 : f32
      %13 = vector.broadcast %cst_10 : f32 to vector<16x64xf32>
      %c0_11 = arith.constant 0 : index
      %c0_12 = arith.constant 0 : index
      %14 = vector.load %arg7[%c0_11, %c0_12] : memref<16x64xf32, #tpu.memory_space<vmem>>, vector<16x64xf32>
      tpu.vector_store %arg7[%c0_11, %c0_12], %13 {strides = array<i32>} : memref<16x64xf32, #tpu.memory_space<vmem>>, vector<16x64xf32>,
    } else {
    }
    %c0 = arith.constant 0 : index
    %c0_1 = arith.constant 0 : index
    %3 = vector.load %arg3[%c0, %c0_1] : memref<16x32xf32, #tpu.memory_space<vmem>>, vector<16x32xf32>
    %c0_2 = arith.constant 0 : index
    %c0_3 = arith.constant 0 : index
    %4 = vector.load %arg7[%c0_2, %c0_3] : memref<16x64xf32, #tpu.memory_space<vmem>>, vector<16x64xf32>
    %5 = arith.truncf %3 : vector<16x32xf32> to vector<16x32xbf16>
    %c0_4 = arith.constant 0 : index
    %c0_5 = arith.constant 0 : index
    %6 = vector.load %arg4[%c0_4, %c0_5] : memref<32x64xbf16, #tpu.memory_space<vmem>>, vector<32x64xbf16>
    %cst = arith.constant dense<0.000000e+00> : vector<16x64xf32>
    %7 = tpu.matmul %5, %6, %cst {dimension_numbers = #tpu.dot_dimension_numbers<[1], [0], [0], [1], [0, 0, 1, 1], [], []>} : vector<16x32xbf16>, vector<32x64xbf16>, vector<16x64xf32> -> vector<16x64xf32>
    %8 = arith.addf %4, %7 : vector<16x64xf32>
    %c0_6 = arith.constant 0 : index
    %c0_7 = arith.constant 0 : index
    %9 = vector.load %arg7[%c0_6, %c0_7] : memref<16x64xf32, #tpu.memory_space<vmem>>, vector<16x64xf32>
    tpu.vector_store %arg7[%c0_6, %c0_7], %8 {strides = array<i32>} : memref<16x64xf32, #tpu.memory_space<vmem>>, vector<16x64xf32>,
    %c0_i32_8 = arith.constant 0 : i32
    %10 = arith.cmpi eq, %arg2, %c0_i32_8 : i32
    %11 = arith.extui %10 : i1 to i32
    %c0_i32_9 = arith.constant 0 : i32
    %12 = arith.cmpi ne, %11, %c0_i32_9 : i32
    scf.if %12 {
      %c0_10 = arith.constant 0 : index
      %c0_11 = arith.constant 0 : index
      %13 = vector.load %arg7[%c0_10, %c0_11] : memref<16x64xf32, #tpu.memory_space<vmem>>, vector<16x64xf32>
      %c0_12 = arith.constant 0 : index
      %c0_13 = arith.constant 0 : index
      %14 = vector.load %arg5[%c0_12, %c0_13] : memref<1x64xf32, #tpu.memory_space<vmem>>, vector<1x64xf32>
      %15 = vector.broadcast %14 : vector<1x64xf32> to vector<16x64xf32>
      %16 = arith.addf %13, %15 : vector<16x64xf32>
      %17 = arith.truncf %16 : vector<16x64xf32> to vector<16x64xbf16>
      %c0_14 = arith.constant 0 : index
      %c0_15 = arith.constant 0 : index
      %18 = vector.load %arg6[%c0_14, %c0_15] : memref<16x64xbf16, #tpu.memory_space<vmem>>, vector<16x64xbf16>
      tpu.vector_store %arg6[%c0_14, %c0_15], %17 {strides = array<i32>} : memref<16x64xbf16, #tpu.memory_space<vmem>>, vector<16x64xbf16>,
    } else {
    }
    return
  }
  func.func @transform_0(%arg0: i32, %arg1: i32, %arg2: i32) -> (i32, i32) {
    %c0_i32 = arith.constant 0 : i32
    return %arg0, %arg2 : i32, i32
  }
  func.func @transform_1(%arg0: i32, %arg1: i32, %arg2: i32) -> (i32, i32) {
    %c0_i32 = arith.constant 0 : i32
    return %arg2, %arg1 : i32, i32
  }
  func.func @transform_2(%arg0: i32, %arg1: i32, %arg2: i32) -> (i32, i32) {
    %c0_i32 = arith.constant 0 : i32
    %c0_i32_0 = arith.constant 0 : i32
    return %c0_i32, %arg1 : i32, i32
  }
  func.func @transform_3(%arg0: i32, %arg1: i32, %arg2: i32) -> (i32, i32) {
    %c0_i32 = arith.constant 0 : i32
    return %arg0, %arg1 : i32, i32
  }
}

module attributes {stable_mosaic.version = 11 : i64} {
  func.func @_linear_kernel(%arg0: i32, %arg1: i32, %arg2: i32, %arg3: memref<16x32xf32, #tpu.memory_space<vmem>>, %arg4: memref<32x32xbf16, #tpu.memory_space<vmem>>, %arg5: memref<1x32xf32, #tpu.memory_space<vmem>>, %arg6: memref<16x32xbf16, #tpu.memory_space<vmem>>, %arg7: memref<16x32xf32, #tpu.memory_space<vmem>>) attributes {dimension_semantics = [#tpu.dimension_semantics<parallel>, #tpu.dimension_semantics<parallel>, #tpu.dimension_semantics<arbitrary>], iteration_bounds = array<i64: 1, 1, 1>, scalar_prefetch = 0 : i64, scratch_operands = 1 : i64, tpu.core_type = #tpu.core_type<tc>, window_params = [{transform_indices = @transform_0, window_bounds = array<i64: 16, 32>}, {transform_indices = @transform_1, window_bounds = array<i64: 32, 32>}, {transform_indices = @transform_2, window_bounds = array<i64: 1, 32>}, {transform_indices = @transform_3, window_bounds = array<i64: 16, 32>}]} {
    %c0_i32 = arith.constant 0 : i32
    %0 = arith.cmpi eq, %arg2, %c0_i32 : i32
    %1 = arith.extui %0 : i1 to i32
    %c0_i32_0 = arith.constant 0 : i32
    %2 = arith.cmpi ne, %1, %c0_i32_0 : i32
    scf.if %2 {
      %cst_10 = arith.constant 0.000000e+00 : f32
      %13 = vector.broadcast %cst_10 : f32 to vector<16x32xf32>
      %c0_11 = arith.constant 0 : index
      %c0_12 = arith.constant 0 : index
      %14 = vector.load %arg7[%c0_11, %c0_12] : memref<16x32xf32, #tpu.memory_space<vmem>>, vector<16x32xf32>
      tpu.vector_store %arg7[%c0_11, %c0_12], %13 {strides = array<i32>} : memref<16x32xf32, #tpu.memory_space<vmem>>, vector<16x32xf32>,
    } else {
    }
    %c0 = arith.constant 0 : index
    %c0_1 = arith.constant 0 : index
    %3 = vector.load %arg3[%c0, %c0_1] : memref<16x32xf32, #tpu.memory_space<vmem>>, vector<16x32xf32>
    %c0_2 = arith.constant 0 : index
    %c0_3 = arith.constant 0 : index
    %4 = vector.load %arg7[%c0_2, %c0_3] : memref<16x32xf32, #tpu.memory_space<vmem>>, vector<16x32xf32>
    %5 = arith.truncf %3 : vector<16x32xf32> to vector<16x32xbf16>
    %c0_4 = arith.constant 0 : index
    %c0_5 = arith.constant 0 : index
    %6 = vector.load %arg4[%c0_4, %c0_5] : memref<32x32xbf16, #tpu.memory_space<vmem>>, vector<32x32xbf16>
    %cst = arith.constant dense<0.000000e+00> : vector<16x32xf32>
    %7 = tpu.matmul %5, %6, %cst {dimension_numbers = #tpu.dot_dimension_numbers<[1], [0], [0], [1], [0, 0, 1, 1], [], []>} : vector<16x32xbf16>, vector<32x32xbf16>, vector<16x32xf32> -> vector<16x32xf32>
    %8 = arith.addf %4, %7 : vector<16x32xf32>
    %c0_6 = arith.constant 0 : index
    %c0_7 = arith.constant 0 : index
    %9 = vector.load %arg7[%c0_6, %c0_7] : memref<16x32xf32, #tpu.memory_space<vmem>>, vector<16x32xf32>
    tpu.vector_store %arg7[%c0_6, %c0_7], %8 {strides = array<i32>} : memref<16x32xf32, #tpu.memory_space<vmem>>, vector<16x32xf32>,
    %c0_i32_8 = arith.constant 0 : i32
    %10 = arith.cmpi eq, %arg2, %c0_i32_8 : i32
    %11 = arith.extui %10 : i1 to i32
    %c0_i32_9 = arith.constant 0 : i32
    %12 = arith.cmpi ne, %11, %c0_i32_9 : i32
    scf.if %12 {
      %c0_10 = arith.constant 0 : index
      %c0_11 = arith.constant 0 : index
      %13 = vector.load %arg7[%c0_10, %c0_11] : memref<16x32xf32, #tpu.memory_space<vmem>>, vector<16x32xf32>
      %c0_12 = arith.constant 0 : index
      %c0_13 = arith.constant 0 : index
      %14 = vector.load %arg5[%c0_12, %c0_13] : memref<1x32xf32, #tpu.memory_space<vmem>>, vector<1x32xf32>
      %15 = vector.broadcast %14 : vector<1x32xf32> to vector<16x32xf32>
      %16 = arith.addf %13, %15 : vector<16x32xf32>
      %17 = arith.truncf %16 : vector<16x32xf32> to vector<16x32xbf16>
      %c0_14 = arith.constant 0 : index
      %c0_15 = arith.constant 0 : index
      %18 = vector.load %arg6[%c0_14, %c0_15] : memref<16x32xbf16, #tpu.memory_space<vmem>>, vector<16x32xbf16>
      tpu.vector_store %arg6[%c0_14, %c0_15], %17 {strides = array<i32>} : memref<16x32xbf16, #tpu.memory_space<vmem>>, vector<16x32xbf16>,
    } else {
    }
    return
  }
  func.func @transform_0(%arg0: i32, %arg1: i32, %arg2: i32) -> (i32, i32) {
    %c0_i32 = arith.constant 0 : i32
    return %arg0, %arg2 : i32, i32
  }
  func.func @transform_1(%arg0: i32, %arg1: i32, %arg2: i32) -> (i32, i32) {
    %c0_i32 = arith.constant 0 : i32
    return %arg2, %arg1 : i32, i32
  }
  func.func @transform_2(%arg0: i32, %arg1: i32, %arg2: i32) -> (i32, i32) {
    %c0_i32 = arith.constant 0 : i32
    %c0_i32_0 = arith.constant 0 : i32
    return %c0_i32, %arg1 : i32, i32
  }
  func.func @transform_3(%arg0: i32, %arg1: i32, %arg2: i32) -> (i32, i32) {
    %c0_i32 = arith.constant 0 : i32
    return %arg0, %arg1 : i32, i32
  }
}

module attributes {stable_mosaic.version = 11 : i64} {
  func.func @_cross_attn_kernel(%arg0: i32, %arg1: i32, %arg2: memref<1x8x32xbf16, #tpu.memory_space<vmem>>, %arg3: memref<1x8x64xbf16, #tpu.memory_space<vmem>>, %arg4: memref<1x8x8xf32, #tpu.memory_space<vmem>>, %arg5: memref<1x8x32xbf16, #tpu.memory_space<vmem>>) attributes {dimension_semantics = [#tpu.dimension_semantics<parallel>, #tpu.dimension_semantics<parallel>], iteration_bounds = array<i64: 2, 1>, scalar_prefetch = 0 : i64, scratch_operands = 0 : i64, tpu.core_type = #tpu.core_type<tc>, window_params = [{transform_indices = @transform_0, window_bounds = array<i64: 1, 8, 32>}, {transform_indices = @transform_1, window_bounds = array<i64: 1, 8, 64>}, {transform_indices = @transform_2, window_bounds = array<i64: 1, 8, 8>}, {transform_indices = @transform_3, window_bounds = array<i64: 1, 8, 32>}]} {
    %c0 = arith.constant 0 : index
    %c0_0 = arith.constant 0 : index
    %c0_1 = arith.constant 0 : index
    %0 = vector.load %arg2[%c0, %c0_0, %c0_1] : memref<1x8x32xbf16, #tpu.memory_space<vmem>>, vector<1x8x32xbf16>
    %1 = vector.shape_cast %0 : vector<1x8x32xbf16> to vector<8x32xbf16>
    %c0_2 = arith.constant 0 : index
    %c0_3 = arith.constant 0 : index
    %c0_4 = arith.constant 0 : index
    %2 = vector.load %arg3[%c0_2, %c0_3, %c0_4] : memref<1x8x64xbf16, #tpu.memory_space<vmem>>, vector<1x8x64xbf16>
    %3 = vector.shape_cast %2 : vector<1x8x64xbf16> to vector<8x64xbf16>
    %c0_5 = arith.constant 0 : index
    %c0_6 = arith.constant 0 : index
    %c0_7 = arith.constant 0 : index
    %4 = vector.load %arg4[%c0_5, %c0_6, %c0_7] : memref<1x8x8xf32, #tpu.memory_space<vmem>>, vector<1x8x8xf32>
    %5 = vector.shape_cast %4 : vector<1x8x8xf32> to vector<8x8xf32>
    %6 = vector.extract_strided_slice %1 {offsets = [0, 0], sizes = [8, 8], strides = [1, 1]} : vector<8x32xbf16> to vector<8x8xbf16>
    %7 = vector.extract_strided_slice %3 {offsets = [0, 0], sizes = [8, 8], strides = [1, 1]} : vector<8x64xbf16> to vector<8x8xbf16>
    %8 = vector.extract_strided_slice %3 {offsets = [0, 32], sizes = [8, 8], strides = [1, 1]} : vector<8x64xbf16> to vector<8x8xbf16>
    %cst = arith.constant dense<0.000000e+00> : vector<8x8xf32>
    %9 = tpu.matmul %6, %7, %cst {dimension_numbers = #tpu.dot_dimension_numbers<[1], [1], [0], [0], [0, 0, 1, 0], [], []>} : vector<8x8xbf16>, vector<8x8xbf16>, vector<8x8xf32> -> vector<8x8xf32>
    %cst_8 = arith.constant 0.353553385 : f32
    %10 = vector.broadcast %cst_8 : f32 to vector<8x8xf32>
    %11 = arith.mulf %9, %10 : vector<8x8xf32>
    %12 = arith.addf %11, %5 : vector<8x8xf32>
    %cst_9 = arith.constant dense<0xFF800000> : vector<8xf32>
    %13 = vector.multi_reduction <maximumf>, %12, %cst_9 [1] : vector<8x8xf32> to vector<8xf32>
    %14 = vector.shape_cast %13 : vector<8xf32> to vector<8x1xf32>
    %15 = vector.broadcast %14 : vector<8x1xf32> to vector<8x8xf32>
    %16 = arith.subf %12, %15 : vector<8x8xf32>
    %17 = math.exp %16 : vector<8x8xf32>
    %cst_10 = arith.constant dense<0.000000e+00> : vector<8xf32>
    %18 = vector.multi_reduction <add>, %17, %cst_10 [1] : vector<8x8xf32> to vector<8xf32>
    %19 = vector.shape_cast %18 : vector<8xf32> to vector<8x1xf32>
    %20 = tpu.reciprocal %19 {approx = true} : vector<8x1xf32> -> vector<8x1xf32>
    %21 = vector.broadcast %20 : vector<8x1xf32> to vector<8x8xf32>
    %22 = arith.mulf %17, %21 : vector<8x8xf32>
    %23 = arith.truncf %22 : vector<8x8xf32> to vector<8x8xbf16>
    %cst_11 = arith.constant dense<0.000000e+00> : vector<8x8xf32>
    %24 = tpu.matmul %23, %8, %cst_11 {dimension_numbers = #tpu.dot_dimension_numbers<[1], [0], [0], [1], [0, 0, 1, 1], [], []>} : vector<8x8xbf16>, vector<8x8xbf16>, vector<8x8xf32> -> vector<8x8xf32>
    %25 = arith.truncf %24 : vector<8x8xf32> to vector<8x8xbf16>
    %c0_12 = arith.constant 0 : index
    %c0_13 = arith.constant 0 : index
    %c0_14 = arith.constant 0 : index
    %26 = vector.load %arg5[%c0_12, %c0_13, %c0_14] : memref<1x8x32xbf16, #tpu.memory_space<vmem>>, vector<1x8x8xbf16>
    %27 = vector.shape_cast %26 : vector<1x8x8xbf16> to vector<8x8xbf16>
    %28 = vector.shape_cast %25 : vector<8x8xbf16> to vector<1x8x8xbf16>
    tpu.vector_store %arg5[%c0_12, %c0_13, %c0_14], %28 {strides = array<i32>} : memref<1x8x32xbf16, #tpu.memory_space<vmem>>, vector<1x8x8xbf16>,
    %29 = vector.extract_strided_slice %1 {offsets = [0, 8], sizes = [8, 8], strides = [1, 1]} : vector<8x32xbf16> to vector<8x8xbf16>
    %30 = vector.extract_strided_slice %3 {offsets = [0, 8], sizes = [8, 8], strides = [1, 1]} : vector<8x64xbf16> to vector<8x8xbf16>
    %31 = vector.extract_strided_slice %3 {offsets = [0, 40], sizes = [8, 8], strides = [1, 1]} : vector<8x64xbf16> to vector<8x8xbf16>
    %cst_15 = arith.constant dense<0.000000e+00> : vector<8x8xf32>
    %32 = tpu.matmul %29, %30, %cst_15 {dimension_numbers = #tpu.dot_dimension_numbers<[1], [1], [0], [0], [0, 0, 1, 0], [], []>} : vector<8x8xbf16>, vector<8x8xbf16>, vector<8x8xf32> -> vector<8x8xf32>
    %cst_16 = arith.constant 0.353553385 : f32
    %33 = vector.broadcast %cst_16 : f32 to vector<8x8xf32>
    %34 = arith.mulf %32, %33 : vector<8x8xf32>
    %35 = arith.addf %34, %5 : vector<8x8xf32>
    %cst_17 = arith.constant dense<0xFF800000> : vector<8xf32>
    %36 = vector.multi_reduction <maximumf>, %35, %cst_17 [1] : vector<8x8xf32> to vector<8xf32>
    %37 = vector.shape_cast %36 : vector<8xf32> to vector<8x1xf32>
    %38 = vector.broadcast %37 : vector<8x1xf32> to vector<8x8xf32>
    %39 = arith.subf %35, %38 : vector<8x8xf32>
    %40 = math.exp %39 : vector<8x8xf32>
    %cst_18 = arith.constant dense<0.000000e+00> : vector<8xf32>
    %41 = vector.multi_reduction <add>, %40, %cst_18 [1] : vector<8x8xf32> to vector<8xf32>
    %42 = vector.shape_cast %41 : vector<8xf32> to vector<8x1xf32>
    %43 = tpu.reciprocal %42 {approx = true} : vector<8x1xf32> -> vector<8x1xf32>
    %44 = vector.broadcast %43 : vector<8x1xf32> to vector<8x8xf32>
    %45 = arith.mulf %40, %44 : vector<8x8xf32>
    %46 = arith.truncf %45 : vector<8x8xf32> to vector<8x8xbf16>
    %cst_19 = arith.constant dense<0.000000e+00> : vector<8x8xf32>
    %47 = tpu.matmul %46, %31, %cst_19 {dimension_numbers = #tpu.dot_dimension_numbers<[1], [0], [0], [1], [0, 0, 1, 1], [], []>} : vector<8x8xbf16>, vector<8x8xbf16>, vector<8x8xf32> -> vector<8x8xf32>
    %48 = arith.truncf %47 : vector<8x8xf32> to vector<8x8xbf16>
    %c0_20 = arith.constant 0 : index
    %c0_21 = arith.constant 0 : index
    %c8 = arith.constant 8 : index
    %49 = vector.load %arg5[%c0_20, %c0_21, %c8] : memref<1x8x32xbf16, #tpu.memory_space<vmem>>, vector<1x8x8xbf16>
    %50 = vector.shape_cast %49 : vector<1x8x8xbf16> to vector<8x8xbf16>
    %51 = vector.shape_cast %48 : vector<8x8xbf16> to vector<1x8x8xbf16>
    tpu.vector_store %arg5[%c0_20, %c0_21, %c8], %51 {strides = array<i32>} : memref<1x8x32xbf16, #tpu.memory_space<vmem>>, vector<1x8x8xbf16>,
    %52 = vector.extract_strided_slice %1 {offsets = [0, 16], sizes = [8, 8], strides = [1, 1]} : vector<8x32xbf16> to vector<8x8xbf16>
    %53 = vector.extract_strided_slice %3 {offsets = [0, 16], sizes = [8, 8], strides = [1, 1]} : vector<8x64xbf16> to vector<8x8xbf16>
    %54 = vector.extract_strided_slice %3 {offsets = [0, 48], sizes = [8, 8], strides = [1, 1]} : vector<8x64xbf16> to vector<8x8xbf16>
    %cst_22 = arith.constant dense<0.000000e+00> : vector<8x8xf32>
    %55 = tpu.matmul %52, %53, %cst_22 {dimension_numbers = #tpu.dot_dimension_numbers<[1], [1], [0], [0], [0, 0, 1, 0], [], []>} : vector<8x8xbf16>, vector<8x8xbf16>, vector<8x8xf32> -> vector<8x8xf32>
    %cst_23 = arith.constant 0.353553385 : f32
    %56 = vector.broadcast %cst_23 : f32 to vector<8x8xf32>
    %57 = arith.mulf %55, %56 : vector<8x8xf32>
    %58 = arith.addf %57, %5 : vector<8x8xf32>
    %cst_24 = arith.constant dense<0xFF800000> : vector<8xf32>
    %59 = vector.multi_reduction <maximumf>, %58, %cst_24 [1] : vector<8x8xf32> to vector<8xf32>
    %60 = vector.shape_cast %59 : vector<8xf32> to vector<8x1xf32>
    %61 = vector.broadcast %60 : vector<8x1xf32> to vector<8x8xf32>
    %62 = arith.subf %58, %61 : vector<8x8xf32>
    %63 = math.exp %62 : vector<8x8xf32>
    %cst_25 = arith.constant dense<0.000000e+00> : vector<8xf32>
    %64 = vector.multi_reduction <add>, %63, %cst_25 [1] : vector<8x8xf32> to vector<8xf32>
    %65 = vector.shape_cast %64 : vector<8xf32> to vector<8x1xf32>
    %66 = tpu.reciprocal %65 {approx = true} : vector<8x1xf32> -> vector<8x1xf32>
    %67 = vector.broadcast %66 : vector<8x1xf32> to vector<8x8xf32>
    %68 = arith.mulf %63, %67 : vector<8x8xf32>
    %69 = arith.truncf %68 : vector<8x8xf32> to vector<8x8xbf16>
    %cst_26 = arith.constant dense<0.000000e+00> : vector<8x8xf32>
    %70 = tpu.matmul %69, %54, %cst_26 {dimension_numbers = #tpu.dot_dimension_numbers<[1], [0], [0], [1], [0, 0, 1, 1], [], []>} : vector<8x8xbf16>, vector<8x8xbf16>, vector<8x8xf32> -> vector<8x8xf32>
    %71 = arith.truncf %70 : vector<8x8xf32> to vector<8x8xbf16>
    %c0_27 = arith.constant 0 : index
    %c0_28 = arith.constant 0 : index
    %c16 = arith.constant 16 : index
    %72 = vector.load %arg5[%c0_27, %c0_28, %c16] : memref<1x8x32xbf16, #tpu.memory_space<vmem>>, vector<1x8x8xbf16>
    %73 = vector.shape_cast %72 : vector<1x8x8xbf16> to vector<8x8xbf16>
    %74 = vector.shape_cast %71 : vector<8x8xbf16> to vector<1x8x8xbf16>
    tpu.vector_store %arg5[%c0_27, %c0_28, %c16], %74 {strides = array<i32>} : memref<1x8x32xbf16, #tpu.memory_space<vmem>>, vector<1x8x8xbf16>,
    %75 = vector.extract_strided_slice %1 {offsets = [0, 24], sizes = [8, 8], strides = [1, 1]} : vector<8x32xbf16> to vector<8x8xbf16>
    %76 = vector.extract_strided_slice %3 {offsets = [0, 24], sizes = [8, 8], strides = [1, 1]} : vector<8x64xbf16> to vector<8x8xbf16>
    %77 = vector.extract_strided_slice %3 {offsets = [0, 56], sizes = [8, 8], strides = [1, 1]} : vector<8x64xbf16> to vector<8x8xbf16>
    %cst_29 = arith.constant dense<0.000000e+00> : vector<8x8xf32>
    %78 = tpu.matmul %75, %76, %cst_29 {dimension_numbers = #tpu.dot_dimension_numbers<[1], [1], [0], [0], [0, 0, 1, 0], [], []>} : vector<8x8xbf16>, vector<8x8xbf16>, vector<8x8xf32> -> vector<8x8xf32>
    %cst_30 = arith.constant 0.353553385 : f32
    %79 = vector.broadcast %cst_30 : f32 to vector<8x8xf32>
    %80 = arith.mulf %78, %79 : vector<8x8xf32>
    %81 = arith.addf %80, %5 : vector<8x8xf32>
    %cst_31 = arith.constant dense<0xFF800000> : vector<8xf32>
    %82 = vector.multi_reduction <maximumf>, %81, %cst_31 [1] : vector<8x8xf32> to vector<8xf32>
    %83 = vector.shape_cast %82 : vector<8xf32> to vector<8x1xf32>
    %84 = vector.broadcast %83 : vector<8x1xf32> to vector<8x8xf32>
    %85 = arith.subf %81, %84 : vector<8x8xf32>
    %86 = math.exp %85 : vector<8x8xf32>
    %cst_32 = arith.constant dense<0.000000e+00> : vector<8xf32>
    %87 = vector.multi_reduction <add>, %86, %cst_32 [1] : vector<8x8xf32> to vector<8xf32>
    %88 = vector.shape_cast %87 : vector<8xf32> to vector<8x1xf32>
    %89 = tpu.reciprocal %88 {approx = true} : vector<8x1xf32> -> vector<8x1xf32>
    %90 = vector.broadcast %89 : vector<8x1xf32> to vector<8x8xf32>
    %91 = arith.mulf %86, %90 : vector<8x8xf32>
    %92 = arith.truncf %91 : vector<8x8xf32> to vector<8x8xbf16>
    %cst_33 = arith.constant dense<0.000000e+00> : vector<8x8xf32>
    %93 = tpu.matmul %92, %77, %cst_33 {dimension_numbers = #tpu.dot_dimension_numbers<[1], [0], [0], [1], [0, 0, 1, 1], [], []>} : vector<8x8xbf16>, vector<8x8xbf16>, vector<8x8xf32> -> vector<8x8xf32>
    %94 = arith.truncf %93 : vector<8x8xf32> to vector<8x8xbf16>
    %c0_34 = arith.constant 0 : index
    %c0_35 = arith.constant 0 : index
    %c24 = arith.constant 24 : index
    %95 = vector.load %arg5[%c0_34, %c0_35, %c24] : memref<1x8x32xbf16, #tpu.memory_space<vmem>>, vector<1x8x8xbf16>
    %96 = vector.shape_cast %95 : vector<1x8x8xbf16> to vector<8x8xbf16>
    %97 = vector.shape_cast %94 : vector<8x8xbf16> to vector<1x8x8xbf16>
    tpu.vector_store %arg5[%c0_34, %c0_35, %c24], %97 {strides = array<i32>} : memref<1x8x32xbf16, #tpu.memory_space<vmem>>, vector<1x8x8xbf16>,
    return
  }
  func.func @transform_0(%arg0: i32, %arg1: i32) -> (i32, i32, i32) {
    %c0_i32 = arith.constant 0 : i32
    %c0_i32_0 = arith.constant 0 : i32
    return %arg0, %arg1, %c0_i32 : i32, i32, i32
  }
  func.func @transform_1(%arg0: i32, %arg1: i32) -> (i32, i32, i32) {
    %c0_i32 = arith.constant 0 : i32
    %c0_i32_0 = arith.constant 0 : i32
    %c0_i32_1 = arith.constant 0 : i32
    return %arg0, %c0_i32, %c0_i32_0 : i32, i32, i32
  }
  func.func @transform_2(%arg0: i32, %arg1: i32) -> (i32, i32, i32) {
    %c0_i32 = arith.constant 0 : i32
    %c0_i32_0 = arith.constant 0 : i32
    return %arg0, %arg1, %c0_i32 : i32, i32, i32
  }
  func.func @transform_3(%arg0: i32, %arg1: i32) -> (i32, i32, i32) {
    %c0_i32 = arith.constant 0 : i32
    %c0_i32_0 = arith.constant 0 : i32
    return %arg0, %arg1, %c0_i32 : i32, i32, i32
  }
}

module attributes {stable_mosaic.version = 11 : i64} {
  func.func @_linear_kernel(%arg0: i32, %arg1: i32, %arg2: i32, %arg3: memref<16x32xf32, #tpu.memory_space<vmem>>, %arg4: memref<32x32xbf16, #tpu.memory_space<vmem>>, %arg5: memref<1x32xf32, #tpu.memory_space<vmem>>, %arg6: memref<16x32xf32, #tpu.memory_space<vmem>>, %arg7: memref<16x32xf32, #tpu.memory_space<vmem>>) attributes {dimension_semantics = [#tpu.dimension_semantics<parallel>, #tpu.dimension_semantics<parallel>, #tpu.dimension_semantics<arbitrary>], iteration_bounds = array<i64: 1, 1, 1>, scalar_prefetch = 0 : i64, scratch_operands = 1 : i64, tpu.core_type = #tpu.core_type<tc>, window_params = [{transform_indices = @transform_0, window_bounds = array<i64: 16, 32>}, {transform_indices = @transform_1, window_bounds = array<i64: 32, 32>}, {transform_indices = @transform_2, window_bounds = array<i64: 1, 32>}, {transform_indices = @transform_3, window_bounds = array<i64: 16, 32>}]} {
    %c0_i32 = arith.constant 0 : i32
    %0 = arith.cmpi eq, %arg2, %c0_i32 : i32
    %1 = arith.extui %0 : i1 to i32
    %c0_i32_0 = arith.constant 0 : i32
    %2 = arith.cmpi ne, %1, %c0_i32_0 : i32
    scf.if %2 {
      %cst_10 = arith.constant 0.000000e+00 : f32
      %13 = vector.broadcast %cst_10 : f32 to vector<16x32xf32>
      %c0_11 = arith.constant 0 : index
      %c0_12 = arith.constant 0 : index
      %14 = vector.load %arg7[%c0_11, %c0_12] : memref<16x32xf32, #tpu.memory_space<vmem>>, vector<16x32xf32>
      tpu.vector_store %arg7[%c0_11, %c0_12], %13 {strides = array<i32>} : memref<16x32xf32, #tpu.memory_space<vmem>>, vector<16x32xf32>,
    } else {
    }
    %c0 = arith.constant 0 : index
    %c0_1 = arith.constant 0 : index
    %3 = vector.load %arg3[%c0, %c0_1] : memref<16x32xf32, #tpu.memory_space<vmem>>, vector<16x32xf32>
    %c0_2 = arith.constant 0 : index
    %c0_3 = arith.constant 0 : index
    %4 = vector.load %arg7[%c0_2, %c0_3] : memref<16x32xf32, #tpu.memory_space<vmem>>, vector<16x32xf32>
    %5 = arith.truncf %3 : vector<16x32xf32> to vector<16x32xbf16>
    %c0_4 = arith.constant 0 : index
    %c0_5 = arith.constant 0 : index
    %6 = vector.load %arg4[%c0_4, %c0_5] : memref<32x32xbf16, #tpu.memory_space<vmem>>, vector<32x32xbf16>
    %cst = arith.constant dense<0.000000e+00> : vector<16x32xf32>
    %7 = tpu.matmul %5, %6, %cst {dimension_numbers = #tpu.dot_dimension_numbers<[1], [0], [0], [1], [0, 0, 1, 1], [], []>} : vector<16x32xbf16>, vector<32x32xbf16>, vector<16x32xf32> -> vector<16x32xf32>
    %8 = arith.addf %4, %7 : vector<16x32xf32>
    %c0_6 = arith.constant 0 : index
    %c0_7 = arith.constant 0 : index
    %9 = vector.load %arg7[%c0_6, %c0_7] : memref<16x32xf32, #tpu.memory_space<vmem>>, vector<16x32xf32>
    tpu.vector_store %arg7[%c0_6, %c0_7], %8 {strides = array<i32>} : memref<16x32xf32, #tpu.memory_space<vmem>>, vector<16x32xf32>,
    %c0_i32_8 = arith.constant 0 : i32
    %10 = arith.cmpi eq, %arg2, %c0_i32_8 : i32
    %11 = arith.extui %10 : i1 to i32
    %c0_i32_9 = arith.constant 0 : i32
    %12 = arith.cmpi ne, %11, %c0_i32_9 : i32
    scf.if %12 {
      %c0_10 = arith.constant 0 : index
      %c0_11 = arith.constant 0 : index
      %13 = vector.load %arg7[%c0_10, %c0_11] : memref<16x32xf32, #tpu.memory_space<vmem>>, vector<16x32xf32>
      %c0_12 = arith.constant 0 : index
      %c0_13 = arith.constant 0 : index
      %14 = vector.load %arg5[%c0_12, %c0_13] : memref<1x32xf32, #tpu.memory_space<vmem>>, vector<1x32xf32>
      %15 = vector.broadcast %14 : vector<1x32xf32> to vector<16x32xf32>
      %16 = arith.addf %13, %15 : vector<16x32xf32>
      %c0_14 = arith.constant 0 : index
      %c0_15 = arith.constant 0 : index
      %17 = vector.load %arg6[%c0_14, %c0_15] : memref<16x32xf32, #tpu.memory_space<vmem>>, vector<16x32xf32>
      tpu.vector_store %arg6[%c0_14, %c0_15], %16 {strides = array<i32>} : memref<16x32xf32, #tpu.memory_space<vmem>>, vector<16x32xf32>,
    } else {
    }
    return
  }
  func.func @transform_0(%arg0: i32, %arg1: i32, %arg2: i32) -> (i32, i32) {
    %c0_i32 = arith.constant 0 : i32
    return %arg0, %arg2 : i32, i32
  }
  func.func @transform_1(%arg0: i32, %arg1: i32, %arg2: i32) -> (i32, i32) {
    %c0_i32 = arith.constant 0 : i32
    return %arg2, %arg1 : i32, i32
  }
  func.func @transform_2(%arg0: i32, %arg1: i32, %arg2: i32) -> (i32, i32) {
    %c0_i32 = arith.constant 0 : i32
    %c0_i32_0 = arith.constant 0 : i32
    return %c0_i32, %arg1 : i32, i32
  }
  func.func @transform_3(%arg0: i32, %arg1: i32, %arg2: i32) -> (i32, i32) {
    %c0_i32 = arith.constant 0 : i32
    return %arg0, %arg1 : i32, i32
  }
}

</mosaic_0001>

<llo_original>
// kernel: _lambda_.45
$region0: #{_lambda_.45}
  #allocation0 [shape = 'u32[]', space=smem, size = 0x4, offset = 0x4, fixed_abs, tag = 'smem constant byte address 0x4 - core index']
  #allocation1 [shape = 'u32[144,128]{1,0:T(1,128)}', space=vmem, size = 0x12000, scoped, tag = 'internal scratch']
  #allocation2 [shape = 'f32[16,64]{1,0:T(8,128)}', space=vmem, size = 0x2000, scoped, tag = 'scratch operand']
  %s0 = inlined_call_operand.vmem [shape: f32[16,32], index: 0, kind: input, shape index: {}]
  %s1 = inlined_call_operand.vmem [shape: bf16[32,64], index: 1, kind: input, shape index: {}]
  %s2 = inlined_call_operand.vmem [shape: f32[1,64], index: 2, kind: input, shape index: {}]
  %s3 = inlined_call_operand.vmem [shape: bf16[16,64], index: 3, kind: output, shape index: {}]
  %s4 = sld [smem:[#allocation0]]
  $region30: #{_lambda_.45} parent=0
    _
  %s6 = ssub.s32 1, %s4
  %s7 = scalar_select 0, %s6, %s4
  // Predicated region
  $region2: #{_lambda_.45} parent=0 // pred_check
    _
  $region3: #{_lambda_.45} parent=0 // pred_check_branch
    %9 = sbr.rel (0) target = $region5
  $region4: #{_lambda_.45} parent=0 // pred_region
    _
  $region5: #{_lambda_.45} parent=0 // pred_fallthru
    _
  // Predicated region
  $region6: #{_lambda_.45} parent=0 // pred_check
    _
  $region7: #{_lambda_.45} parent=0 // pred_check_branch
    %11 = sbr.rel (0) target = $region9
  $region8: #{_lambda_.45} parent=0 // pred_region
    _
  $region9: #{_lambda_.45} parent=0 // pred_fallthru
    _
  // Predicated region
  $region10: #{_lambda_.45} parent=0 // pred_check
    _
  $region11: #{_lambda_.45} parent=0 // pred_check_branch
    %13 = sbr.rel (0) target = $region13
  $region12: #{_lambda_.45} parent=0 // pred_region
    _
  $region13: #{_lambda_.45} parent=0 // pred_fallthru
    _
  %p15 = scmp.eq.s32.totalorder 0, 0
  // Predicated region
  $region14: #{_lambda_.45} parent=0 // pred_check
    %p16 = pneg %p15
  $region15: #{_lambda_.45} parent=0 // pred_check_branch
    %18 = sbr.rel (%p16) target = $region17
  $region16: #{_lambda_.45} parent=0 // pred_region
    %vm19 = vcmask 523264
    %20 = vst.msk [vmem:[#allocation2] sm:$0xff] %vm19, 0.0
    %21 = vst.msk [vmem:[#allocation2 + $0x8] sm:$0xff] %vm19, 0.0
  $region17: #{_lambda_.45} parent=0 // pred_fallthru
    _
  %v22 = vld [vmem:[%s0] sm:$0xff]
  %v23 = vld [vmem:[%s0 + $0x8] sm:$0xff]
  %v24 = vld [vmem:[#allocation2] sm:$0xff]
  %v25 = vld [vmem:[#allocation2 + $0x8] sm:$0xff]
  %v26 = vpack.c.bf16 %v23, %v22
  %v27 = vld [vmem:[%s1] sm:$0xf]
  %v28 = vld [vmem:[%s1 + $0x4] sm:$0xf]
  %v29 = vld [vmem:[%s1 + $0x8] sm:$0xf]
  %v30 = vld [vmem:[%s1 + $0xc] sm:$0xf]
  %v35 = vunpack.c.l.b16 %v27
  %v36 = vunpack.c.l.b16 %v28
  %v37 = vunpack.c.l.b16 %v29
  %v38 = vunpack.c.l.b16 %v30
  %v39 = vpack.c.b16 %v36, %v35
  %v40 = vpack.c.b16 %v38, %v37
  %vm43 = vcmask 261120
  %v45 = vsel %vm43, %v26, 0
  %47 = vmatprep.subr.bf16.mxu0 0
  %48 = vmatpush1.bf16.msra.mxu0 0
  %49 = vmatprep.subr.bf16.mxu0 0
  %50 = vmatpush1.bf16.msra.mxu0 0
  %51 = vmatprep.subr.bf16.mxu0 0
  %52 = vmatpush1.bf16.msra.mxu0 0
  %53 = vmatprep.subr.bf16.mxu0 0
  %54 = vmatpush1.bf16.msra.mxu0 0
  %55 = vmatprep.subr.bf16.mxu0 0
  %56 = vmatpush1.bf16.msra.mxu0 0
  %57 = vmatprep.subr.bf16.mxu0 0
  %58 = vmatpush1.bf16.msra.mxu0 0
  %59 = vmatprep.subr.bf16.mxu0 0
  %60 = vmatpush1.bf16.msra.mxu0 %v40
  %61 = vmatprep.subr.bf16.mxu0 0
  %62 = vmatpush1.bf16.msra.mxu0 %v39
  %63 = vmatprep.subr.bf16.mxu0 0
  %64 = vmatpush2.bf16.msra.mxu0 0
  %65 = vmatprep.subr.bf16.mxu0 0
  %66 = vmatpush2.bf16.msra.mxu0 0
  %67 = vmatprep.subr.bf16.mxu0 0
  %68 = vmatpush2.bf16.msra.mxu0 0
  %69 = vmatprep.subr.bf16.mxu0 0
  %70 = vmatpush2.bf16.msra.mxu0 0
  %71 = vmatprep.subr.bf16.mxu0 0
  %72 = vmatpush2.bf16.msra.mxu0 0
  %73 = vmatprep.subr.bf16.mxu0 0
  %74 = vmatpush2.bf16.msra.mxu0 0
  %75 = vmatprep.subr.bf16.mxu0 0
  %76 = vmatpush2.bf16.msra.mxu0 0
  %77 = vmatprep.subr.bf16.mxu0 0
  %78 = vmatpush2.bf16.msra.mxu0 0
  %79 = vmatprep.mubr.bf16.mxu0 0
  %80 = vmatmul.mubr.bf16.gmra.mxu0 %v45
  %v81 = vpop.f32.mrf.mxu0
  %v82 = vadd.f32 0.0, %v81
  %v83 = vpop.f32.mrf.mxu0
  %v84 = vpop.f32.mrf.mxu0
  %v85 = vadd.f32 0.0, %v84
  %v86 = vpop.f32.mrf.mxu0
  %87 = vdwg.mxu0
  %v88 = vadd.f32 %v24, %v82
  %v89 = vadd.f32 %v25, %v85
  %vm90 = vcmask 523264
  %91 = vst.msk [vmem:[#allocation2] sm:$0xff] %vm90, %v88
  %92 = vst.msk [vmem:[#allocation2 + $0x8] sm:$0xff] %vm90, %v89
  // Predicated region
  $region18: #{_lambda_.45} parent=0 // pred_check
    %p93 = pneg %p15
  $region19: #{_lambda_.45} parent=0 // pred_check_branch
    %95 = sbr.rel (%p93) target = $region21
  $region20: #{_lambda_.45} parent=0 // pred_region
    %v96 = vld [vmem:[#allocation2] sm:$0xff]
    %v97 = vld [vmem:[#allocation2 + $0x8] sm:$0xff]
    %v98 = vld [vmem:[%s2] sm:$0x1]
    %v100 = vlaneseq
    %v101 = vshrl.u32 %v100, 7
    %v102 = vsub.s32 0, %v101
    %v103 = vrot.slane %v98, %v102
    %v105 = vadd.f32 %v96, %v103
    %v106 = vadd.f32 %v97, %v103
    %v107 = vmax.f32 %v105, 0.0
    %v108 = vmax.f32 %v106, 0.0
    %v109 = vpack.c.bf16 %v108, %v107
    %v111 = vunpack.c.l.b16 %v109
    %v112 = vunpack.c.h.b16 %v109
    %v113 = vpack.c.b16 %v111, %v111
    %v114 = vpack.c.b16 %v112, %v112
    %vm117 = vcmask 519168
    %118 = vst.msk [vmem:[%s3] sm:$0xf] %vm117, %v113
    %119 = vst.msk [vmem:[%s3 + $0x4] sm:$0xf] %vm117, %v114
  $region21: #{_lambda_.45} parent=0 // pred_fallthru
    _
  // Predicated region
  $region22: #{_lambda_.45} parent=0 // pred_check
    _
  $region23: #{_lambda_.45} parent=0 // pred_check_branch
    %121 = sbr.rel (0) target = $region25
  $region24: #{_lambda_.45} parent=0 // pred_region
    _
  $region25: #{_lambda_.45} parent=0 // pred_fallthru
    _
  // Predicated region
  $region26: #{_lambda_.45} parent=0 // pred_check
    _
  $region27: #{_lambda_.45} parent=0 // pred_check_branch
    %123 = sbr.rel (0) target = $region29
  $region28: #{_lambda_.45} parent=0 // pred_region
    _
  $region29: #{_lambda_.45} parent=0 // pred_fallthru
    _

// kernel: _lambda_.42
$region0: #{_lambda_.42}
  #allocation0 [shape = 'u32[]', space=smem, size = 0x4, offset = 0x4, fixed_abs, tag = 'smem constant byte address 0x4 - core index']
  #allocation1 [shape = 'u32[144,128]{1,0:T(1,128)}', space=vmem, size = 0x12000, scoped, tag = 'internal scratch']
  #allocation2 [shape = 'f32[16,96]{1,0:T(8,128)}', space=vmem, size = 0x2000, scoped, tag = 'scratch operand']
  %s0 = inlined_call_operand.vmem [shape: f32[16,32], index: 0, kind: input, shape index: {}]
  %s1 = inlined_call_operand.vmem [shape: bf16[32,96], index: 1, kind: input, shape index: {}]
  %s2 = inlined_call_operand.vmem [shape: f32[1,96], index: 2, kind: input, shape index: {}]
  %s3 = inlined_call_operand.vmem [shape: bf16[16,96], index: 3, kind: output, shape index: {}]
  %s4 = sld [smem:[#allocation0]]
  $region30: #{_lambda_.42} parent=0
    _
  %s6 = ssub.s32 1, %s4
  %s7 = scalar_select 0, %s6, %s4
  // Predicated region
  $region2: #{_lambda_.42} parent=0 // pred_check
    _
  $region3: #{_lambda_.42} parent=0 // pred_check_branch
    %9 = sbr.rel (0) target = $region5
  $region4: #{_lambda_.42} parent=0 // pred_region
    _
  $region5: #{_lambda_.42} parent=0 // pred_fallthru
    _
  // Predicated region
  $region6: #{_lambda_.42} parent=0 // pred_check
    _
  $region7: #{_lambda_.42} parent=0 // pred_check_branch
    %11 = sbr.rel (0) target = $region9
  $region8: #{_lambda_.42} parent=0 // pred_region
    _
  $region9: #{_lambda_.42} parent=0 // pred_fallthru
    _
  // Predicated region
  $region10: #{_lambda_.42} parent=0 // pred_check
    _
  $region11: #{_lambda_.42} parent=0 // pred_check_branch
    %13 = sbr.rel (0) target = $region13
  $region12: #{_lambda_.42} parent=0 // pred_region
    _
  $region13: #{_lambda_.42} parent=0 // pred_fallthru
    _
  %p15 = scmp.eq.s32.totalorder 0, 0
  // Predicated region
  $region14: #{_lambda_.42} parent=0 // pred_check
    %p16 = pneg %p15
  $region15: #{_lambda_.42} parent=0 // pred_check_branch
    %18 = sbr.rel (%p16) target = $region17
  $region16: #{_lambda_.42} parent=0 // pred_region
    %vm19 = vcmask 785408
    %20 = vst.msk [vmem:[#allocation2] sm:$0xff] %vm19, 0.0
    %21 = vst.msk [vmem:[#allocation2 + $0x8] sm:$0xff] %vm19, 0.0
  $region17: #{_lambda_.42} parent=0 // pred_fallthru
    _
  %v22 = vld [vmem:[%s0] sm:$0xff]
  %v23 = vld [vmem:[%s0 + $0x8] sm:$0xff]
  %v24 = vld [vmem:[#allocation2] sm:$0xff]
  %v25 = vld [vmem:[#allocation2 + $0x8] sm:$0xff]
  %v26 = vpack.c.bf16 %v23, %v22
  %v27 = vld [vmem:[%s1] sm:$0xf]
  %v28 = vld [vmem:[%s1 + $0x4] sm:$0xf]
  %v29 = vld [vmem:[%s1 + $0x8] sm:$0xf]
  %v30 = vld [vmem:[%s1 + $0xc] sm:$0xf]
  %v35 = vunpack.c.l.b16 %v27
  %v36 = vunpack.c.l.b16 %v28
  %v37 = vunpack.c.l.b16 %v29
  %v38 = vunpack.c.l.b16 %v30
  %v39 = vpack.c.b16 %v36, %v35
  %v40 = vpack.c.b16 %v38, %v37
  %vm43 = vcmask 261120
  %v45 = vsel %vm43, %v26, 0
  %47 = vmatprep.subr.bf16.mxu0 0
  %48 = vmatpush1.bf16.msra.mxu0 0
  %49 = vmatprep.subr.bf16.mxu0 0
  %50 = vmatpush1.bf16.msra.mxu0 0
  %51 = vmatprep.subr.bf16.mxu0 0
  %52 = vmatpush1.bf16.msra.mxu0 0
  %53 = vmatprep.subr.bf16.mxu0 0
  %54 = vmatpush1.bf16.msra.mxu0 0
  %55 = vmatprep.subr.bf16.mxu0 0
  %56 = vmatpush1.bf16.msra.mxu0 0
  %57 = vmatprep.subr.bf16.mxu0 0
  %58 = vmatpush1.bf16.msra.mxu0 0
  %59 = vmatprep.subr.bf16.mxu0 0
  %60 = vmatpush1.bf16.msra.mxu0 %v40
  %61 = vmatprep.subr.bf16.mxu0 0
  %62 = vmatpush1.bf16.msra.mxu0 %v39
  %63 = vmatprep.subr.bf16.mxu0 0
  %64 = vmatpush2.bf16.msra.mxu0 0
  %65 = vmatprep.subr.bf16.mxu0 0
  %66 = vmatpush2.bf16.msra.mxu0 0
  %67 = vmatprep.subr.bf16.mxu0 0
  %68 = vmatpush2.bf16.msra.mxu0 0
  %69 = vmatprep.subr.bf16.mxu0 0
  %70 = vmatpush2.bf16.msra.mxu0 0
  %71 = vmatprep.subr.bf16.mxu0 0
  %72 = vmatpush2.bf16.msra.mxu0 0
  %73 = vmatprep.subr.bf16.mxu0 0
  %74 = vmatpush2.bf16.msra.mxu0 0
  %75 = vmatprep.subr.bf16.mxu0 0
  %76 = vmatpush2.bf16.msra.mxu0 0
  %77 = vmatprep.subr.bf16.mxu0 0
  %78 = vmatpush2.bf16.msra.mxu0 0
  %79 = vmatprep.mubr.bf16.mxu0 0
  %80 = vmatmul.mubr.bf16.gmra.mxu0 %v45
  %v81 = vpop.f32.mrf.mxu0
  %v82 = vadd.f32 0.0, %v81
  %v83 = vpop.f32.mrf.mxu0
  %v84 = vpop.f32.mrf.mxu0
  %v85 = vadd.f32 0.0, %v84
  %v86 = vpop.f32.mrf.mxu0
  %87 = vdwg.mxu0
  %v88 = vadd.f32 %v24, %v82
  %v89 = vadd.f32 %v25, %v85
  %vm90 = vcmask 785408
  %91 = vst.msk [vmem:[#allocation2] sm:$0xff] %vm90, %v88
  %92 = vst.msk [vmem:[#allocation2 + $0x8] sm:$0xff] %vm90, %v89
  // Predicated region
  $region18: #{_lambda_.42} parent=0 // pred_check
    %p93 = pneg %p15
  $region19: #{_lambda_.42} parent=0 // pred_check_branch
    %95 = sbr.rel (%p93) target = $region21
  $region20: #{_lambda_.42} parent=0 // pred_region
    %v96 = vld [vmem:[#allocation2] sm:$0xff]
    %v97 = vld [vmem:[#allocation2 + $0x8] sm:$0xff]
    %v98 = vld [vmem:[%s2] sm:$0x1]
    %v100 = vlaneseq
    %v101 = vshrl.u32 %v100, 7
    %v102 = vsub.s32 0, %v101
    %v103 = vrot.slane %v98, %v102
    %v105 = vadd.f32 %v96, %v103
    %v106 = vadd.f32 %v97, %v103
    %v107 = vpack.c.bf16 %v106, %v105
    %v109 = vunpack.c.l.b16 %v107
    %v110 = vunpack.c.h.b16 %v107
    %v111 = vpack.c.b16 %v109, %v109
    %v112 = vpack.c.b16 %v110, %v110
    %vm115 = vcmask 781312
    %116 = vst.msk [vmem:[%s3] sm:$0xf] %vm115, %v111
    %117 = vst.msk [vmem:[%s3 + $0x4] sm:$0xf] %vm115, %v112
  $region21: #{_lambda_.42} parent=0 // pred_fallthru
    _
  // Predicated region
  $region22: #{_lambda_.42} parent=0 // pred_check
    _
  $region23: #{_lambda_.42} parent=0 // pred_check_branch
    %119 = sbr.rel (0) target = $region25
  $region24: #{_lambda_.42} parent=0 // pred_region
    _
  $region25: #{_lambda_.42} parent=0 // pred_fallthru
    _
  // Predicated region
  $region26: #{_lambda_.42} parent=0 // pred_check
    _
  $region27: #{_lambda_.42} parent=0 // pred_check_branch
    %121 = sbr.rel (0) target = $region29
  $region28: #{_lambda_.42} parent=0 // pred_region
    _
  $region29: #{_lambda_.42} parent=0 // pred_fallthru
    _

// kernel: _lambda_.44
$region0: #{_lambda_.44}
  #allocation0 [shape = 'u32[]', space=smem, size = 0x4, offset = 0x4, fixed_abs, tag = 'smem constant byte address 0x4 - core index']
  #allocation1 [shape = 'u32[144,128]{1,0:T(1,128)}', space=vmem, size = 0x12000, scoped, tag = 'internal scratch']
  #allocation2 [shape = 'f32[16,32]{1,0:T(8,128)}', space=vmem, size = 0x2000, scoped, tag = 'scratch operand']
  %s0 = inlined_call_operand.vmem [shape: bf16[16,32], index: 0, kind: input, shape index: {}]
  %s1 = inlined_call_operand.vmem [shape: bf16[32,32], index: 1, kind: input, shape index: {}]
  %s2 = inlined_call_operand.vmem [shape: f32[1,32], index: 2, kind: input, shape index: {}]
  %s3 = inlined_call_operand.vmem [shape: f32[16,32], index: 3, kind: input, shape index: {}]
  %s4 = inlined_call_operand.vmem [shape: f32[1,32], index: 4, kind: input, shape index: {}]
  %s5 = inlined_call_operand.vmem [shape: f32[1,32], index: 5, kind: input, shape index: {}]
  %s6 = inlined_call_operand.vmem [shape: f32[16,32], index: 6, kind: output, shape index: {}]
  %s7 = sld [smem:[#allocation0]]
  $region42: #{_lambda_.44} parent=0
    _
  %s9 = ssub.s32 1, %s7
  %s10 = scalar_select 0, %s9, %s7
  // Predicated region
  $region2: #{_lambda_.44} parent=0 // pred_check
    _
  $region3: #{_lambda_.44} parent=0 // pred_check_branch
    %12 = sbr.rel (0) target = $region5
  $region4: #{_lambda_.44} parent=0 // pred_region
    _
  $region5: #{_lambda_.44} parent=0 // pred_fallthru
    _
  // Predicated region
  $region6: #{_lambda_.44} parent=0 // pred_check
    _
  $region7: #{_lambda_.44} parent=0 // pred_check_branch
    %14 = sbr.rel (0) target = $region9
  $region8: #{_lambda_.44} parent=0 // pred_region
    _
  $region9: #{_lambda_.44} parent=0 // pred_fallthru
    _
  // Predicated region
  $region10: #{_lambda_.44} parent=0 // pred_check
    _
  $region11: #{_lambda_.44} parent=0 // pred_check_branch
    %16 = sbr.rel (0) target = $region13
  $region12: #{_lambda_.44} parent=0 // pred_region
    _
  $region13: #{_lambda_.44} parent=0 // pred_fallthru
    _
  // Predicated region
  $region14: #{_lambda_.44} parent=0 // pred_check
    _
  $region15: #{_lambda_.44} parent=0 // pred_check_branch
    %18 = sbr.rel (0) target = $region17
  $region16: #{_lambda_.44} parent=0 // pred_region
    _
  $region17: #{_lambda_.44} parent=0 // pred_fallthru
    _
  // Predicated region
  $region18: #{_lambda_.44} parent=0 // pred_check
    _
  $region19: #{_lambda_.44} parent=0 // pred_check_branch
    %20 = sbr.rel (0) target = $region21
  $region20: #{_lambda_.44} parent=0 // pred_region
    _
  $region21: #{_lambda_.44} parent=0 // pred_fallthru
    _
  // Predicated region
  $region22: #{_lambda_.44} parent=0 // pred_check
    _
  $region23: #{_lambda_.44} parent=0 // pred_check_branch
    %22 = sbr.rel (0) target = $region25
  $region24: #{_lambda_.44} parent=0 // pred_region
    _
  $region25: #{_lambda_.44} parent=0 // pred_fallthru
    _
  %p24 = scmp.eq.s32.totalorder 0, 0
  // Predicated region
  $region26: #{_lambda_.44} parent=0 // pred_check
    %p25 = pneg %p24
  $region27: #{_lambda_.44} parent=0 // pred_check_branch
    %27 = sbr.rel (%p25) target = $region29
  $region28: #{_lambda_.44} parent=0 // pred_region
    %vm28 = vcmask 261120
    %29 = vst.msk [vmem:[#allocation2] sm:$0xff] %vm28, 0.0
    %30 = vst.msk [vmem:[#allocation2 + $0x8] sm:$0xff] %vm28, 0.0
  $region29: #{_lambda_.44} parent=0 // pred_fallthru
    _
  %v31 = vld [vmem:[#allocation2] sm:$0xff]
  %v32 = vld [vmem:[#allocation2 + $0x8] sm:$0xff]
  %v33 = vld [vmem:[%s0] sm:$0xf]
  %v34 = vld [vmem:[%s0 + $0x4] sm:$0xf]
  %v35 = vld [vmem:[%s1] sm:$0xf]
  %v36 = vld [vmem:[%s1 + $0x4] sm:$0xf]
  %v37 = vld [vmem:[%s1 + $0x8] sm:$0xf]
  %v38 = vld [vmem:[%s1 + $0xc] sm:$0xf]
  %v41 = vunpack.c.l.b16 %v33
  %v42 = vunpack.c.l.b16 %v34
  %v43 = vpack.c.b16 %v42, %v41
  %v48 = vunpack.c.l.b16 %v35
  %v49 = vunpack.c.l.b16 %v36
  %v50 = vunpack.c.l.b16 %v37
  %v51 = vunpack.c.l.b16 %v38
  %v52 = vpack.c.b16 %v49, %v48
  %v53 = vpack.c.b16 %v51, %v50
  %vm56 = vcmask 261120
  %v58 = vsel %vm56, %v43, 0
  %60 = vmatprep.subr.bf16.mxu0 0
  %61 = vmatpush1.bf16.msra.mxu0 0
  %62 = vmatprep.subr.bf16.mxu0 0
  %63 = vmatpush1.bf16.msra.mxu0 0
  %64 = vmatprep.subr.bf16.mxu0 0
  %65 = vmatpush1.bf16.msra.mxu0 0
  %66 = vmatprep.subr.bf16.mxu0 0
  %67 = vmatpush1.bf16.msra.mxu0 0
  %68 = vmatprep.subr.bf16.mxu0 0
  %69 = vmatpush1.bf16.msra.mxu0 0
  %70 = vmatprep.subr.bf16.mxu0 0
  %71 = vmatpush1.bf16.msra.mxu0 0
  %72 = vmatprep.subr.bf16.mxu0 0
  %73 = vmatpush1.bf16.msra.mxu0 %v53
  %74 = vmatprep.subr.bf16.mxu0 0
  %75 = vmatpush1.bf16.msra.mxu0 %v52
  %76 = vmatprep.subr.bf16.mxu0 0
  %77 = vmatpush2.bf16.msra.mxu0 0
  %78 = vmatprep.subr.bf16.mxu0 0
  %79 = vmatpush2.bf16.msra.mxu0 0
  %80 = vmatprep.subr.bf16.mxu0 0
  %81 = vmatpush2.bf16.msra.mxu0 0
  %82 = vmatprep.subr.bf16.mxu0 0
  %83 = vmatpush2.bf16.msra.mxu0 0
  %84 = vmatprep.subr.bf16.mxu0 0
  %85 = vmatpush2.bf16.msra.mxu0 0
  %86 = vmatprep.subr.bf16.mxu0 0
  %87 = vmatpush2.bf16.msra.mxu0 0
  %88 = vmatprep.subr.bf16.mxu0 0
  %89 = vmatpush2.bf16.msra.mxu0 0
  %90 = vmatprep.subr.bf16.mxu0 0
  %91 = vmatpush2.bf16.msra.mxu0 0
  %92 = vmatprep.mubr.bf16.mxu0 0
  %93 = vmatmul.mubr.bf16.gmra.mxu0 %v58
  %v94 = vpop.f32.mrf.mxu0
  %v95 = vadd.f32 0.0, %v94
  %v96 = vpop.f32.mrf.mxu0
  %v97 = vpop.f32.mrf.mxu0
  %v98 = vadd.f32 0.0, %v97
  %v99 = vpop.f32.mrf.mxu0
  %100 = vdwg.mxu0
  %v101 = vadd.f32 %v31, %v95
  %v102 = vadd.f32 %v32, %v98
  %103 = vst.msk [vmem:[#allocation2] sm:$0xff] %vm56, %v101
  %104 = vst.msk [vmem:[#allocation2 + $0x8] sm:$0xff] %vm56, %v102
  // Predicated region
  $region30: #{_lambda_.44} parent=0 // pred_check
    %p105 = pneg %p24
  $region31: #{_lambda_.44} parent=0 // pred_check_branch
    %107 = sbr.rel (%p105) target = $region33
  $region32: #{_lambda_.44} parent=0 // pred_region
    %v108 = vld [vmem:[#allocation2] sm:$0xff]
    %v109 = vld [vmem:[#allocation2 + $0x8] sm:$0xff]
    %v110 = vld [vmem:[%s2] sm:$0x1]
    %v112 = vlaneseq
    %v113 = vshrl.u32 %v112, 7
    %v114 = vsub.s32 0, %v113
    %v115 = vrot.slane %v110, %v114
    %v117 = vadd.f32 %v108, %v115
    %v118 = vadd.f32 %v109, %v115
    %v119 = vld [vmem:[%s3] sm:$0xff]
    %v120 = vld [vmem:[%s3 + $0x8] sm:$0xff]
    %v121 = vadd.f32 %v117, %v119
    %v122 = vadd.f32 %v118, %v120
    %v123 = vsel %vm56, %v121, 0.0
    %124 = vadd.xlane.f32.xlu0 %v123
    %v125 = vpop.xlane.xlu0 %124
    %v126 = vsel %vm56, %v122, 0.0
    %127 = vadd.xlane.f32.xlu0 %v126
    %v128 = vpop.xlane.xlu0 %127
    %v129 = vrcp.pop 32.0
    %v130 = vmul.f32 %v125, %v129
    %v131 = vmul.f32 %v128, %v129
    %v132 = vsub.f32 %v121, %v130
    %v133 = vsub.f32 %v122, %v131
    %v134 = vmul.f32 %v132, %v132
    %v135 = vmul.f32 %v133, %v133
    %v136 = vsel %vm56, %v134, 0.0
    %137 = vadd.xlane.f32.xlu0 %v136
    %v138 = vpop.xlane.xlu0 %137
    %v139 = vsel %vm56, %v135, 0.0
    %140 = vadd.xlane.f32.xlu0 %v139
    %v141 = vpop.xlane.xlu0 %140
    %v142 = vmul.f32 %v138, %v129
    %v143 = vmul.f32 %v141, %v129
    %v144 = vadd.f32 %v142, 1e-06
    %v145 = vadd.f32 %v143, 1e-06
    %v146 = vrsqrt.pop %v144
    %v147 = vrsqrt.pop %v145
    %v148 = vmul.f32 %v132, %v146
    %v149 = vmul.f32 %v133, %v147
    %v150 = vld [vmem:[%s4] sm:$0x1]
    %v152 = vlaneseq
    %v153 = vshrl.u32 %v152, 7
    %v154 = vsub.s32 0, %v153
    %v155 = vrot.slane %v150, %v154
    %v157 = vmul.f32 %v148, %v155
    %v158 = vmul.f32 %v149, %v155
    %v159 = vld [vmem:[%s5] sm:$0x1]
    %v161 = vlaneseq
    %v162 = vshrl.u32 %v161, 7
    %v163 = vsub.s32 0, %v162
    %v164 = vrot.slane %v159, %v163
    %v166 = vadd.f32 %v157, %v164
    %v167 = vadd.f32 %v158, %v164
    %168 = vst.msk [vmem:[%s6] sm:$0xff] %vm56, %v166
    %169 = vst.msk [vmem:[%s6 + $0x8] sm:$0xff] %vm56, %v167
  $region33: #{_lambda_.44} parent=0 // pred_fallthru
    _
  // Predicated region
  $region34: #{_lambda_.44} parent=0 // pred_check
    _
  $region35: #{_lambda_.44} parent=0 // pred_check_branch
    %171 = sbr.rel (0) target = $region37
  $region36: #{_lambda_.44} parent=0 // pred_region
    _
  $region37: #{_lambda_.44} parent=0 // pred_fallthru
    _
  // Predicated region
  $region38: #{_lambda_.44} parent=0 // pred_check
    _
  $region39: #{_lambda_.44} parent=0 // pred_check_branch
    %173 = sbr.rel (0) target = $region41
  $region40: #{_lambda_.44} parent=0 // pred_region
    _
  $region41: #{_lambda_.44} parent=0 // pred_fallthru
    _

// kernel: _lambda_.43
$region0: #{_lambda_.43}
  #allocation0 [shape = 'u32[]', space=smem, size = 0x4, offset = 0x4, fixed_abs, tag = 'smem constant byte address 0x4 - core index']
  #allocation1 [shape = 'u32[144,128]{1,0:T(1,128)}', space=vmem, size = 0x12000, scoped, tag = 'internal scratch']
  %s0 = inlined_call_operand.vmem [shape: bf16[2,8,96], index: 0, kind: input, shape index: {}]
  %s1 = inlined_call_operand.vmem [shape: f32[2,8,8], index: 1, kind: input, shape index: {}]
  %s2 = inlined_call_operand.vmem [shape: bf16[2,8,32], index: 2, kind: output, shape index: {}]
  %s3 = sld [smem:[#allocation0]]
  $region41: #{_lambda_.43} parent=0
    _
  %s5 = ssub.s32 1, %s3
  %s6 = scalar_select 0, %s5, %s3
  loop: start=0, step=1, limit=4
  $region2: #{_lambda_.43} parent=0 // loop_pre_header
    _
  $region3: #{_lambda_.43} parent=0 // loop_header
    %s8 = sphi 0, %s12
    %p9 = scmp.ge.s32.totalorder %s8, 4
    %s15 = sphi 0, %s27
    %s16 = sphi 0, %s23
    %s17 = sphi 0, %s15
    %s18 = sphi 0, %s16
    %s19 = sphi 0, %s17
    %s20 = sphi 0, %s18
    %s30 = sphi 0, %s32
    %s33 = sphi 0, %s30
    %s34 = sphi 0, %s33
    %s50 = sphi 0, %s34
    %s58 = sphi 0, %s60
    %s61 = sphi 0, %s58
    %s62 = sphi 0, %s61
    %s78 = sphi 0, %s62
    %s86 = sphi 0, %s88
    %s89 = sphi 0, %s86
    %s90 = sphi 0, %s89
    %s106 = sphi 0, %s90
  $region4: #{_lambda_.43} parent=0 // loop_header_branch
    %11 = sbr.rel (%p9) target = $region8
  $region5: #{_lambda_.43} parent=0 // loop_body
    %s13 = ssub.s32 %s8, 1
    %s14 = ssub.s32 %s8, 2
    %s21 = sadd.s32 1, %s16
    %p22 = scmp.ge.s32.totalorder %s21, 1
    %s23 = scalar_select %p22, 0, %s21
    %s24 = sadd.s32 1, %s15
    %s25 = scalar_select %p22, %s24, %s15
    %p26 = scmp.ge.s32.totalorder %s25, 2
    %s27 = scalar_select %p26, 0, %s25
    %s28 = ssub.s32 %s15, %s27
    %p29 = scmp.eq.s32.totalorder %s28, 0
    %s31 = sadd.s32 %s30, 1
    %s32 = scalar_select %p29, %s30, %s31
    %p35 = pneg %p29
    %p36 = scmp.eq.s32.totalorder %s8, 1
    %p37 = por %p35, %p36
    %p38 = scmp.ne.s32.totalorder %s30, %s33
    %p39 = scmp.eq.s32.totalorder %s8, 0
    %p40 = por %p38, %p39
    %p41 = scmp.ne.s32.totalorder %s30, %s33
    %p42 = scmp.eq.s32.totalorder %s13, 1
    %p43 = por %p41, %p42
    %p44 = scmp.ne.s32.totalorder %s33, %s34
    %p45 = scmp.eq.s32.totalorder %s13, 0
    %p46 = por %p44, %p45
    %p47 = scmp.ne.s32.totalorder %s33, %s34
    %p48 = scmp.eq.s32.totalorder %s14, 1
    %p49 = por %p47, %p48
    %p51 = scmp.ne.s32.totalorder %s34, %s50
    %p52 = scmp.eq.s32.totalorder %s14, 0
    %p53 = por %p51, %p52
    %s54 = ssub.s32 %s15, %s27
    %s55 = ssub.s32 %s16, %s23
    %s56 = sor.u32 %s54, %s55
    %p57 = scmp.eq.s32.totalorder %s56, 0
    %s59 = sadd.s32 %s58, 1
    %s60 = scalar_select %p57, %s58, %s59
    %p63 = pneg %p57
    %p64 = scmp.eq.s32.totalorder %s8, 1
    %p65 = por %p63, %p64
    %p66 = scmp.ne.s32.totalorder %s58, %s61
    %p67 = scmp.eq.s32.totalorder %s8, 0
    %p68 = por %p66, %p67
    %p69 = scmp.ne.s32.totalorder %s58, %s61
    %p70 = scmp.eq.s32.totalorder %s13, 1
    %p71 = por %p69, %p70
    %p72 = scmp.ne.s32.totalorder %s61, %s62
    %p73 = scmp.eq.s32.totalorder %s13, 0
    %p74 = por %p72, %p73
    %p75 = scmp.ne.s32.totalorder %s61, %s62
    %p76 = scmp.eq.s32.totalorder %s14, 1
    %p77 = por %p75, %p76
    %p79 = scmp.ne.s32.totalorder %s62, %s78
    %p80 = scmp.eq.s32.totalorder %s14, 0
    %p81 = por %p79, %p80
    %s82 = ssub.s32 %s15, %s27
    %s83 = ssub.s32 %s16, %s23
    %s84 = sor.u32 %s82, %s83
    %p85 = scmp.eq.s32.totalorder %s84, 0
    %s87 = sadd.s32 %s86, 1
    %s88 = scalar_select %p85, %s86, %s87
    %p91 = pneg %p85
    %p92 = scmp.eq.s32.totalorder %s8, 1
    %p93 = por %p91, %p92
    %p94 = scmp.ne.s32.totalorder %s86, %s89
    %p95 = scmp.eq.s32.totalorder %s8, 0
    %p96 = por %p94, %p95
    %p97 = scmp.ne.s32.totalorder %s86, %s89
    %p98 = scmp.eq.s32.totalorder %s13, 1
    %p99 = por %p97, %p98
    %p100 = scmp.ne.s32.totalorder %s89, %s90
    %p101 = scmp.eq.s32.totalorder %s13, 0
    %p102 = por %p100, %p101
    %p103 = scmp.ne.s32.totalorder %s89, %s90
    %p104 = scmp.eq.s32.totalorder %s14, 1
    %p105 = por %p103, %p104
    %p107 = scmp.ne.s32.totalorder %s90, %s106
    %p108 = scmp.eq.s32.totalorder %s14, 0
    %p109 = por %p107, %p108
    %p110 = scmp.le.s32.totalorder 1, %s8
    %p111 = scmp.lt.s32.totalorder %s8, 3
    %p112 = pnand %p110, %p111
    %p113 = pneg %p112
    // Predicated region
    $region9: #{_lambda_.43} parent=5 // pred_check
      _
    $region10: #{_lambda_.43} parent=5 // pred_check_branch
      %115 = sbr.rel (%p112) target = $region12
    $region11: #{_lambda_.43} parent=5 // pred_region
      %s116 = ssub.s32 %s8, 1
    $region12: #{_lambda_.43} parent=5 // pred_fallthru
      _
    %p117 = scmp.lt.s32.totalorder %s8, 2
    // Predicated region
    $region13: #{_lambda_.43} parent=5 // pred_check
      %p118 = pneg %p117
    $region14: #{_lambda_.43} parent=5 // pred_check_branch
      %120 = sbr.rel (%p118) target = $region16
    $region15: #{_lambda_.43} parent=5 // pred_region
      // Predicated region
      $region17: #{_lambda_.43} parent=15 // pred_check
        %p121 = pneg %p40
      $region18: #{_lambda_.43} parent=15 // pred_check_branch
        %123 = sbr.rel (%p121) target = $region20
      $region19: #{_lambda_.43} parent=15 // pred_region
        %p124 = scmp.lt.s32.totalorder %s15, 1
        %s125 = scalar_select %p124, %s15, 1
        %s126 = smul.addr %s125, 4
        %s127 = scalar_lea.vmem %s0, %s126
      $region20: #{_lambda_.43} parent=15 // pred_fallthru
        _
      // Predicated region
      $region21: #{_lambda_.43} parent=15 // pred_check
        %p128 = pneg %p68
      $region22: #{_lambda_.43} parent=15 // pred_check_branch
        %130 = sbr.rel (%p128) target = $region24
      $region23: #{_lambda_.43} parent=15 // pred_region
        %p131 = scmp.lt.s32.totalorder %s15, 1
        %s132 = scalar_select %p131, %s15, 1
        %p133 = scmp.lt.s32.totalorder %s16, 0
        %s134 = scalar_select %p133, %s16, 0
        %s135 = sadd.s32 %s134, %s132
        %s136 = smul.addr %s135, 8
        %s137 = scalar_lea.vmem %s1, %s136
      $region24: #{_lambda_.43} parent=15 // pred_fallthru
        _
    $region16: #{_lambda_.43} parent=5 // pred_fallthru
      _
    %p138 = scmp.le.s32.totalorder 1, %s8
    %p139 = scmp.lt.s32.totalorder %s8, 3
    %p140 = pnand %p138, %p139
    %p141 = pneg %p140
    // Predicated region
    $region25: #{_lambda_.43} parent=5 // pred_check
      _
    $region26: #{_lambda_.43} parent=5 // pred_check_branch
      %143 = sbr.rel (%p140) target = $region28
    $region27: #{_lambda_.43} parent=5 // pred_region
      %s144 = ssub.s32 %s8, 1
      %p145 = scmp.lt.s32.totalorder %s17, 1
      %s146 = scalar_select %p145, %s17, 1
      %s147 = smul.addr %s146, 4
      %s148 = scalar_lea.vmem %s0, %s147
      %p149 = pneg %p46
      %p150 = pneg %p43
      %p151 = scmp.lt.s32.totalorder %s17, 1
      %s152 = scalar_select %p151, %s17, 1
      %p153 = scmp.lt.s32.totalorder %s18, 0
      %s154 = scalar_select %p153, %s18, 0
      %s155 = sadd.s32 %s154, %s152
      %s156 = smul.addr %s155, 8
      %s157 = scalar_lea.vmem %s1, %s156
      %p158 = pneg %p74
      %p159 = pneg %p71
      %p160 = pneg %p102
      %p161 = pneg %p99
      %p162 = scmp.lt.s32.totalorder %s17, 1
      %s163 = scalar_select %p162, %s17, 1
      %p164 = scmp.lt.s32.totalorder %s18, 0
      %s165 = scalar_select %p164, %s18, 0
      %s166 = sadd.s32 %s165, %s163
      %s167 = smul.addr %s166, 4
      %s168 = scalar_lea.vmem %s2, %s167
      %p169 = scmp.lt.s32.totalorder %s17, 1
      %s170 = scalar_select %p169, %s17, 1
      %s171 = smul.addr %s170, 4
      %s172 = scalar_lea.vmem %s0, %s171
      %p173 = scmp.lt.s32.totalorder %s17, 1
      %s174 = scalar_select %p173, %s17, 1
      %p175 = scmp.lt.s32.totalorder %s18, 0
      %s176 = scalar_select %p175, %s18, 0
      %s177 = sadd.s32 %s176, %s174
      %s178 = smul.addr %s177, 8
      %s179 = scalar_lea.vmem %s1, %s178
      %p180 = scmp.lt.s32.totalorder %s17, 1
      %s181 = scalar_select %p180, %s17, 1
      %p182 = scmp.lt.s32.totalorder %s18, 0
      %s183 = scalar_select %p182, %s18, 0
      %s184 = sadd.s32 %s183, %s181
      %s185 = smul.addr %s184, 4
      %s186 = scalar_lea.vmem %s2, %s185
      %v188 = vld [vmem:[%s172] sm:$0xf]
      %v189 = vld [vmem:[%s179] sm:$0xff]
      %v191 = vunpack.c.l.b16 %v188
      %v192 = vpack.c.b16 %v191, %v191
      %193 = vrot.lane.b32.xlu0 %v192, 96
      %v194 = vpop.permute.xlu0 %193
      %vm195 = vcmask 64512
      %v197 = vsel %vm195, %v188, 0
      %v200 = vsel %vm195, %v194, 0
      %202 = vmatprep.subr.bf16.mxu0 0
      %203 = vmatpush1.bf16.xpose.msra.mxu0 0
      %204 = vmatprep.subr.bf16.mxu0 0
      %205 = vmatpush1.bf16.xpose.msra.mxu0 0
      %206 = vmatprep.subr.bf16.mxu0 0
      %207 = vmatpush1.bf16.xpose.msra.mxu0 0
      %208 = vmatprep.subr.bf16.mxu0 0
      %209 = vmatpush1.bf16.xpose.msra.mxu0 0
      %210 = vmatprep.subr.bf16.mxu0 0
      %211 = vmatpush1.bf16.xpose.msra.mxu0 0
      %212 = vmatprep.subr.bf16.mxu0 0
      %213 = vmatpush1.bf16.xpose.msra.mxu0 0
      %214 = vmatprep.subr.bf16.mxu0 0
      %215 = vmatpush1.bf16.xpose.msra.mxu0 0
      %216 = vmatprep.subr.bf16.mxu0 0
      %217 = vmatpush1.bf16.xpose.msra.mxu0 %v200
      %218 = vmatprep.subr.bf16.mxu0 0
      %219 = vmatpush2.bf16.xpose.msra.mxu0 0
      %220 = vmatprep.subr.bf16.mxu0 0
      %221 = vmatpush2.bf16.xpose.msra.mxu0 0
      %222 = vmatprep.subr.bf16.mxu0 0
      %223 = vmatpush2.bf16.xpose.msra.mxu0 0
      %224 = vmatprep.subr.bf16.mxu0 0
      %225 = vmatpush2.bf16.xpose.msra.mxu0 0
      %226 = vmatprep.subr.bf16.mxu0 0
      %227 = vmatpush2.bf16.xpose.msra.mxu0 0
      %228 = vmatprep.subr.bf16.mxu0 0
      %229 = vmatpush2.bf16.xpose.msra.mxu0 0
      %230 = vmatprep.subr.bf16.mxu0 0
      %231 = vmatpush2.bf16.xpose.msra.mxu0 0
      %232 = vmatprep.subr.bf16.mxu0 0
      %233 = vmatpush2.bf16.xpose.msra.mxu0 0
      %234 = vmatprep.mubr.bf16.mxu0 0
      %235 = vmatmul.mubr.bf16.gmra.mxu0 %v197
      %v236 = vpop.f32.mrf.mxu0
      %v237 = vadd.f32 0.0, %v236
      %v238 = vpop.f32.mrf.mxu0
      %v239 = vpop.f32.mrf.mxu0
      %v240 = vpop.f32.mrf.mxu0
      %241 = vdwg.mxu0
      %v242 = vmul.f32 %v237, 0.35355338
      %v243 = vadd.f32 %v242, %v189
      %v244 = vsel %vm195, %v243, -inf
      %245 = vmax.xlane.f32.xlu0 %v244
      %v246 = vpop.xlane.xlu0 %245
      %v247 = vsub.f32 %v243, %v246
      %v248 = vmul.f32 %v247, 1.442695
      %v249 = vpow.pop %v248
      %v250 = vsel %vm195, %v249, 0.0
      %251 = vadd.xlane.f32.xlu0 %v250
      %v252 = vpop.xlane.xlu0 %251
      %v253 = vrcp.pop %v252
      %v254 = vmul.f32 %v249, %v253
      %v255 = vpack.c.bf16 %v254, %v254
      %256 = vrot.lane.b32.xlu0 %v192, 64
      %v257 = vpop.permute.xlu0 %256
      %v259 = vsel %vm195, %v255, 0
      %vm261 = vcmask 1043456
      %v263 = vsel %vm261, %v257, 0
      %265 = vmatprep.subr.bf16.mxu0 0
      %266 = vmatpush1.bf16.msra.mxu0 0
      %267 = vmatprep.subr.bf16.mxu0 0
      %268 = vmatpush1.bf16.msra.mxu0 0
      %269 = vmatprep.subr.bf16.mxu0 0
      %270 = vmatpush1.bf16.msra.mxu0 0
      %271 = vmatprep.subr.bf16.mxu0 0
      %272 = vmatpush1.bf16.msra.mxu0 0
      %273 = vmatprep.subr.bf16.mxu0 0
      %274 = vmatpush1.bf16.msra.mxu0 0
      %275 = vmatprep.subr.bf16.mxu0 0
      %276 = vmatpush1.bf16.msra.mxu0 0
      %277 = vmatprep.subr.bf16.mxu0 0
      %278 = vmatpush1.bf16.msra.mxu0 0
      %279 = vmatprep.subr.bf16.mxu0 0
      %280 = vmatpush1.bf16.msra.mxu0 %v263
      %281 = vmatprep.subr.bf16.mxu0 0
      %282 = vmatpush2.bf16.msra.mxu0 0
      %283 = vmatprep.subr.bf16.mxu0 0
      %284 = vmatpush2.bf16.msra.mxu0 0
      %285 = vmatprep.subr.bf16.mxu0 0
      %286 = vmatpush2.bf16.msra.mxu0 0
      %287 = vmatprep.subr.bf16.mxu0 0
      %288 = vmatpush2.bf16.msra.mxu0 0
      %289 = vmatprep.subr.bf16.mxu0 0
      %290 = vmatpush2.bf16.msra.mxu0 0
      %291 = vmatprep.subr.bf16.mxu0 0
      %292 = vmatpush2.bf16.msra.mxu0 0
      %293 = vmatprep.subr.bf16.mxu0 0
      %294 = vmatpush2.bf16.msra.mxu0 0
      %295 = vmatprep.subr.bf16.mxu0 0
      %296 = vmatpush2.bf16.msra.mxu0 0
      %297 = vmatprep.mubr.bf16.mxu0 0
      %298 = vmatmul.mubr.bf16.gmra.mxu0 %v259
      %v299 = vpop.f32.mrf.mxu0
      %v300 = vadd.f32 0.0, %v299
      %v301 = vpop.f32.mrf.mxu0
      %v302 = vpop.f32.mrf.mxu0
      %v303 = vpop.f32.mrf.mxu0
      %304 = vdwg.mxu0
      %v305 = vpack.c.bf16 %v300, %v300
      %vm306 = vcmask 60416
      %307 = vst.msk [vmem:[%s186] sm:$0xf] %vm306, %v305
      %308 = vrot.lane.b32.xlu0 %v192, 120
      %v309 = vpop.permute.xlu0 %308
      %310 = vrot.lane.b32.xlu0 %v192, 88
      %v311 = vpop.permute.xlu0 %310
      %v313 = vsel %vm195, %v309, 0
      %v316 = vsel %vm195, %v311, 0
      %318 = vmatprep.subr.bf16.mxu0 0
      %319 = vmatpush1.bf16.xpose.msra.mxu0 0
      %320 = vmatprep.subr.bf16.mxu0 0
      %321 = vmatpush1.bf16.xpose.msra.mxu0 0
      %322 = vmatprep.subr.bf16.mxu0 0
      %323 = vmatpush1.bf16.xpose.msra.mxu0 0
      %324 = vmatprep.subr.bf16.mxu0 0
      %325 = vmatpush1.bf16.xpose.msra.mxu0 0
      %326 = vmatprep.subr.bf16.mxu0 0
      %327 = vmatpush1.bf16.xpose.msra.mxu0 0
      %328 = vmatprep.subr.bf16.mxu0 0
      %329 = vmatpush1.bf16.xpose.msra.mxu0 0
      %330 = vmatprep.subr.bf16.mxu0 0
      %331 = vmatpush1.bf16.xpose.msra.mxu0 0
      %332 = vmatprep.subr.bf16.mxu0 0
      %333 = vmatpush1.bf16.xpose.msra.mxu0 %v316
      %334 = vmatprep.subr.bf16.mxu0 0
      %335 = vmatpush2.bf16.xpose.msra.mxu0 0
      %336 = vmatprep.subr.bf16.mxu0 0
      %337 = vmatpush2.bf16.xpose.msra.mxu0 0
      %338 = vmatprep.subr.bf16.mxu0 0
      %339 = vmatpush2.bf16.xpose.msra.mxu0 0
      %340 = vmatprep.subr.bf16.mxu0 0
      %341 = vmatpush2.bf16.xpose.msra.mxu0 0
      %342 = vmatprep.subr.bf16.mxu0 0
      %343 = vmatpush2.bf16.xpose.msra.mxu0 0
      %344 = vmatprep.subr.bf16.mxu0 0
      %345 = vmatpush2.bf16.xpose.msra.mxu0 0
      %346 = vmatprep.subr.bf16.mxu0 0
      %347 = vmatpush2.bf16.xpose.msra.mxu0 0
      %348 = vmatprep.subr.bf16.mxu0 0
      %349 = vmatpush2.bf16.xpose.msra.mxu0 0
      %350 = vmatprep.mubr.bf16.mxu0 0
      %351 = vmatmul.mubr.bf16.gmra.mxu0 %v313
      %v352 = vpop.f32.mrf.mxu0
      %v353 = vadd.f32 0.0, %v352
      %v354 = vpop.f32.mrf.mxu0
      %v355 = vpop.f32.mrf.mxu0
      %v356 = vpop.f32.mrf.mxu0
      %357 = vdwg.mxu0
      %v358 = vmul.f32 %v353, 0.35355338
      %v359 = vadd.f32 %v358, %v189
      %v360 = vsel %vm195, %v359, -inf
      %361 = vmax.xlane.f32.xlu0 %v360
      %v362 = vpop.xlane.xlu0 %361
      %v363 = vsub.f32 %v359, %v362
      %v364 = vmul.f32 %v363, 1.442695
      %v365 = vpow.pop %v364
      %v366 = vsel %vm195, %v365, 0.0
      %367 = vadd.xlane.f32.xlu0 %v366
      %v368 = vpop.xlane.xlu0 %367
      %v369 = vrcp.pop %v368
      %v370 = vmul.f32 %v365, %v369
      %v371 = vpack.c.bf16 %v370, %v370
      %372 = vrot.lane.b32.xlu0 %v192, 56
      %v373 = vpop.permute.xlu0 %372
      %v375 = vsel %vm195, %v371, 0
      %v378 = vsel %vm261, %v373, 0
      %380 = vmatprep.subr.bf16.mxu0 0
      %381 = vmatpush1.bf16.msra.mxu0 0
      %382 = vmatprep.subr.bf16.mxu0 0
      %383 = vmatpush1.bf16.msra.mxu0 0
      %384 = vmatprep.subr.bf16.mxu0 0
      %385 = vmatpush1.bf16.msra.mxu0 0
      %386 = vmatprep.subr.bf16.mxu0 0
      %387 = vmatpush1.bf16.msra.mxu0 0
      %388 = vmatprep.subr.bf16.mxu0 0
      %389 = vmatpush1.bf16.msra.mxu0 0
      %390 = vmatprep.subr.bf16.mxu0 0
      %391 = vmatpush1.bf16.msra.mxu0 0
      %392 = vmatprep.subr.bf16.mxu0 0
      %393 = vmatpush1.bf16.msra.mxu0 0
      %394 = vmatprep.subr.bf16.mxu0 0
      %395 = vmatpush1.bf16.msra.mxu0 %v378
      %396 = vmatprep.subr.bf16.mxu0 0
      %397 = vmatpush2.bf16.msra.mxu0 0
      %398 = vmatprep.subr.bf16.mxu0 0
      %399 = vmatpush2.bf16.msra.mxu0 0
      %400 = vmatprep.subr.bf16.mxu0 0
      %401 = vmatpush2.bf16.msra.mxu0 0
      %402 = vmatprep.subr.bf16.mxu0 0
      %403 = vmatpush2.bf16.msra.mxu0 0
      %404 = vmatprep.subr.bf16.mxu0 0
      %405 = vmatpush2.bf16.msra.mxu0 0
      %406 = vmatprep.subr.bf16.mxu0 0
      %407 = vmatpush2.bf16.msra.mxu0 0
      %408 = vmatprep.subr.bf16.mxu0 0
      %409 = vmatpush2.bf16.msra.mxu0 0
      %410 = vmatprep.subr.bf16.mxu0 0
      %411 = vmatpush2.bf16.msra.mxu0 0
      %412 = vmatprep.mubr.bf16.mxu0 0
      %413 = vmatmul.mubr.bf16.gmra.mxu0 %v375
      %v414 = vpop.f32.mrf.mxu0
      %v415 = vadd.f32 0.0, %v414
      %v416 = vpop.f32.mrf.mxu0
      %v417 = vpop.f32.mrf.mxu0
      %v418 = vpop.f32.mrf.mxu0
      %419 = vdwg.mxu0
      %v420 = vpack.c.bf16 %v415, %v415
      %v422 = vunpack.c.l.b16 %v420
      %v423 = vpack.c.b16 %v422, %v422
      %424 = vrot.lane.b32.xlu0 %v423, 8
      %v425 = vpop.permute.xlu0 %424
      %vm427 = vcmask 126016
      %428 = vst.msk [vmem:[%s186] sm:$0xf] %vm427, %v425
      %429 = vrot.lane.b32.xlu0 %v192, 112
      %v430 = vpop.permute.xlu0 %429
      %431 = vrot.lane.b32.xlu0 %v192, 80
      %v432 = vpop.permute.xlu0 %431
      %v434 = vsel %vm195, %v430, 0
      %v437 = vsel %vm195, %v432, 0
      %439 = vmatprep.subr.bf16.mxu0 0
      %440 = vmatpush1.bf16.xpose.msra.mxu0 0
      %441 = vmatprep.subr.bf16.mxu0 0
      %442 = vmatpush1.bf16.xpose.msra.mxu0 0
      %443 = vmatprep.subr.bf16.mxu0 0
      %444 = vmatpush1.bf16.xpose.msra.mxu0 0
      %445 = vmatprep.subr.bf16.mxu0 0
      %446 = vmatpush1.bf16.xpose.msra.mxu0 0
      %447 = vmatprep.subr.bf16.mxu0 0
      %448 = vmatpush1.bf16.xpose.msra.mxu0 0
      %449 = vmatprep.subr.bf16.mxu0 0
      %450 = vmatpush1.bf16.xpose.msra.mxu0 0
      %451 = vmatprep.subr.bf16.mxu0 0
      %452 = vmatpush1.bf16.xpose.msra.mxu0 0
      %453 = vmatprep.subr.bf16.mxu0 0
      %454 = vmatpush1.bf16.xpose.msra.mxu0 %v437
      %455 = vmatprep.subr.bf16.mxu0 0
      %456 = vmatpush2.bf16.xpose.msra.mxu0 0
      %457 = vmatprep.subr.bf16.mxu0 0
      %458 = vmatpush2.bf16.xpose.msra.mxu0 0
      %459 = vmatprep.subr.bf16.mxu0 0
      %460 = vmatpush2.bf16.xpose.msra.mxu0 0
      %461 = vmatprep.subr.bf16.mxu0 0
      %462 = vmatpush2.bf16.xpose.msra.mxu0 0
      %463 = vmatprep.subr.bf16.mxu0 0
      %464 = vmatpush2.bf16.xpose.msra.mxu0 0
      %465 = vmatprep.subr.bf16.mxu0 0
      %466 = vmatpush2.bf16.xpose.msra.mxu0 0
      %467 = vmatprep.subr.bf16.mxu0 0
      %468 = vmatpush2.bf16.xpose.msra.mxu0 0
      %469 = vmatprep.subr.bf16.mxu0 0
      %470 = vmatpush2.bf16.xpose.msra.mxu0 0
      %471 = vmatprep.mubr.bf16.mxu0 0
      %472 = vmatmul.mubr.bf16.gmra.mxu0 %v434
      %v473 = vpop.f32.mrf.mxu0
      %v474 = vadd.f32 0.0, %v473
      %v475 = vpop.f32.mrf.mxu0
      %v476 = vpop.f32.mrf.mxu0
      %v477 = vpop.f32.mrf.mxu0
      %478 = vdwg.mxu0
      %v479 = vmul.f32 %v474, 0.35355338
      %v480 = vadd.f32 %v479, %v189
      %v481 = vsel %vm195, %v480, -inf
      %482 = vmax.xlane.f32.xlu0 %v481
      %v483 = vpop.xlane.xlu0 %482
      %v484 = vsub.f32 %v480, %v483
      %v485 = vmul.f32 %v484, 1.442695
      %v486 = vpow.pop %v485
      %v487 = vsel %vm195, %v486, 0.0
      %488 = vadd.xlane.f32.xlu0 %v487
      %v489 = vpop.xlane.xlu0 %488
      %v490 = vrcp.pop %v489
      %v491 = vmul.f32 %v486, %v490
      %v492 = vpack.c.bf16 %v491, %v491
      %493 = vrot.lane.b32.xlu0 %v192, 48
      %v494 = vpop.permute.xlu0 %493
      %v496 = vsel %vm195, %v492, 0
      %v499 = vsel %vm261, %v494, 0
      %501 = vmatprep.subr.bf16.mxu0 0
      %502 = vmatpush1.bf16.msra.mxu0 0
      %503 = vmatprep.subr.bf16.mxu0 0
      %504 = vmatpush1.bf16.msra.mxu0 0
      %505 = vmatprep.subr.bf16.mxu0 0
      %506 = vmatpush1.bf16.msra.mxu0 0
      %507 = vmatprep.subr.bf16.mxu0 0
      %508 = vmatpush1.bf16.msra.mxu0 0
      %509 = vmatprep.subr.bf16.mxu0 0
      %510 = vmatpush1.bf16.msra.mxu0 0
      %511 = vmatprep.subr.bf16.mxu0 0
      %512 = vmatpush1.bf16.msra.mxu0 0
      %513 = vmatprep.subr.bf16.mxu0 0
      %514 = vmatpush1.bf16.msra.mxu0 0
      %515 = vmatprep.subr.bf16.mxu0 0
      %516 = vmatpush1.bf16.msra.mxu0 %v499
      %517 = vmatprep.subr.bf16.mxu0 0
      %518 = vmatpush2.bf16.msra.mxu0 0
      %519 = vmatprep.subr.bf16.mxu0 0
      %520 = vmatpush2.bf16.msra.mxu0 0
      %521 = vmatprep.subr.bf16.mxu0 0
      %522 = vmatpush2.bf16.msra.mxu0 0
      %523 = vmatprep.subr.bf16.mxu0 0
      %524 = vmatpush2.bf16.msra.mxu0 0
      %525 = vmatprep.subr.bf16.mxu0 0
      %526 = vmatpush2.bf16.msra.mxu0 0
      %527 = vmatprep.subr.bf16.mxu0 0
      %528 = vmatpush2.bf16.msra.mxu0 0
      %529 = vmatprep.subr.bf16.mxu0 0
      %530 = vmatpush2.bf16.msra.mxu0 0
      %531 = vmatprep.subr.bf16.mxu0 0
      %532 = vmatpush2.bf16.msra.mxu0 0
      %533 = vmatprep.mubr.bf16.mxu0 0
      %534 = vmatmul.mubr.bf16.gmra.mxu0 %v496
      %v535 = vpop.f32.mrf.mxu0
      %v536 = vadd.f32 0.0, %v535
      %v537 = vpop.f32.mrf.mxu0
      %v538 = vpop.f32.mrf.mxu0
      %v539 = vpop.f32.mrf.mxu0
      %540 = vdwg.mxu0
      %v541 = vpack.c.bf16 %v536, %v536
      %v543 = vunpack.c.l.b16 %v541
      %v544 = vpack.c.b16 %v543, %v543
      %545 = vrot.lane.b32.xlu0 %v544, 16
      %v546 = vpop.permute.xlu0 %545
      %vm548 = vcmask 191616
      %549 = vst.msk [vmem:[%s186] sm:$0xf] %vm548, %v546
      %550 = vrot.lane.b32.xlu0 %v192, 104
      %v551 = vpop.permute.xlu0 %550
      %552 = vrot.lane.b32.xlu0 %v192, 72
      %v553 = vpop.permute.xlu0 %552
      %v555 = vsel %vm195, %v551, 0
      %v558 = vsel %vm195, %v553, 0
      %560 = vmatprep.subr.bf16.mxu0 0
      %561 = vmatpush1.bf16.xpose.msra.mxu0 0
      %562 = vmatprep.subr.bf16.mxu0 0
      %563 = vmatpush1.bf16.xpose.msra.mxu0 0
      %564 = vmatprep.subr.bf16.mxu0 0
      %565 = vmatpush1.bf16.xpose.msra.mxu0 0
      %566 = vmatprep.subr.bf16.mxu0 0
      %567 = vmatpush1.bf16.xpose.msra.mxu0 0
      %568 = vmatprep.subr.bf16.mxu0 0
      %569 = vmatpush1.bf16.xpose.msra.mxu0 0
      %570 = vmatprep.subr.bf16.mxu0 0
      %571 = vmatpush1.bf16.xpose.msra.mxu0 0
      %572 = vmatprep.subr.bf16.mxu0 0
      %573 = vmatpush1.bf16.xpose.msra.mxu0 0
      %574 = vmatprep.subr.bf16.mxu0 0
      %575 = vmatpush1.bf16.xpose.msra.mxu0 %v558
      %576 = vmatprep.subr.bf16.mxu0 0
      %577 = vmatpush2.bf16.xpose.msra.mxu0 0
      %578 = vmatprep.subr.bf16.mxu0 0
      %579 = vmatpush2.bf16.xpose.msra.mxu0 0
      %580 = vmatprep.subr.bf16.mxu0 0
      %581 = vmatpush2.bf16.xpose.msra.mxu0 0
      %582 = vmatprep.subr.bf16.mxu0 0
      %583 = vmatpush2.bf16.xpose.msra.mxu0 0
      %584 = vmatprep.subr.bf16.mxu0 0
      %585 = vmatpush2.bf16.xpose.msra.mxu0 0
      %586 = vmatprep.subr.bf16.mxu0 0
      %587 = vmatpush2.bf16.xpose.msra.mxu0 0
      %588 = vmatprep.subr.bf16.mxu0 0
      %589 = vmatpush2.bf16.xpose.msra.mxu0 0
      %590 = vmatprep.subr.bf16.mxu0 0
      %591 = vmatpush2.bf16.xpose.msra.mxu0 0
      %592 = vmatprep.mubr.bf16.mxu0 0
      %593 = vmatmul.mubr.bf16.gmra.mxu0 %v555
      %v594 = vpop.f32.mrf.mxu0
      %v595 = vadd.f32 0.0, %v594
      %v596 = vpop.f32.mrf.mxu0
      %v597 = vpop.f32.mrf.mxu0
      %v598 = vpop.f32.mrf.mxu0
      %599 = vdwg.mxu0
      %v600 = vmul.f32 %v595, 0.35355338
      %v601 = vadd.f32 %v600, %v189
      %v602 = vsel %vm195, %v601, -inf
      %603 = vmax.xlane.f32.xlu0 %v602
      %v604 = vpop.xlane.xlu0 %603
      %v605 = vsub.f32 %v601, %v604
      %v606 = vmul.f32 %v605, 1.442695
      %v607 = vpow.pop %v606
      %v608 = vsel %vm195, %v607, 0.0
      %609 = vadd.xlane.f32.xlu0 %v608
      %v610 = vpop.xlane.xlu0 %609
      %v611 = vrcp.pop %v610
      %v612 = vmul.f32 %v607, %v611
      %v613 = vpack.c.bf16 %v612, %v612
      %614 = vrot.lane.b32.xlu0 %v192, 40
      %v615 = vpop.permute.xlu0 %614
      %v617 = vsel %vm195, %v613, 0
      %v620 = vsel %vm261, %v615, 0
      %622 = vmatprep.subr.bf16.mxu0 0
      %623 = vmatpush1.bf16.msra.mxu0 0
      %624 = vmatprep.subr.bf16.mxu0 0
      %625 = vmatpush1.bf16.msra.mxu0 0
      %626 = vmatprep.subr.bf16.mxu0 0
      %627 = vmatpush1.bf16.msra.mxu0 0
      %628 = vmatprep.subr.bf16.mxu0 0
      %629 = vmatpush1.bf16.msra.mxu0 0
      %630 = vmatprep.subr.bf16.mxu0 0
      %631 = vmatpush1.bf16.msra.mxu0 0
      %632 = vmatprep.subr.bf16.mxu0 0
      %633 = vmatpush1.bf16.msra.mxu0 0
      %634 = vmatprep.subr.bf16.mxu0 0
      %635 = vmatpush1.bf16.msra.mxu0 0
      %636 = vmatprep.subr.bf16.mxu0 0
      %637 = vmatpush1.bf16.msra.mxu0 %v620
      %638 = vmatprep.subr.bf16.mxu0 0
      %639 = vmatpush2.bf16.msra.mxu0 0
      %640 = vmatprep.subr.bf16.mxu0 0
      %641 = vmatpush2.bf16.msra.mxu0 0
      %642 = vmatprep.subr.bf16.mxu0 0
      %643 = vmatpush2.bf16.msra.mxu0 0
      %644 = vmatprep.subr.bf16.mxu0 0
      %645 = vmatpush2.bf16.msra.mxu0 0
      %646 = vmatprep.subr.bf16.mxu0 0
      %647 = vmatpush2.bf16.msra.mxu0 0
      %648 = vmatprep.subr.bf16.mxu0 0
      %649 = vmatpush2.bf16.msra.mxu0 0
      %650 = vmatprep.subr.bf16.mxu0 0
      %651 = vmatpush2.bf16.msra.mxu0 0
      %652 = vmatprep.subr.bf16.mxu0 0
      %653 = vmatpush2.bf16.msra.mxu0 0
      %654 = vmatprep.mubr.bf16.mxu0 0
      %655 = vmatmul.mubr.bf16.gmra.mxu0 %v617
      %v656 = vpop.f32.mrf.mxu0
      %v657 = vadd.f32 0.0, %v656
      %v658 = vpop.f32.mrf.mxu0
      %v659 = vpop.f32.mrf.mxu0
      %v660 = vpop.f32.mrf.mxu0
      %661 = vdwg.mxu0
      %v662 = vpack.c.bf16 %v657, %v657
      %v664 = vunpack.c.l.b16 %v662
      %v665 = vpack.c.b16 %v664, %v664
      %666 = vrot.lane.b32.xlu0 %v665, 24
      %v667 = vpop.permute.xlu0 %666
      %vm669 = vcmask 257216
      %670 = vst.msk [vmem:[%s186] sm:$0xf] %vm669, %v667
      %p671 = scmp.lt.s32.totalorder %s17, 1
      %s672 = scalar_select %p671, %s17, 1
      %p673 = scmp.lt.s32.totalorder %s18, 0
      %s674 = scalar_select %p673, %s18, 0
      %s675 = sadd.s32 %s674, %s672
      %s676 = smul.addr %s675, 4
      %s677 = scalar_lea.vmem %s2, %s676
      // Predicated region
      $region29: #{_lambda_.43} parent=27 // pred_check
        %p678 = pneg %p99
      $region30: #{_lambda_.43} parent=27 // pred_check_branch
        %680 = sbr.rel (%p678) target = $region32
      $region31: #{_lambda_.43} parent=27 // pred_region
        _
      $region32: #{_lambda_.43} parent=27 // pred_fallthru
        _
    $region28: #{_lambda_.43} parent=5 // pred_fallthru
      _
    %p681 = scmp.le.s32.totalorder 2, %s8
    // Predicated region
    $region33: #{_lambda_.43} parent=5 // pred_check
      %p682 = pneg %p681
    $region34: #{_lambda_.43} parent=5 // pred_check_branch
      %684 = sbr.rel (%p682) target = $region36
    $region35: #{_lambda_.43} parent=5 // pred_region
      %s685 = ssub.s32 %s8, 2
      // Predicated region
      $region37: #{_lambda_.43} parent=35 // pred_check
        %p686 = pneg %p105
      $region38: #{_lambda_.43} parent=35 // pred_check_branch
        %688 = sbr.rel (%p686) target = $region40
      $region39: #{_lambda_.43} parent=35 // pred_region
        %p689 = scmp.lt.s32.totalorder %s19, 1
        %s690 = scalar_select %p689, %s19, 1
        %p691 = scmp.lt.s32.totalorder %s20, 0
        %s692 = scalar_select %p691, %s20, 0
        %s693 = sadd.s32 %s692, %s690
        %s694 = smul.addr %s693, 4
        %s695 = scalar_lea.vmem %s2, %s694
      $region40: #{_lambda_.43} parent=35 // pred_fallthru
        _
    $region36: #{_lambda_.43} parent=5 // pred_fallthru
      _
  $region6: #{_lambda_.43} parent=0 // loop_footer
    %s12 = sadd.s32 1, %s8
  $region7: #{_lambda_.43} parent=0 // loop_footer_branch
    %7 = sbr.rel target = $region3
  $region8: #{_lambda_.43} parent=0 // loop_exit
    _

// kernel: _lambda_.52
$region0: #{_lambda_.52}
  #allocation0 [shape = 'u32[]', space=smem, size = 0x4, offset = 0x4, fixed_abs, tag = 'smem constant byte address 0x4 - core index']
  #allocation1 [shape = 'u32[144,128]{1,0:T(1,128)}', space=vmem, size = 0x12000, scoped, tag = 'internal scratch']
  %s0 = inlined_call_operand.vmem [shape: f32[2], index: 0, kind: input, shape index: {}]
  %s1 = inlined_call_operand.vmem [shape: f32[16,32], index: 1, kind: input, shape index: {}]
  %s2 = inlined_call_operand.vmem [shape: f32[16,32], index: 2, kind: output, shape index: {}]
  %s3 = sld [smem:[#allocation0]]
  $region22: #{_lambda_.52} parent=0
    _
  %s5 = ssub.s32 1, %s3
  %s6 = scalar_select 0, %s5, %s3
  $region1: #{_lambda_.52} parent=0
    #allocation2 [shape = 'u8[512]{0}', space=smem, size = 0x200, scoped, tag = 'input window, operand 0, single buffered']
    #allocation3 [shape = 's32[1]{0}', space=sflag, size = 0x4, scoped, tag = 'scoped memory for _lambda_.52']
    %7 = vsyncpa [#allocation3], 0
    // Predicated region
    $region2: #{_lambda_.52} parent=1 // pred_check
      _
    $region3: #{_lambda_.52} parent=1 // pred_check_branch
      %9 = sbr.rel (0) target = $region5
    $region4: #{_lambda_.52} parent=1 // pred_region
      %s11 = ssub.s32 16, 16
      %12 = vsyncadd [#allocation3], %s11
      %s14 = sshll.u32 %s0, 4
      %s15 = int_to_ptr.vmem [resolvable:$true] %s14
      %17 = dma.vmem_to_smem %s15, 16, [#allocation2], [#allocation3]
    $region5: #{_lambda_.52} parent=1 // pred_fallthru
      _
    // Predicated region
    $region6: #{_lambda_.52} parent=1 // pred_check
      _
    $region7: #{_lambda_.52} parent=1 // pred_check_branch
      %19 = sbr.rel (0) target = $region9
    $region8: #{_lambda_.52} parent=1 // pred_region
      _
    $region9: #{_lambda_.52} parent=1 // pred_fallthru
      _
    // Predicated region
    $region10: #{_lambda_.52} parent=1 // pred_check
      _
    $region11: #{_lambda_.52} parent=1 // pred_check_branch
      %21 = sbr.rel (0) target = $region13
    $region12: #{_lambda_.52} parent=1 // pred_region
      %22 = dma.done [#allocation3], 16
    $region13: #{_lambda_.52} parent=1 // pred_fallthru
      _
    %23 = sfence
    %v24 = vld [vmem:[%s1] sm:$0xff]
    %v25 = vld [vmem:[%s1 + $0x8] sm:$0xff]
    %vm26 = vcmask 261120
    %v27 = vsel %vm26, %v24, 0.0
    %28 = vadd.xlane.f32.xlu0 %v27
    %v29 = vpop.xlane.xlu0 %28
    %v30 = vsel %vm26, %v25, 0.0
    %31 = vadd.xlane.f32.xlu0 %v30
    %v32 = vpop.xlane.xlu0 %31
    %v33 = vrcp.pop 32.0
    %v34 = vmul.f32 %v29, %v33
    %v35 = vmul.f32 %v32, %v33
    %v36 = vsub.f32 %v24, %v34
    %v37 = vsub.f32 %v25, %v35
    %v38 = vmul.f32 %v36, %v36
    %v39 = vmul.f32 %v37, %v37
    %v40 = vsel %vm26, %v38, 0.0
    %41 = vadd.xlane.f32.xlu0 %v40
    %v42 = vpop.xlane.xlu0 %41
    %v43 = vsel %vm26, %v39, 0.0
    %44 = vadd.xlane.f32.xlu0 %v43
    %v45 = vpop.xlane.xlu0 %44
    %v46 = vmul.f32 %v42, 0.032258064
    %v47 = vmul.f32 %v45, 0.032258064
    %v48 = vrsqrt.pop %v46
    %v49 = vmul.f32 %v46, %v48
    %vm50 = vcmp.eq.f32.partialorder %v46, inf
    %v51 = vsel %vm50, %v46, %v49
    %vm52 = vcmp.eq.f32.partialorder %v46, 0.0
    %v53 = vand.u32 %v46, 2147483648
    %v54 = vsel %vm52, %v53, %v51
    %v55 = vrsqrt.pop %v47
    %v56 = vmul.f32 %v47, %v55
    %vm57 = vcmp.eq.f32.partialorder %v47, inf
    %v58 = vsel %vm57, %v47, %v56
    %vm59 = vcmp.eq.f32.partialorder %v47, 0.0
    %v60 = vand.u32 %v47, 2147483648
    %v61 = vsel %vm59, %v60, %v58
    %s62 = sld [smem:[#allocation2]]
    %v63 = vstv %s62
    %v64 = vmul.f32 %v63, %v36
    %v65 = vmul.f32 %v63, %v37
    %v66 = vadd.f32 %v54, 1e-06
    %v67 = vadd.f32 %v61, 1e-06
    %v68 = vrcp.pop %v66
    %v69 = vmul.f32 %v64, %v68
    %v70 = vrcp.pop %v67
    %v71 = vmul.f32 %v65, %v70
    %s72 = sld [smem:[#allocation2 + $0x1]]
    %v73 = vstv %s72
    %v74 = vadd.f32 %v69, %v73
    %v75 = vadd.f32 %v71, %v73
    %76 = vst.msk [vmem:[%s2] sm:$0xff] %vm26, %v74
    %77 = vst.msk [vmem:[%s2 + $0x8] sm:$0xff] %vm26, %v75
    // Predicated region
    $region14: #{_lambda_.52} parent=1 // pred_check
      _
    $region15: #{_lambda_.52} parent=1 // pred_check_branch
      %79 = sbr.rel (0) target = $region17
    $region16: #{_lambda_.52} parent=1 // pred_region
      _
    $region17: #{_lambda_.52} parent=1 // pred_fallthru
      _
    // Predicated region
    $region18: #{_lambda_.52} parent=1 // pred_check
      _
    $region19: #{_lambda_.52} parent=1 // pred_check_branch
      %81 = sbr.rel (0) target = $region21
    $region20: #{_lambda_.52} parent=1 // pred_region
      _
    $region21: #{_lambda_.52} parent=1 // pred_fallthru
      _
    %82 = vsyncpa [#allocation3], 1

// kernel: _lambda_.46
$region0: #{_lambda_.46}
  #allocation0 [shape = 'u32[]', space=smem, size = 0x4, offset = 0x4, fixed_abs, tag = 'smem constant byte address 0x4 - core index']
  #allocation1 [shape = 'u32[144,128]{1,0:T(1,128)}', space=vmem, size = 0x12000, scoped, tag = 'internal scratch']
  #allocation2 [shape = 'f32[16,32]{1,0:T(8,128)}', space=vmem, size = 0x2000, scoped, tag = 'scratch operand']
  %s0 = inlined_call_operand.vmem [shape: bf16[16,64], index: 0, kind: input, shape index: {}]
  %s1 = inlined_call_operand.vmem [shape: bf16[64,32], index: 1, kind: input, shape index: {}]
  %s2 = inlined_call_operand.vmem [shape: f32[1,32], index: 2, kind: input, shape index: {}]
  %s3 = inlined_call_operand.vmem [shape: f32[16,32], index: 3, kind: input, shape index: {}]
  %s4 = inlined_call_operand.vmem [shape: f32[1,32], index: 4, kind: input, shape index: {}]
  %s5 = inlined_call_operand.vmem [shape: f32[1,32], index: 5, kind: input, shape index: {}]
  %s6 = inlined_call_operand.vmem [shape: f32[16,32], index: 6, kind: output, shape index: {}]
  %s7 = sld [smem:[#allocation0]]
  $region42: #{_lambda_.46} parent=0
    _
  %s9 = ssub.s32 1, %s7
  %s10 = scalar_select 0, %s9, %s7
  // Predicated region
  $region2: #{_lambda_.46} parent=0 // pred_check
    _
  $region3: #{_lambda_.46} parent=0 // pred_check_branch
    %12 = sbr.rel (0) target = $region5
  $region4: #{_lambda_.46} parent=0 // pred_region
    _
  $region5: #{_lambda_.46} parent=0 // pred_fallthru
    _
  // Predicated region
  $region6: #{_lambda_.46} parent=0 // pred_check
    _
  $region7: #{_lambda_.46} parent=0 // pred_check_branch
    %14 = sbr.rel (0) target = $region9
  $region8: #{_lambda_.46} parent=0 // pred_region
    _
  $region9: #{_lambda_.46} parent=0 // pred_fallthru
    _
  // Predicated region
  $region10: #{_lambda_.46} parent=0 // pred_check
    _
  $region11: #{_lambda_.46} parent=0 // pred_check_branch
    %16 = sbr.rel (0) target = $region13
  $region12: #{_lambda_.46} parent=0 // pred_region
    _
  $region13: #{_lambda_.46} parent=0 // pred_fallthru
    _
  // Predicated region
  $region14: #{_lambda_.46} parent=0 // pred_check
    _
  $region15: #{_lambda_.46} parent=0 // pred_check_branch
    %18 = sbr.rel (0) target = $region17
  $region16: #{_lambda_.46} parent=0 // pred_region
    _
  $region17: #{_lambda_.46} parent=0 // pred_fallthru
    _
  // Predicated region
  $region18: #{_lambda_.46} parent=0 // pred_check
    _
  $region19: #{_lambda_.46} parent=0 // pred_check_branch
    %20 = sbr.rel (0) target = $region21
  $region20: #{_lambda_.46} parent=0 // pred_region
    _
  $region21: #{_lambda_.46} parent=0 // pred_fallthru
    _
  // Predicated region
  $region22: #{_lambda_.46} parent=0 // pred_check
    _
  $region23: #{_lambda_.46} parent=0 // pred_check_branch
    %22 = sbr.rel (0) target = $region25
  $region24: #{_lambda_.46} parent=0 // pred_region
    _
  $region25: #{_lambda_.46} parent=0 // pred_fallthru
    _
  %p24 = scmp.eq.s32.totalorder 0, 0
  // Predicated region
  $region26: #{_lambda_.46} parent=0 // pred_check
    %p25 = pneg %p24
  $region27: #{_lambda_.46} parent=0 // pred_check_branch
    %27 = sbr.rel (%p25) target = $region29
  $region28: #{_lambda_.46} parent=0 // pred_region
    %vm28 = vcmask 261120
    %29 = vst.msk [vmem:[#allocation2] sm:$0xff] %vm28, 0.0
    %30 = vst.msk [vmem:[#allocation2 + $0x8] sm:$0xff] %vm28, 0.0
  $region29: #{_lambda_.46} parent=0 // pred_fallthru
    _
  %v31 = vld [vmem:[#allocation2] sm:$0xff]
  %v32 = vld [vmem:[#allocation2 + $0x8] sm:$0xff]
  %v33 = vld [vmem:[%s0] sm:$0xf]
  %v34 = vld [vmem:[%s0 + $0x4] sm:$0xf]
  %v35 = vld [vmem:[%s1] sm:$0xf]
  %v36 = vld [vmem:[%s1 + $0x4] sm:$0xf]
  %v37 = vld [vmem:[%s1 + $0x8] sm:$0xf]
  %v38 = vld [vmem:[%s1 + $0xc] sm:$0xf]
  %v39 = vld [vmem:[%s1 + $0x10] sm:$0xf]
  %v40 = vld [vmem:[%s1 + $0x14] sm:$0xf]
  %v41 = vld [vmem:[%s1 + $0x18] sm:$0xf]
  %v42 = vld [vmem:[%s1 + $0x1c] sm:$0xf]
  %v45 = vunpack.c.l.b16 %v33
  %v46 = vunpack.c.l.b16 %v34
  %v47 = vpack.c.b16 %v46, %v45
  %v56 = vunpack.c.l.b16 %v35
  %v57 = vunpack.c.l.b16 %v36
  %v58 = vunpack.c.l.b16 %v37
  %v59 = vunpack.c.l.b16 %v38
  %v60 = vunpack.c.l.b16 %v39
  %v61 = vunpack.c.l.b16 %v40
  %v62 = vunpack.c.l.b16 %v41
  %v63 = vunpack.c.l.b16 %v42
  %v64 = vpack.c.b16 %v57, %v56
  %v65 = vpack.c.b16 %v59, %v58
  %v66 = vpack.c.b16 %v61, %v60
  %v67 = vpack.c.b16 %v63, %v62
  %vm72 = vcmask 523264
  %v74 = vsel %vm72, %v47, 0
  %76 = vmatprep.subr.bf16.mxu0 0
  %77 = vmatpush1.bf16.msra.mxu0 0
  %78 = vmatprep.subr.bf16.mxu0 0
  %79 = vmatpush1.bf16.msra.mxu0 0
  %80 = vmatprep.subr.bf16.mxu0 0
  %81 = vmatpush1.bf16.msra.mxu0 0
  %82 = vmatprep.subr.bf16.mxu0 0
  %83 = vmatpush1.bf16.msra.mxu0 0
  %84 = vmatprep.subr.bf16.mxu0 0
  %85 = vmatpush1.bf16.msra.mxu0 %v67
  %86 = vmatprep.subr.bf16.mxu0 0
  %87 = vmatpush1.bf16.msra.mxu0 %v66
  %88 = vmatprep.subr.bf16.mxu0 0
  %89 = vmatpush1.bf16.msra.mxu0 %v65
  %90 = vmatprep.subr.bf16.mxu0 0
  %91 = vmatpush1.bf16.msra.mxu0 %v64
  %92 = vmatprep.subr.bf16.mxu0 0
  %93 = vmatpush2.bf16.msra.mxu0 0
  %94 = vmatprep.subr.bf16.mxu0 0
  %95 = vmatpush2.bf16.msra.mxu0 0
  %96 = vmatprep.subr.bf16.mxu0 0
  %97 = vmatpush2.bf16.msra.mxu0 0
  %98 = vmatprep.subr.bf16.mxu0 0
  %99 = vmatpush2.bf16.msra.mxu0 0
  %100 = vmatprep.subr.bf16.mxu0 0
  %101 = vmatpush2.bf16.msra.mxu0 0
  %102 = vmatprep.subr.bf16.mxu0 0
  %103 = vmatpush2.bf16.msra.mxu0 0
  %104 = vmatprep.subr.bf16.mxu0 0
  %105 = vmatpush2.bf16.msra.mxu0 0
  %106 = vmatprep.subr.bf16.mxu0 0
  %107 = vmatpush2.bf16.msra.mxu0 0
  %108 = vmatprep.mubr.bf16.mxu0 0
  %109 = vmatmul.mubr.bf16.gmra.mxu0 %v74
  %v110 = vpop.f32.mrf.mxu0
  %v111 = vadd.f32 0.0, %v110
  %v112 = vpop.f32.mrf.mxu0
  %v113 = vpop.f32.mrf.mxu0
  %v114 = vadd.f32 0.0, %v113
  %v115 = vpop.f32.mrf.mxu0
  %116 = vdwg.mxu0
  %v117 = vadd.f32 %v31, %v111
  %v118 = vadd.f32 %v32, %v114
  %vm119 = vcmask 261120
  %120 = vst.msk [vmem:[#allocation2] sm:$0xff] %vm119, %v117
  %121 = vst.msk [vmem:[#allocation2 + $0x8] sm:$0xff] %vm119, %v118
  // Predicated region
  $region30: #{_lambda_.46} parent=0 // pred_check
    %p122 = pneg %p24
  $region31: #{_lambda_.46} parent=0 // pred_check_branch
    %124 = sbr.rel (%p122) target = $region33
  $region32: #{_lambda_.46} parent=0 // pred_region
    %v125 = vld [vmem:[#allocation2] sm:$0xff]
    %v126 = vld [vmem:[#allocation2 + $0x8] sm:$0xff]
    %v127 = vld [vmem:[%s2] sm:$0x1]
    %v129 = vlaneseq
    %v130 = vshrl.u32 %v129, 7
    %v131 = vsub.s32 0, %v130
    %v132 = vrot.slane %v127, %v131
    %v134 = vadd.f32 %v125, %v132
    %v135 = vadd.f32 %v126, %v132
    %v136 = vld [vmem:[%s3] sm:$0xff]
    %v137 = vld [vmem:[%s3 + $0x8] sm:$0xff]
    %v138 = vadd.f32 %v134, %v136
    %v139 = vadd.f32 %v135, %v137
    %v140 = vsel %vm119, %v138, 0.0
    %141 = vadd.xlane.f32.xlu0 %v140
    %v142 = vpop.xlane.xlu0 %141
    %v143 = vsel %vm119, %v139, 0.0
    %144 = vadd.xlane.f32.xlu0 %v143
    %v145 = vpop.xlane.xlu0 %144
    %v146 = vrcp.pop 32.0
    %v147 = vmul.f32 %v142, %v146
    %v148 = vmul.f32 %v145, %v146
    %v149 = vsub.f32 %v138, %v147
    %v150 = vsub.f32 %v139, %v148
    %v151 = vmul.f32 %v149, %v149
    %v152 = vmul.f32 %v150, %v150
    %v153 = vsel %vm119, %v151, 0.0
    %154 = vadd.xlane.f32.xlu0 %v153
    %v155 = vpop.xlane.xlu0 %154
    %v156 = vsel %vm119, %v152, 0.0
    %157 = vadd.xlane.f32.xlu0 %v156
    %v158 = vpop.xlane.xlu0 %157
    %v159 = vmul.f32 %v155, %v146
    %v160 = vmul.f32 %v158, %v146
    %v161 = vadd.f32 %v159, 1e-06
    %v162 = vadd.f32 %v160, 1e-06
    %v163 = vrsqrt.pop %v161
    %v164 = vrsqrt.pop %v162
    %v165 = vmul.f32 %v149, %v163
    %v166 = vmul.f32 %v150, %v164
    %v167 = vld [vmem:[%s4] sm:$0x1]
    %v169 = vlaneseq
    %v170 = vshrl.u32 %v169, 7
    %v171 = vsub.s32 0, %v170
    %v172 = vrot.slane %v167, %v171
    %v174 = vmul.f32 %v165, %v172
    %v175 = vmul.f32 %v166, %v172
    %v176 = vld [vmem:[%s5] sm:$0x1]
    %v178 = vlaneseq
    %v179 = vshrl.u32 %v178, 7
    %v180 = vsub.s32 0, %v179
    %v181 = vrot.slane %v176, %v180
    %v183 = vadd.f32 %v174, %v181
    %v184 = vadd.f32 %v175, %v181
    %185 = vst.msk [vmem:[%s6] sm:$0xff] %vm119, %v183
    %186 = vst.msk [vmem:[%s6 + $0x8] sm:$0xff] %vm119, %v184
  $region33: #{_lambda_.46} parent=0 // pred_fallthru
    _
  // Predicated region
  $region34: #{_lambda_.46} parent=0 // pred_check
    _
  $region35: #{_lambda_.46} parent=0 // pred_check_branch
    %188 = sbr.rel (0) target = $region37
  $region36: #{_lambda_.46} parent=0 // pred_region
    _
  $region37: #{_lambda_.46} parent=0 // pred_fallthru
    _
  // Predicated region
  $region38: #{_lambda_.46} parent=0 // pred_check
    _
  $region39: #{_lambda_.46} parent=0 // pred_check_branch
    %190 = sbr.rel (0) target = $region41
  $region40: #{_lambda_.46} parent=0 // pred_region
    _
  $region41: #{_lambda_.46} parent=0 // pred_fallthru
    _

// kernel: _lambda_.55
$region0: #{_lambda_.55}
  #allocation0 [shape = 'u32[]', space=smem, size = 0x4, offset = 0x4, fixed_abs, tag = 'smem constant byte address 0x4 - core index']
  #allocation1 [shape = 'u32[144,128]{1,0:T(1,128)}', space=vmem, size = 0x12000, scoped, tag = 'internal scratch']
  %s0 = inlined_call_operand.vmem [shape: f32[16,16], index: 0, kind: input, shape index: {}]
  %s1 = inlined_call_operand.hbm [shape: f32[1,1], index: 1, kind: output, shape index: {}]
  %s2 = sld [smem:[#allocation0]]
  $region18: #{_lambda_.55} parent=0
    _
  %s4 = ssub.s32 1, %s2
  %s5 = scalar_select 0, %s4, %s2
  $region1: #{_lambda_.55} parent=0
    #allocation2 [shape = 'u8[512]{0}', space=vmem, size = 0x400, scoped, tag = 'output window, operand 0, single buffered']
    #allocation3 [shape = 's32[1]{0}', space=sflag, size = 0x4, scoped, tag = 'scoped memory for _lambda_.55']
    %6 = vsyncpa [#allocation3], 0
    // Predicated region
    $region2: #{_lambda_.55} parent=1 // pred_check
      _
    $region3: #{_lambda_.55} parent=1 // pred_check_branch
      %8 = sbr.rel (0) target = $region5
    $region4: #{_lambda_.55} parent=1 // pred_region
      _
    $region5: #{_lambda_.55} parent=1 // pred_fallthru
      _
    %p9 = scmp.eq.s32.totalorder 0, 0
    // Predicated region
    $region6: #{_lambda_.55} parent=1 // pred_check
      %p10 = pneg %p9
    $region7: #{_lambda_.55} parent=1 // pred_check_branch
      %12 = sbr.rel (%p10) target = $region9
    $region8: #{_lambda_.55} parent=1 // pred_region
      %vm13 = vcmask 0
      %14 = vst.msk [vmem:[#allocation2] sm:$0x1] %vm13, 0.0
    $region9: #{_lambda_.55} parent=1 // pred_fallthru
      _
    %v15 = vld [vmem:[%s0] sm:$0xff]
    %v16 = vld [vmem:[%s0 + $0x8] sm:$0xff]
    %v17 = vld [vmem:[#allocation2] sm:$0x1]
    %v18 = vmul.f32 %v15, %v15
    %v19 = vmul.f32 %v16, %v16
    %vm20 = vcmask 130048
    %v21 = vsel %vm20, %v18, 0.0
    %v22 = vsel %vm20, %v19, 0.0
    %v23 = vadd.f32 %v21, %v22
    %24 = vadd.xlane.f32.xlu0 %v23
    %v25 = vpop.xlane.xlu0 %24
    %v26 = vrot.slane %v25, 4
    %v27 = vadd.f32 %v25, %v26
    %v28 = vrot.slane %v27, 2
    %v29 = vadd.f32 %v27, %v28
    %v30 = vrot.slane %v29, 1
    %v31 = vadd.f32 %v29, %v30
    %s32 = vtos %v31
    %v33 = vstv %s32
    %v34 = vadd.f32 %v17, %v33
    %vm35 = vcmask 0
    %36 = vst.msk [vmem:[#allocation2] sm:$0x1] %vm35, %v34
    // Predicated region
    $region10: #{_lambda_.55} parent=1 // pred_check
      _
    $region11: #{_lambda_.55} parent=1 // pred_check_branch
      %38 = sbr.rel (0) target = $region13
    $region12: #{_lambda_.55} parent=1 // pred_region
      %s40 = ssub.s32 16, 16
      %41 = vsyncadd [#allocation3], %s40
      %s43 = sshll.u32 [#allocation2], 4
      %s44 = int_to_ptr.vmem [resolvable:$true] %s43
      %46 = dma.vmem_to_hbm [thread:$0]  %s44, 16, %s1, [#allocation3]
    $region13: #{_lambda_.55} parent=1 // pred_fallthru
      _
    // Predicated region
    $region14: #{_lambda_.55} parent=1 // pred_check
      _
    $region15: #{_lambda_.55} parent=1 // pred_check_branch
      %48 = sbr.rel (0) target = $region17
    $region16: #{_lambda_.55} parent=1 // pred_region
      %49 = dma.done [#allocation3], 16
    $region17: #{_lambda_.55} parent=1 // pred_fallthru
      _
    %50 = vsyncpa [#allocation3], 1

// kernel: _lambda_.54
$region0: #{_lambda_.54}
  #allocation0 [shape = 'u32[]', space=smem, size = 0x4, offset = 0x4, fixed_abs, tag = 'smem constant byte address 0x4 - core index']
  #allocation1 [shape = 'u32[144,128]{1,0:T(1,128)}', space=vmem, size = 0x12000, scoped, tag = 'internal scratch']
  #allocation2 [shape = 'f32[16,16]{1,0:T(8,128)}', space=vmem, size = 0x2000, scoped, tag = 'scratch operand']
  %s0 = inlined_call_operand.vmem [shape: bf16[16,64], index: 0, kind: input, shape index: {}]
  %s1 = inlined_call_operand.vmem [shape: bf16[64,16], index: 1, kind: input, shape index: {}]
  %s2 = inlined_call_operand.vmem [shape: f32[1,16], index: 2, kind: input, shape index: {}]
  %s3 = inlined_call_operand.vmem [shape: f32[16,16], index: 3, kind: output, shape index: {}]
  %s4 = sld [smem:[#allocation0]]
  $region30: #{_lambda_.54} parent=0
    _
  %s6 = ssub.s32 1, %s4
  %s7 = scalar_select 0, %s6, %s4
  // Predicated region
  $region2: #{_lambda_.54} parent=0 // pred_check
    _
  $region3: #{_lambda_.54} parent=0 // pred_check_branch
    %9 = sbr.rel (0) target = $region5
  $region4: #{_lambda_.54} parent=0 // pred_region
    _
  $region5: #{_lambda_.54} parent=0 // pred_fallthru
    _
  // Predicated region
  $region6: #{_lambda_.54} parent=0 // pred_check
    _
  $region7: #{_lambda_.54} parent=0 // pred_check_branch
    %11 = sbr.rel (0) target = $region9
  $region8: #{_lambda_.54} parent=0 // pred_region
    _
  $region9: #{_lambda_.54} parent=0 // pred_fallthru
    _
  // Predicated region
  $region10: #{_lambda_.54} parent=0 // pred_check
    _
  $region11: #{_lambda_.54} parent=0 // pred_check_branch
    %13 = sbr.rel (0) target = $region13
  $region12: #{_lambda_.54} parent=0 // pred_region
    _
  $region13: #{_lambda_.54} parent=0 // pred_fallthru
    _
  %p15 = scmp.eq.s32.totalorder 0, 0
  // Predicated region
  $region14: #{_lambda_.54} parent=0 // pred_check
    %p16 = pneg %p15
  $region15: #{_lambda_.54} parent=0 // pred_check_branch
    %18 = sbr.rel (%p16) target = $region17
  $region16: #{_lambda_.54} parent=0 // pred_region
    %vm19 = vcmask 130048
    %20 = vst.msk [vmem:[#allocation2] sm:$0xff] %vm19, 0.0
    %21 = vst.msk [vmem:[#allocation2 + $0x8] sm:$0xff] %vm19, 0.0
  $region17: #{_lambda_.54} parent=0 // pred_fallthru
    _
  %v22 = vld [vmem:[%s0] sm:$0xf]
  %v23 = vld [vmem:[%s0 + $0x4] sm:$0xf]
  %v24 = vld [vmem:[#allocation2] sm:$0xff]
  %v25 = vld [vmem:[#allocation2 + $0x8] sm:$0xff]
  %v26 = vld [vmem:[%s1] sm:$0xf]
  %v27 = vld [vmem:[%s1 + $0x4] sm:$0xf]
  %v28 = vld [vmem:[%s1 + $0x8] sm:$0xf]
  %v29 = vld [vmem:[%s1 + $0xc] sm:$0xf]
  %v30 = vld [vmem:[%s1 + $0x10] sm:$0xf]
  %v31 = vld [vmem:[%s1 + $0x14] sm:$0xf]
  %v32 = vld [vmem:[%s1 + $0x18] sm:$0xf]
  %v33 = vld [vmem:[%s1 + $0x1c] sm:$0xf]
  %v36 = vunpack.c.l.b16 %v22
  %v37 = vunpack.c.l.b16 %v23
  %v38 = vpack.c.b16 %v37, %v36
  %v47 = vunpack.c.l.b16 %v26
  %v48 = vunpack.c.l.b16 %v27
  %v49 = vunpack.c.l.b16 %v28
  %v50 = vunpack.c.l.b16 %v29
  %v51 = vunpack.c.l.b16 %v30
  %v52 = vunpack.c.l.b16 %v31
  %v53 = vunpack.c.l.b16 %v32
  %v54 = vunpack.c.l.b16 %v33
  %v55 = vpack.c.b16 %v48, %v47
  %v56 = vpack.c.b16 %v50, %v49
  %v57 = vpack.c.b16 %v52, %v51
  %v58 = vpack.c.b16 %v54, %v53
  %vm63 = vcmask 523264
  %v65 = vsel %vm63, %v38, 0
  %67 = vmatprep.subr.bf16.mxu0 0
  %68 = vmatpush1.bf16.msra.mxu0 0
  %69 = vmatprep.subr.bf16.mxu0 0
  %70 = vmatpush1.bf16.msra.mxu0 0
  %71 = vmatprep.subr.bf16.mxu0 0
  %72 = vmatpush1.bf16.msra.mxu0 0
  %73 = vmatprep.subr.bf16.mxu0 0
  %74 = vmatpush1.bf16.msra.mxu0 0
  %75 = vmatprep.subr.bf16.mxu0 0
  %76 = vmatpush1.bf16.msra.mxu0 %v58
  %77 = vmatprep.subr.bf16.mxu0 0
  %78 = vmatpush1.bf16.msra.mxu0 %v57
  %79 = vmatprep.subr.bf16.mxu0 0
  %80 = vmatpush1.bf16.msra.mxu0 %v56
  %81 = vmatprep.subr.bf16.mxu0 0
  %82 = vmatpush1.bf16.msra.mxu0 %v55
  %83 = vmatprep.subr.bf16.mxu0 0
  %84 = vmatpush2.bf16.msra.mxu0 0
  %85 = vmatprep.subr.bf16.mxu0 0
  %86 = vmatpush2.bf16.msra.mxu0 0
  %87 = vmatprep.subr.bf16.mxu0 0
  %88 = vmatpush2.bf16.msra.mxu0 0
  %89 = vmatprep.subr.bf16.mxu0 0
  %90 = vmatpush2.bf16.msra.mxu0 0
  %91 = vmatprep.subr.bf16.mxu0 0
  %92 = vmatpush2.bf16.msra.mxu0 0
  %93 = vmatprep.subr.bf16.mxu0 0
  %94 = vmatpush2.bf16.msra.mxu0 0
  %95 = vmatprep.subr.bf16.mxu0 0
  %96 = vmatpush2.bf16.msra.mxu0 0
  %97 = vmatprep.subr.bf16.mxu0 0
  %98 = vmatpush2.bf16.msra.mxu0 0
  %99 = vmatprep.mubr.bf16.mxu0 0
  %100 = vmatmul.mubr.bf16.gmra.mxu0 %v65
  %v101 = vpop.f32.mrf.mxu0
  %v102 = vadd.f32 0.0, %v101
  %v103 = vpop.f32.mrf.mxu0
  %v104 = vpop.f32.mrf.mxu0
  %v105 = vadd.f32 0.0, %v104
  %v106 = vpop.f32.mrf.mxu0
  %107 = vdwg.mxu0
  %v108 = vadd.f32 %v24, %v102
  %v109 = vadd.f32 %v25, %v105
  %vm110 = vcmask 130048
  %111 = vst.msk [vmem:[#allocation2] sm:$0xff] %vm110, %v108
  %112 = vst.msk [vmem:[#allocation2 + $0x8] sm:$0xff] %vm110, %v109
  // Predicated region
  $region18: #{_lambda_.54} parent=0 // pred_check
    %p113 = pneg %p15
  $region19: #{_lambda_.54} parent=0 // pred_check_branch
    %115 = sbr.rel (%p113) target = $region21
  $region20: #{_lambda_.54} parent=0 // pred_region
    %v116 = vld [vmem:[#allocation2] sm:$0xff]
    %v117 = vld [vmem:[#allocation2 + $0x8] sm:$0xff]
    %v118 = vld [vmem:[%s2] sm:$0x1]
    %v120 = vlaneseq
    %v121 = vshrl.u32 %v120, 7
    %v122 = vsub.s32 0, %v121
    %v123 = vrot.slane %v118, %v122
    %v125 = vadd.f32 %v116, %v123
    %v126 = vadd.f32 %v117, %v123
    %127 = vst.msk [vmem:[%s3] sm:$0xff] %vm110, %v125
    %128 = vst.msk [vmem:[%s3 + $0x8] sm:$0xff] %vm110, %v126
  $region21: #{_lambda_.54} parent=0 // pred_fallthru
    _
  // Predicated region
  $region22: #{_lambda_.54} parent=0 // pred_check
    _
  $region23: #{_lambda_.54} parent=0 // pred_check_branch
    %130 = sbr.rel (0) target = $region25
  $region24: #{_lambda_.54} parent=0 // pred_region
    _
  $region25: #{_lambda_.54} parent=0 // pred_fallthru
    _
  // Predicated region
  $region26: #{_lambda_.54} parent=0 // pred_check
    _
  $region27: #{_lambda_.54} parent=0 // pred_check_branch
    %132 = sbr.rel (0) target = $region29
  $region28: #{_lambda_.54} parent=0 // pred_region
    _
  $region29: #{_lambda_.54} parent=0 // pred_fallthru
    _

// kernel: _lambda_.56
$region0: #{_lambda_.56}
  #allocation0 [shape = 'u32[]', space=smem, size = 0x4, offset = 0x4, fixed_abs, tag = 'smem constant byte address 0x4 - core index']
  #allocation1 [shape = 'u32[144,128]{1,0:T(1,128)}', space=vmem, size = 0x12000, scoped, tag = 'internal scratch']
  #allocation2 [shape = 'f32[1]{0:T(128)S(6)}', space=smem, size = 0x200, scoped, tag = 'scoped memory for _lambda_.56']
  %s0 = inlined_call_operand.<no memory space> [shape: f32[1], index: 0, kind: input, shape index: {}]
  %s1 = inlined_call_operand.vmem [shape: f32[16,16], index: 1, kind: input, shape index: {}]
  %s2 = inlined_call_operand.vmem [shape: f32[16,16], index: 2, kind: input, shape index: {}]
  %s3 = inlined_call_operand.vmem [shape: f32[16,16], index: 3, kind: output, shape index: {}]
  %s4 = sld [smem:[#allocation0]]
  $region22: #{_lambda_.56} parent=0
    _
  %s6 = ssub.s32 1, %s4
  %s7 = scalar_select 0, %s6, %s4
  %8 = sst [smem:[#allocation2]] %s0
  // Predicated region
  $region2: #{_lambda_.56} parent=0 // pred_check
    _
  $region3: #{_lambda_.56} parent=0 // pred_check_branch
    %10 = sbr.rel (0) target = $region5
  $region4: #{_lambda_.56} parent=0 // pred_region
    _
  $region5: #{_lambda_.56} parent=0 // pred_fallthru
    _
  // Predicated region
  $region6: #{_lambda_.56} parent=0 // pred_check
    _
  $region7: #{_lambda_.56} parent=0 // pred_check_branch
    %12 = sbr.rel (0) target = $region9
  $region8: #{_lambda_.56} parent=0 // pred_region
    _
  $region9: #{_lambda_.56} parent=0 // pred_fallthru
    _
  // Predicated region
  $region10: #{_lambda_.56} parent=0 // pred_check
    _
  $region11: #{_lambda_.56} parent=0 // pred_check_branch
    %14 = sbr.rel (0) target = $region13
  $region12: #{_lambda_.56} parent=0 // pred_region
    _
  $region13: #{_lambda_.56} parent=0 // pred_fallthru
    _
  %v15 = vld [vmem:[%s1] sm:$0xff]
  %v16 = vld [vmem:[%s1 + $0x8] sm:$0xff]
  %s17 = sld [smem:[#allocation2]]
  %v18 = vstv %s17
  %v19 = vmul.f32 %v15, %v18
  %v20 = vmul.f32 %v16, %v18
  %v21 = vld [vmem:[%s2] sm:$0xff]
  %v22 = vld [vmem:[%s2 + $0x8] sm:$0xff]
  %v23 = vmul.f32 %v21, 0.1
  %v24 = vmul.f32 %v22, 0.1
  %v25 = vadd.f32 %v19, %v23
  %v26 = vadd.f32 %v20, %v24
  %vm27 = vcmask 130048
  %28 = vst.msk [vmem:[%s3] sm:$0xff] %vm27, %v25
  %29 = vst.msk [vmem:[%s3 + $0x8] sm:$0xff] %vm27, %v26
  // Predicated region
  $region14: #{_lambda_.56} parent=0 // pred_check
    _
  $region15: #{_lambda_.56} parent=0 // pred_check_branch
    %31 = sbr.rel (0) target = $region17
  $region16: #{_lambda_.56} parent=0 // pred_region
    _
  $region17: #{_lambda_.56} parent=0 // pred_fallthru
    _
  // Predicated region
  $region18: #{_lambda_.56} parent=0 // pred_check
    _
  $region19: #{_lambda_.56} parent=0 // pred_check_branch
    %33 = sbr.rel (0) target = $region21
  $region20: #{_lambda_.56} parent=0 // pred_region
    _
  $region21: #{_lambda_.56} parent=0 // pred_fallthru
    _

// kernel: _lambda_.58
$region0: #{_lambda_.58}
  #allocation0 [shape = 'u32[]', space=smem, size = 0x4, offset = 0x4, fixed_abs, tag = 'smem constant byte address 0x4 - core index']
  #allocation1 [shape = 'u32[144,128]{1,0:T(1,128)}', space=vmem, size = 0x12000, scoped, tag = 'internal scratch']
  #allocation2 [shape = 'f32[16,64]{1,0:T(8,128)}', space=vmem, size = 0x2000, scoped, tag = 'scratch operand']
  %s0 = inlined_call_operand.vmem [shape: f32[16,32], index: 0, kind: input, shape index: {}]
  %s1 = inlined_call_operand.vmem [shape: bf16[32,64], index: 1, kind: input, shape index: {}]
  %s2 = inlined_call_operand.vmem [shape: f32[1,64], index: 2, kind: input, shape index: {}]
  %s3 = inlined_call_operand.vmem [shape: bf16[16,64], index: 3, kind: output, shape index: {}]
  %s4 = sld [smem:[#allocation0]]
  $region30: #{_lambda_.58} parent=0
    _
  %s6 = ssub.s32 1, %s4
  %s7 = scalar_select 0, %s6, %s4
  // Predicated region
  $region2: #{_lambda_.58} parent=0 // pred_check
    _
  $region3: #{_lambda_.58} parent=0 // pred_check_branch
    %9 = sbr.rel (0) target = $region5
  $region4: #{_lambda_.58} parent=0 // pred_region
    _
  $region5: #{_lambda_.58} parent=0 // pred_fallthru
    _
  // Predicated region
  $region6: #{_lambda_.58} parent=0 // pred_check
    _
  $region7: #{_lambda_.58} parent=0 // pred_check_branch
    %11 = sbr.rel (0) target = $region9
  $region8: #{_lambda_.58} parent=0 // pred_region
    _
  $region9: #{_lambda_.58} parent=0 // pred_fallthru
    _
  // Predicated region
  $region10: #{_lambda_.58} parent=0 // pred_check
    _
  $region11: #{_lambda_.58} parent=0 // pred_check_branch
    %13 = sbr.rel (0) target = $region13
  $region12: #{_lambda_.58} parent=0 // pred_region
    _
  $region13: #{_lambda_.58} parent=0 // pred_fallthru
    _
  %p15 = scmp.eq.s32.totalorder 0, 0
  // Predicated region
  $region14: #{_lambda_.58} parent=0 // pred_check
    %p16 = pneg %p15
  $region15: #{_lambda_.58} parent=0 // pred_check_branch
    %18 = sbr.rel (%p16) target = $region17
  $region16: #{_lambda_.58} parent=0 // pred_region
    %vm19 = vcmask 523264
    %20 = vst.msk [vmem:[#allocation2] sm:$0xff] %vm19, 0.0
    %21 = vst.msk [vmem:[#allocation2 + $0x8] sm:$0xff] %vm19, 0.0
  $region17: #{_lambda_.58} parent=0 // pred_fallthru
    _
  %v22 = vld [vmem:[%s0] sm:$0xff]
  %v23 = vld [vmem:[%s0 + $0x8] sm:$0xff]
  %v24 = vmax.f32 %v22, 0.0
  %v25 = vmax.f32 %v23, 0.0
  %v26 = vld [vmem:[#allocation2] sm:$0xff]
  %v27 = vld [vmem:[#allocation2 + $0x8] sm:$0xff]
  %v28 = vpack.c.bf16 %v25, %v24
  %v29 = vld [vmem:[%s1] sm:$0xf]
  %v30 = vld [vmem:[%s1 + $0x4] sm:$0xf]
  %v31 = vld [vmem:[%s1 + $0x8] sm:$0xf]
  %v32 = vld [vmem:[%s1 + $0xc] sm:$0xf]
  %v37 = vunpack.c.l.b16 %v29
  %v38 = vunpack.c.l.b16 %v30
  %v39 = vunpack.c.l.b16 %v31
  %v40 = vunpack.c.l.b16 %v32
  %v41 = vpack.c.b16 %v38, %v37
  %v42 = vpack.c.b16 %v40, %v39
  %vm45 = vcmask 261120
  %v47 = vsel %vm45, %v28, 0
  %49 = vmatprep.subr.bf16.mxu0 0
  %50 = vmatpush1.bf16.msra.mxu0 0
  %51 = vmatprep.subr.bf16.mxu0 0
  %52 = vmatpush1.bf16.msra.mxu0 0
  %53 = vmatprep.subr.bf16.mxu0 0
  %54 = vmatpush1.bf16.msra.mxu0 0
  %55 = vmatprep.subr.bf16.mxu0 0
  %56 = vmatpush1.bf16.msra.mxu0 0
  %57 = vmatprep.subr.bf16.mxu0 0
  %58 = vmatpush1.bf16.msra.mxu0 0
  %59 = vmatprep.subr.bf16.mxu0 0
  %60 = vmatpush1.bf16.msra.mxu0 0
  %61 = vmatprep.subr.bf16.mxu0 0
  %62 = vmatpush1.bf16.msra.mxu0 %v42
  %63 = vmatprep.subr.bf16.mxu0 0
  %64 = vmatpush1.bf16.msra.mxu0 %v41
  %65 = vmatprep.subr.bf16.mxu0 0
  %66 = vmatpush2.bf16.msra.mxu0 0
  %67 = vmatprep.subr.bf16.mxu0 0
  %68 = vmatpush2.bf16.msra.mxu0 0
  %69 = vmatprep.subr.bf16.mxu0 0
  %70 = vmatpush2.bf16.msra.mxu0 0
  %71 = vmatprep.subr.bf16.mxu0 0
  %72 = vmatpush2.bf16.msra.mxu0 0
  %73 = vmatprep.subr.bf16.mxu0 0
  %74 = vmatpush2.bf16.msra.mxu0 0
  %75 = vmatprep.subr.bf16.mxu0 0
  %76 = vmatpush2.bf16.msra.mxu0 0
  %77 = vmatprep.subr.bf16.mxu0 0
  %78 = vmatpush2.bf16.msra.mxu0 0
  %79 = vmatprep.subr.bf16.mxu0 0
  %80 = vmatpush2.bf16.msra.mxu0 0
  %81 = vmatprep.mubr.bf16.mxu0 0
  %82 = vmatmul.mubr.bf16.gmra.mxu0 %v47
  %v83 = vpop.f32.mrf.mxu0
  %v84 = vadd.f32 0.0, %v83
  %v85 = vpop.f32.mrf.mxu0
  %v86 = vpop.f32.mrf.mxu0
  %v87 = vadd.f32 0.0, %v86
  %v88 = vpop.f32.mrf.mxu0
  %89 = vdwg.mxu0
  %v90 = vadd.f32 %v26, %v84
  %v91 = vadd.f32 %v27, %v87
  %vm92 = vcmask 523264
  %93 = vst.msk [vmem:[#allocation2] sm:$0xff] %vm92, %v90
  %94 = vst.msk [vmem:[#allocation2 + $0x8] sm:$0xff] %vm92, %v91
  // Predicated region
  $region18: #{_lambda_.58} parent=0 // pred_check
    %p95 = pneg %p15
  $region19: #{_lambda_.58} parent=0 // pred_check_branch
    %97 = sbr.rel (%p95) target = $region21
  $region20: #{_lambda_.58} parent=0 // pred_region
    %v98 = vld [vmem:[#allocation2] sm:$0xff]
    %v99 = vld [vmem:[#allocation2 + $0x8] sm:$0xff]
    %v100 = vld [vmem:[%s2] sm:$0x1]
    %v102 = vlaneseq
    %v103 = vshrl.u32 %v102, 7
    %v104 = vsub.s32 0, %v103
    %v105 = vrot.slane %v100, %v104
    %v107 = vadd.f32 %v98, %v105
    %v108 = vadd.f32 %v99, %v105
    %v109 = vmax.f32 %v107, 0.0
    %v110 = vmax.f32 %v108, 0.0
    %v111 = vpack.c.bf16 %v110, %v109
    %v113 = vunpack.c.l.b16 %v111
    %v114 = vunpack.c.h.b16 %v111
    %v115 = vpack.c.b16 %v113, %v113
    %v116 = vpack.c.b16 %v114, %v114
    %vm119 = vcmask 519168
    %120 = vst.msk [vmem:[%s3] sm:$0xf] %vm119, %v115
    %121 = vst.msk [vmem:[%s3 + $0x4] sm:$0xf] %vm119, %v116
  $region21: #{_lambda_.58} parent=0 // pred_fallthru
    _
  // Predicated region
  $region22: #{_lambda_.58} parent=0 // pred_check
    _
  $region23: #{_lambda_.58} parent=0 // pred_check_branch
    %123 = sbr.rel (0) target = $region25
  $region24: #{_lambda_.58} parent=0 // pred_region
    _
  $region25: #{_lambda_.58} parent=0 // pred_fallthru
    _
  // Predicated region
  $region26: #{_lambda_.58} parent=0 // pred_check
    _
  $region27: #{_lambda_.58} parent=0 // pred_check_branch
    %125 = sbr.rel (0) target = $region29
  $region28: #{_lambda_.58} parent=0 // pred_region
    _
  $region29: #{_lambda_.58} parent=0 // pred_fallthru
    _

// kernel: _lambda_.57
$region0: #{_lambda_.57}
  #allocation0 [shape = 'u32[]', space=smem, size = 0x4, offset = 0x4, fixed_abs, tag = 'smem constant byte address 0x4 - core index']
  #allocation1 [shape = 'u32[144,128]{1,0:T(1,128)}', space=vmem, size = 0x12000, scoped, tag = 'internal scratch']
  #allocation2 [shape = 'f32[16,32]{1,0:T(8,128)}', space=vmem, size = 0x2000, scoped, tag = 'scratch operand']
  %s0 = inlined_call_operand.vmem [shape: f32[16,16], index: 0, kind: input, shape index: {}]
  %s1 = inlined_call_operand.vmem [shape: bf16[16,32], index: 1, kind: input, shape index: {}]
  %s2 = inlined_call_operand.vmem [shape: f32[1,32], index: 2, kind: input, shape index: {}]
  %s3 = inlined_call_operand.vmem [shape: f32[16,32], index: 3, kind: output, shape index: {}]
  %s4 = sld [smem:[#allocation0]]
  $region30: #{_lambda_.57} parent=0
    _
  %s6 = ssub.s32 1, %s4
  %s7 = scalar_select 0, %s6, %s4
  // Predicated region
  $region2: #{_lambda_.57} parent=0 // pred_check
    _
  $region3: #{_lambda_.57} parent=0 // pred_check_branch
    %9 = sbr.rel (0) target = $region5
  $region4: #{_lambda_.57} parent=0 // pred_region
    _
  $region5: #{_lambda_.57} parent=0 // pred_fallthru
    _
  // Predicated region
  $region6: #{_lambda_.57} parent=0 // pred_check
    _
  $region7: #{_lambda_.57} parent=0 // pred_check_branch
    %11 = sbr.rel (0) target = $region9
  $region8: #{_lambda_.57} parent=0 // pred_region
    _
  $region9: #{_lambda_.57} parent=0 // pred_fallthru
    _
  // Predicated region
  $region10: #{_lambda_.57} parent=0 // pred_check
    _
  $region11: #{_lambda_.57} parent=0 // pred_check_branch
    %13 = sbr.rel (0) target = $region13
  $region12: #{_lambda_.57} parent=0 // pred_region
    _
  $region13: #{_lambda_.57} parent=0 // pred_fallthru
    _
  %p15 = scmp.eq.s32.totalorder 0, 0
  // Predicated region
  $region14: #{_lambda_.57} parent=0 // pred_check
    %p16 = pneg %p15
  $region15: #{_lambda_.57} parent=0 // pred_check_branch
    %18 = sbr.rel (%p16) target = $region17
  $region16: #{_lambda_.57} parent=0 // pred_region
    %vm19 = vcmask 261120
    %20 = vst.msk [vmem:[#allocation2] sm:$0xff] %vm19, 0.0
    %21 = vst.msk [vmem:[#allocation2 + $0x8] sm:$0xff] %vm19, 0.0
  $region17: #{_lambda_.57} parent=0 // pred_fallthru
    _
  %v22 = vld [vmem:[%s0] sm:$0xff]
  %v23 = vld [vmem:[%s0 + $0x8] sm:$0xff]
  %v24 = vld [vmem:[#allocation2] sm:$0xff]
  %v25 = vld [vmem:[#allocation2 + $0x8] sm:$0xff]
  %v26 = vpack.c.bf16 %v23, %v22
  %v27 = vld [vmem:[%s1] sm:$0xf]
  %v28 = vld [vmem:[%s1 + $0x4] sm:$0xf]
  %v31 = vunpack.c.l.b16 %v27
  %v32 = vunpack.c.l.b16 %v28
  %v33 = vpack.c.b16 %v32, %v31
  %vm35 = vcmask 130048
  %v37 = vsel %vm35, %v26, 0
  %39 = vmatprep.subr.bf16.mxu0 0
  %40 = vmatpush1.bf16.msra.mxu0 0
  %41 = vmatprep.subr.bf16.mxu0 0
  %42 = vmatpush1.bf16.msra.mxu0 0
  %43 = vmatprep.subr.bf16.mxu0 0
  %44 = vmatpush1.bf16.msra.mxu0 0
  %45 = vmatprep.subr.bf16.mxu0 0
  %46 = vmatpush1.bf16.msra.mxu0 0
  %47 = vmatprep.subr.bf16.mxu0 0
  %48 = vmatpush1.bf16.msra.mxu0 0
  %49 = vmatprep.subr.bf16.mxu0 0
  %50 = vmatpush1.bf16.msra.mxu0 0
  %51 = vmatprep.subr.bf16.mxu0 0
  %52 = vmatpush1.bf16.msra.mxu0 0
  %53 = vmatprep.subr.bf16.mxu0 0
  %54 = vmatpush1.bf16.msra.mxu0 %v33
  %55 = vmatprep.subr.bf16.mxu0 0
  %56 = vmatpush2.bf16.msra.mxu0 0
  %57 = vmatprep.subr.bf16.mxu0 0
  %58 = vmatpush2.bf16.msra.mxu0 0
  %59 = vmatprep.subr.bf16.mxu0 0
  %60 = vmatpush2.bf16.msra.mxu0 0
  %61 = vmatprep.subr.bf16.mxu0 0
  %62 = vmatpush2.bf16.msra.mxu0 0
  %63 = vmatprep.subr.bf16.mxu0 0
  %64 = vmatpush2.bf16.msra.mxu0 0
  %65 = vmatprep.subr.bf16.mxu0 0
  %66 = vmatpush2.bf16.msra.mxu0 0
  %67 = vmatprep.subr.bf16.mxu0 0
  %68 = vmatpush2.bf16.msra.mxu0 0
  %69 = vmatprep.subr.bf16.mxu0 0
  %70 = vmatpush2.bf16.msra.mxu0 0
  %71 = vmatprep.mubr.bf16.mxu0 0
  %72 = vmatmul.mubr.bf16.gmra.mxu0 %v37
  %v73 = vpop.f32.mrf.mxu0
  %v74 = vadd.f32 0.0, %v73
  %v75 = vpop.f32.mrf.mxu0
  %v76 = vpop.f32.mrf.mxu0
  %v77 = vadd.f32 0.0, %v76
  %v78 = vpop.f32.mrf.mxu0
  %79 = vdwg.mxu0
  %v80 = vadd.f32 %v24, %v74
  %v81 = vadd.f32 %v25, %v77
  %vm82 = vcmask 261120
  %83 = vst.msk [vmem:[#allocation2] sm:$0xff] %vm82, %v80
  %84 = vst.msk [vmem:[#allocation2 + $0x8] sm:$0xff] %vm82, %v81
  // Predicated region
  $region18: #{_lambda_.57} parent=0 // pred_check
    %p85 = pneg %p15
  $region19: #{_lambda_.57} parent=0 // pred_check_branch
    %87 = sbr.rel (%p85) target = $region21
  $region20: #{_lambda_.57} parent=0 // pred_region
    %v88 = vld [vmem:[#allocation2] sm:$0xff]
    %v89 = vld [vmem:[#allocation2 + $0x8] sm:$0xff]
    %v90 = vld [vmem:[%s2] sm:$0x1]
    %v92 = vlaneseq
    %v93 = vshrl.u32 %v92, 7
    %v94 = vsub.s32 0, %v93
    %v95 = vrot.slane %v90, %v94
    %v97 = vadd.f32 %v88, %v95
    %v98 = vadd.f32 %v89, %v95
    %99 = vst.msk [vmem:[%s3] sm:$0xff] %vm82, %v97
    %100 = vst.msk [vmem:[%s3 + $0x8] sm:$0xff] %vm82, %v98
  $region21: #{_lambda_.57} parent=0 // pred_fallthru
    _
  // Predicated region
  $region22: #{_lambda_.57} parent=0 // pred_check
    _
  $region23: #{_lambda_.57} parent=0 // pred_check_branch
    %102 = sbr.rel (0) target = $region25
  $region24: #{_lambda_.57} parent=0 // pred_region
    _
  $region25: #{_lambda_.57} parent=0 // pred_fallthru
    _
  // Predicated region
  $region26: #{_lambda_.57} parent=0 // pred_check
    _
  $region27: #{_lambda_.57} parent=0 // pred_check_branch
    %104 = sbr.rel (0) target = $region29
  $region28: #{_lambda_.57} parent=0 // pred_region
    _
  $region29: #{_lambda_.57} parent=0 // pred_fallthru
    _

// kernel: _lambda_.69
$region0: #{_lambda_.69}
  #allocation0 [shape = 'u32[]', space=smem, size = 0x4, offset = 0x4, fixed_abs, tag = 'smem constant byte address 0x4 - core index']
  #allocation1 [shape = 'u32[144,128]{1,0:T(1,128)}', space=vmem, size = 0x12000, scoped, tag = 'internal scratch']
  #allocation2 [shape = 'f32[16,64]{1,0:T(8,128)}', space=vmem, size = 0x2000, scoped, tag = 'scratch operand']
  %s0 = inlined_call_operand.vmem [shape: f32[16,32], index: 0, kind: input, shape index: {}]
  %s1 = inlined_call_operand.vmem [shape: bf16[32,64], index: 1, kind: input, shape index: {}]
  %s2 = inlined_call_operand.vmem [shape: f32[1,64], index: 2, kind: input, shape index: {}]
  %s3 = inlined_call_operand.vmem [shape: bf16[16,64], index: 3, kind: output, shape index: {}]
  %s4 = sld [smem:[#allocation0]]
  $region30: #{_lambda_.69} parent=0
    _
  %s6 = ssub.s32 1, %s4
  %s7 = scalar_select 0, %s6, %s4
  // Predicated region
  $region2: #{_lambda_.69} parent=0 // pred_check
    _
  $region3: #{_lambda_.69} parent=0 // pred_check_branch
    %9 = sbr.rel (0) target = $region5
  $region4: #{_lambda_.69} parent=0 // pred_region
    _
  $region5: #{_lambda_.69} parent=0 // pred_fallthru
    _
  // Predicated region
  $region6: #{_lambda_.69} parent=0 // pred_check
    _
  $region7: #{_lambda_.69} parent=0 // pred_check_branch
    %11 = sbr.rel (0) target = $region9
  $region8: #{_lambda_.69} parent=0 // pred_region
    _
  $region9: #{_lambda_.69} parent=0 // pred_fallthru
    _
  // Predicated region
  $region10: #{_lambda_.69} parent=0 // pred_check
    _
  $region11: #{_lambda_.69} parent=0 // pred_check_branch
    %13 = sbr.rel (0) target = $region13
  $region12: #{_lambda_.69} parent=0 // pred_region
    _
  $region13: #{_lambda_.69} parent=0 // pred_fallthru
    _
  %p15 = scmp.eq.s32.totalorder 0, 0
  // Predicated region
  $region14: #{_lambda_.69} parent=0 // pred_check
    %p16 = pneg %p15
  $region15: #{_lambda_.69} parent=0 // pred_check_branch
    %18 = sbr.rel (%p16) target = $region17
  $region16: #{_lambda_.69} parent=0 // pred_region
    %vm19 = vcmask 523264
    %20 = vst.msk [vmem:[#allocation2] sm:$0xff] %vm19, 0.0
    %21 = vst.msk [vmem:[#allocation2 + $0x8] sm:$0xff] %vm19, 0.0
  $region17: #{_lambda_.69} parent=0 // pred_fallthru
    _
  %v22 = vld [vmem:[%s0] sm:$0xff]
  %v23 = vld [vmem:[%s0 + $0x8] sm:$0xff]
  %v24 = vld [vmem:[#allocation2] sm:$0xff]
  %v25 = vld [vmem:[#allocation2 + $0x8] sm:$0xff]
  %v26 = vpack.c.bf16 %v23, %v22
  %v27 = vld [vmem:[%s1] sm:$0xf]
  %v28 = vld [vmem:[%s1 + $0x4] sm:$0xf]
  %v29 = vld [vmem:[%s1 + $0x8] sm:$0xf]
  %v30 = vld [vmem:[%s1 + $0xc] sm:$0xf]
  %v35 = vunpack.c.l.b16 %v27
  %v36 = vunpack.c.l.b16 %v28
  %v37 = vunpack.c.l.b16 %v29
  %v38 = vunpack.c.l.b16 %v30
  %v39 = vpack.c.b16 %v36, %v35
  %v40 = vpack.c.b16 %v38, %v37
  %vm43 = vcmask 261120
  %v45 = vsel %vm43, %v26, 0
  %47 = vmatprep.subr.bf16.mxu0 0
  %48 = vmatpush1.bf16.msra.mxu0 0
  %49 = vmatprep.subr.bf16.mxu0 0
  %50 = vmatpush1.bf16.msra.mxu0 0
  %51 = vmatprep.subr.bf16.mxu0 0
  %52 = vmatpush1.bf16.msra.mxu0 0
  %53 = vmatprep.subr.bf16.mxu0 0
  %54 = vmatpush1.bf16.msra.mxu0 0
  %55 = vmatprep.subr.bf16.mxu0 0
  %56 = vmatpush1.bf16.msra.mxu0 0
  %57 = vmatprep.subr.bf16.mxu0 0
  %58 = vmatpush1.bf16.msra.mxu0 0
  %59 = vmatprep.subr.bf16.mxu0 0
  %60 = vmatpush1.bf16.msra.mxu0 %v40
  %61 = vmatprep.subr.bf16.mxu0 0
  %62 = vmatpush1.bf16.msra.mxu0 %v39
  %63 = vmatprep.subr.bf16.mxu0 0
  %64 = vmatpush2.bf16.msra.mxu0 0
  %65 = vmatprep.subr.bf16.mxu0 0
  %66 = vmatpush2.bf16.msra.mxu0 0
  %67 = vmatprep.subr.bf16.mxu0 0
  %68 = vmatpush2.bf16.msra.mxu0 0
  %69 = vmatprep.subr.bf16.mxu0 0
  %70 = vmatpush2.bf16.msra.mxu0 0
  %71 = vmatprep.subr.bf16.mxu0 0
  %72 = vmatpush2.bf16.msra.mxu0 0
  %73 = vmatprep.subr.bf16.mxu0 0
  %74 = vmatpush2.bf16.msra.mxu0 0
  %75 = vmatprep.subr.bf16.mxu0 0
  %76 = vmatpush2.bf16.msra.mxu0 0
  %77 = vmatprep.subr.bf16.mxu0 0
  %78 = vmatpush2.bf16.msra.mxu0 0
  %79 = vmatprep.mubr.bf16.mxu0 0
  %80 = vmatmul.mubr.bf16.gmra.mxu0 %v45
  %v81 = vpop.f32.mrf.mxu0
  %v82 = vadd.f32 0.0, %v81
  %v83 = vpop.f32.mrf.mxu0
  %v84 = vpop.f32.mrf.mxu0
  %v85 = vadd.f32 0.0, %v84
  %v86 = vpop.f32.mrf.mxu0
  %87 = vdwg.mxu0
  %v88 = vadd.f32 %v24, %v82
  %v89 = vadd.f32 %v25, %v85
  %vm90 = vcmask 523264
  %91 = vst.msk [vmem:[#allocation2] sm:$0xff] %vm90, %v88
  %92 = vst.msk [vmem:[#allocation2 + $0x8] sm:$0xff] %vm90, %v89
  // Predicated region
  $region18: #{_lambda_.69} parent=0 // pred_check
    %p93 = pneg %p15
  $region19: #{_lambda_.69} parent=0 // pred_check_branch
    %95 = sbr.rel (%p93) target = $region21
  $region20: #{_lambda_.69} parent=0 // pred_region
    %v96 = vld [vmem:[#allocation2] sm:$0xff]
    %v97 = vld [vmem:[#allocation2 + $0x8] sm:$0xff]
    %v98 = vld [vmem:[%s2] sm:$0x1]
    %v100 = vlaneseq
    %v101 = vshrl.u32 %v100, 7
    %v102 = vsub.s32 0, %v101
    %v103 = vrot.slane %v98, %v102
    %v105 = vadd.f32 %v96, %v103
    %v106 = vadd.f32 %v97, %v103
    %v107 = vpack.c.bf16 %v106, %v105
    %v109 = vunpack.c.l.b16 %v107
    %v110 = vunpack.c.h.b16 %v107
    %v111 = vpack.c.b16 %v109, %v109
    %v112 = vpack.c.b16 %v110, %v110
    %vm115 = vcmask 519168
    %116 = vst.msk [vmem:[%s3] sm:$0xf] %vm115, %v111
    %117 = vst.msk [vmem:[%s3 + $0x4] sm:$0xf] %vm115, %v112
  $region21: #{_lambda_.69} parent=0 // pred_fallthru
    _
  // Predicated region
  $region22: #{_lambda_.69} parent=0 // pred_check
    _
  $region23: #{_lambda_.69} parent=0 // pred_check_branch
    %119 = sbr.rel (0) target = $region25
  $region24: #{_lambda_.69} parent=0 // pred_region
    _
  $region25: #{_lambda_.69} parent=0 // pred_fallthru
    _
  // Predicated region
  $region26: #{_lambda_.69} parent=0 // pred_check
    _
  $region27: #{_lambda_.69} parent=0 // pred_check_branch
    %121 = sbr.rel (0) target = $region29
  $region28: #{_lambda_.69} parent=0 // pred_region
    _
  $region29: #{_lambda_.69} parent=0 // pred_fallthru
    _

// kernel: _lambda_.41
$region0: #{_lambda_.41}
  #allocation0 [shape = 'u32[]', space=smem, size = 0x4, offset = 0x4, fixed_abs, tag = 'smem constant byte address 0x4 - core index']
  #allocation1 [shape = 'u32[144,128]{1,0:T(1,128)}', space=vmem, size = 0x12000, scoped, tag = 'internal scratch']
  #allocation2 [shape = 'f32[16,32]{1,0:T(8,128)}', space=vmem, size = 0x2000, scoped, tag = 'scratch operand']
  %s0 = inlined_call_operand.vmem [shape: f32[16,32], index: 0, kind: input, shape index: {}]
  %s1 = inlined_call_operand.vmem [shape: bf16[32,32], index: 1, kind: input, shape index: {}]
  %s2 = inlined_call_operand.vmem [shape: f32[1,32], index: 2, kind: input, shape index: {}]
  %s3 = inlined_call_operand.vmem [shape: bf16[16,32], index: 3, kind: output, shape index: {}]
  %s4 = sld [smem:[#allocation0]]
  $region30: #{_lambda_.41} parent=0
    _
  %s6 = ssub.s32 1, %s4
  %s7 = scalar_select 0, %s6, %s4
  // Predicated region
  $region2: #{_lambda_.41} parent=0 // pred_check
    _
  $region3: #{_lambda_.41} parent=0 // pred_check_branch
    %9 = sbr.rel (0) target = $region5
  $region4: #{_lambda_.41} parent=0 // pred_region
    _
  $region5: #{_lambda_.41} parent=0 // pred_fallthru
    _
  // Predicated region
  $region6: #{_lambda_.41} parent=0 // pred_check
    _
  $region7: #{_lambda_.41} parent=0 // pred_check_branch
    %11 = sbr.rel (0) target = $region9
  $region8: #{_lambda_.41} parent=0 // pred_region
    _
  $region9: #{_lambda_.41} parent=0 // pred_fallthru
    _
  // Predicated region
  $region10: #{_lambda_.41} parent=0 // pred_check
    _
  $region11: #{_lambda_.41} parent=0 // pred_check_branch
    %13 = sbr.rel (0) target = $region13
  $region12: #{_lambda_.41} parent=0 // pred_region
    _
  $region13: #{_lambda_.41} parent=0 // pred_fallthru
    _
  %p15 = scmp.eq.s32.totalorder 0, 0
  // Predicated region
  $region14: #{_lambda_.41} parent=0 // pred_check
    %p16 = pneg %p15
  $region15: #{_lambda_.41} parent=0 // pred_check_branch
    %18 = sbr.rel (%p16) target = $region17
  $region16: #{_lambda_.41} parent=0 // pred_region
    %vm19 = vcmask 261120
    %20 = vst.msk [vmem:[#allocation2] sm:$0xff] %vm19, 0.0
    %21 = vst.msk [vmem:[#allocation2 + $0x8] sm:$0xff] %vm19, 0.0
  $region17: #{_lambda_.41} parent=0 // pred_fallthru
    _
  %v22 = vld [vmem:[%s0] sm:$0xff]
  %v23 = vld [vmem:[%s0 + $0x8] sm:$0xff]
  %v24 = vld [vmem:[#allocation2] sm:$0xff]
  %v25 = vld [vmem:[#allocation2 + $0x8] sm:$0xff]
  %v26 = vpack.c.bf16 %v23, %v22
  %v27 = vld [vmem:[%s1] sm:$0xf]
  %v28 = vld [vmem:[%s1 + $0x4] sm:$0xf]
  %v29 = vld [vmem:[%s1 + $0x8] sm:$0xf]
  %v30 = vld [vmem:[%s1 + $0xc] sm:$0xf]
  %v35 = vunpack.c.l.b16 %v27
  %v36 = vunpack.c.l.b16 %v28
  %v37 = vunpack.c.l.b16 %v29
  %v38 = vunpack.c.l.b16 %v30
  %v39 = vpack.c.b16 %v36, %v35
  %v40 = vpack.c.b16 %v38, %v37
  %vm43 = vcmask 261120
  %v45 = vsel %vm43, %v26, 0
  %47 = vmatprep.subr.bf16.mxu0 0
  %48 = vmatpush1.bf16.msra.mxu0 0
  %49 = vmatprep.subr.bf16.mxu0 0
  %50 = vmatpush1.bf16.msra.mxu0 0
  %51 = vmatprep.subr.bf16.mxu0 0
  %52 = vmatpush1.bf16.msra.mxu0 0
  %53 = vmatprep.subr.bf16.mxu0 0
  %54 = vmatpush1.bf16.msra.mxu0 0
  %55 = vmatprep.subr.bf16.mxu0 0
  %56 = vmatpush1.bf16.msra.mxu0 0
  %57 = vmatprep.subr.bf16.mxu0 0
  %58 = vmatpush1.bf16.msra.mxu0 0
  %59 = vmatprep.subr.bf16.mxu0 0
  %60 = vmatpush1.bf16.msra.mxu0 %v40
  %61 = vmatprep.subr.bf16.mxu0 0
  %62 = vmatpush1.bf16.msra.mxu0 %v39
  %63 = vmatprep.subr.bf16.mxu0 0
  %64 = vmatpush2.bf16.msra.mxu0 0
  %65 = vmatprep.subr.bf16.mxu0 0
  %66 = vmatpush2.bf16.msra.mxu0 0
  %67 = vmatprep.subr.bf16.mxu0 0
  %68 = vmatpush2.bf16.msra.mxu0 0
  %69 = vmatprep.subr.bf16.mxu0 0
  %70 = vmatpush2.bf16.msra.mxu0 0
  %71 = vmatprep.subr.bf16.mxu0 0
  %72 = vmatpush2.bf16.msra.mxu0 0
  %73 = vmatprep.subr.bf16.mxu0 0
  %74 = vmatpush2.bf16.msra.mxu0 0
  %75 = vmatprep.subr.bf16.mxu0 0
  %76 = vmatpush2.bf16.msra.mxu0 0
  %77 = vmatprep.subr.bf16.mxu0 0
  %78 = vmatpush2.bf16.msra.mxu0 0
  %79 = vmatprep.mubr.bf16.mxu0 0
  %80 = vmatmul.mubr.bf16.gmra.mxu0 %v45
  %v81 = vpop.f32.mrf.mxu0
  %v82 = vadd.f32 0.0, %v81
  %v83 = vpop.f32.mrf.mxu0
  %v84 = vpop.f32.mrf.mxu0
  %v85 = vadd.f32 0.0, %v84
  %v86 = vpop.f32.mrf.mxu0
  %87 = vdwg.mxu0
  %v88 = vadd.f32 %v24, %v82
  %v89 = vadd.f32 %v25, %v85
  %90 = vst.msk [vmem:[#allocation2] sm:$0xff] %vm43, %v88
  %91 = vst.msk [vmem:[#allocation2 + $0x8] sm:$0xff] %vm43, %v89
  // Predicated region
  $region18: #{_lambda_.41} parent=0 // pred_check
    %p92 = pneg %p15
  $region19: #{_lambda_.41} parent=0 // pred_check_branch
    %94 = sbr.rel (%p92) target = $region21
  $region20: #{_lambda_.41} parent=0 // pred_region
    %v95 = vld [vmem:[#allocation2] sm:$0xff]
    %v96 = vld [vmem:[#allocation2 + $0x8] sm:$0xff]
    %v97 = vld [vmem:[%s2] sm:$0x1]
    %v99 = vlaneseq
    %v100 = vshrl.u32 %v99, 7
    %v101 = vsub.s32 0, %v100
    %v102 = vrot.slane %v97, %v101
    %v104 = vadd.f32 %v95, %v102
    %v105 = vadd.f32 %v96, %v102
    %v106 = vpack.c.bf16 %v105, %v104
    %v108 = vunpack.c.l.b16 %v106
    %v109 = vunpack.c.h.b16 %v106
    %v110 = vpack.c.b16 %v108, %v108
    %v111 = vpack.c.b16 %v109, %v109
    %vm114 = vcmask 257024
    %115 = vst.msk [vmem:[%s3] sm:$0xf] %vm114, %v110
    %116 = vst.msk [vmem:[%s3 + $0x4] sm:$0xf] %vm114, %v111
  $region21: #{_lambda_.41} parent=0 // pred_fallthru
    _
  // Predicated region
  $region22: #{_lambda_.41} parent=0 // pred_check
    _
  $region23: #{_lambda_.41} parent=0 // pred_check_branch
    %118 = sbr.rel (0) target = $region25
  $region24: #{_lambda_.41} parent=0 // pred_region
    _
  $region25: #{_lambda_.41} parent=0 // pred_fallthru
    _
  // Predicated region
  $region26: #{_lambda_.41} parent=0 // pred_check
    _
  $region27: #{_lambda_.41} parent=0 // pred_check_branch
    %120 = sbr.rel (0) target = $region29
  $region28: #{_lambda_.41} parent=0 // pred_region
    _
  $region29: #{_lambda_.41} parent=0 // pred_fallthru
    _

// kernel: _lambda_.75
$region0: #{_lambda_.75}
  #allocation0 [shape = 'u32[]', space=smem, size = 0x4, offset = 0x4, fixed_abs, tag = 'smem constant byte address 0x4 - core index']
  #allocation1 [shape = 'u32[144,128]{1,0:T(1,128)}', space=vmem, size = 0x12000, scoped, tag = 'internal scratch']
  #allocation2 [shape = 'f32[16,32]{1,0:T(8,128)}', space=vmem, size = 0x2000, scoped, tag = 'scratch operand']
  %s0 = inlined_call_operand.vmem [shape: f32[16,32], index: 0, kind: input, shape index: {}]
  %s1 = inlined_call_operand.vmem [shape: bf16[32,32], index: 1, kind: input, shape index: {}]
  %s2 = inlined_call_operand.vmem [shape: f32[1,32], index: 2, kind: input, shape index: {}]
  %s3 = inlined_call_operand.hbm [shape: f32[16,32], index: 3, kind: output, shape index: {}]
  %s4 = sld [smem:[#allocation0]]
  $region30: #{_lambda_.75} parent=0
    _
  %s6 = ssub.s32 1, %s4
  %s7 = scalar_select 0, %s6, %s4
  $region1: #{_lambda_.75} parent=0
    #allocation3 [shape = 'u8[8192]{0}', space=vmem, size = 0x2000, scoped, tag = 'output window, operand 0, single buffered']
    #allocation4 [shape = 's32[1]{0}', space=sflag, size = 0x4, scoped, tag = 'scoped memory for _lambda_.75']
    %8 = vsyncpa [#allocation4], 0
    // Predicated region
    $region2: #{_lambda_.75} parent=1 // pred_check
      _
    $region3: #{_lambda_.75} parent=1 // pred_check_branch
      %10 = sbr.rel (0) target = $region5
    $region4: #{_lambda_.75} parent=1 // pred_region
      _
    $region5: #{_lambda_.75} parent=1 // pred_fallthru
      _
    // Predicated region
    $region6: #{_lambda_.75} parent=1 // pred_check
      _
    $region7: #{_lambda_.75} parent=1 // pred_check_branch
      %12 = sbr.rel (0) target = $region9
    $region8: #{_lambda_.75} parent=1 // pred_region
      _
    $region9: #{_lambda_.75} parent=1 // pred_fallthru
      _
    // Predicated region
    $region10: #{_lambda_.75} parent=1 // pred_check
      _
    $region11: #{_lambda_.75} parent=1 // pred_check_branch
      %14 = sbr.rel (0) target = $region13
    $region12: #{_lambda_.75} parent=1 // pred_region
      _
    $region13: #{_lambda_.75} parent=1 // pred_fallthru
      _
    %p16 = scmp.eq.s32.totalorder 0, 0
    // Predicated region
    $region14: #{_lambda_.75} parent=1 // pred_check
      %p17 = pneg %p16
    $region15: #{_lambda_.75} parent=1 // pred_check_branch
      %19 = sbr.rel (%p17) target = $region17
    $region16: #{_lambda_.75} parent=1 // pred_region
      %vm20 = vcmask 261120
      %21 = vst.msk [vmem:[#allocation2] sm:$0xff] %vm20, 0.0
      %22 = vst.msk [vmem:[#allocation2 + $0x8] sm:$0xff] %vm20, 0.0
    $region17: #{_lambda_.75} parent=1 // pred_fallthru
      _
    %v23 = vld [vmem:[%s0] sm:$0xff]
    %v24 = vld [vmem:[%s0 + $0x8] sm:$0xff]
    %v25 = vld [vmem:[#allocation2] sm:$0xff]
    %v26 = vld [vmem:[#allocation2 + $0x8] sm:$0xff]
    %v27 = vpack.c.bf16 %v24, %v23
    %v28 = vld [vmem:[%s1] sm:$0xf]
    %v29 = vld [vmem:[%s1 + $0x4] sm:$0xf]
    %v30 = vld [vmem:[%s1 + $0x8] sm:$0xf]
    %v31 = vld [vmem:[%s1 + $0xc] sm:$0xf]
    %v36 = vunpack.c.l.b16 %v28
    %v37 = vunpack.c.l.b16 %v29
    %v38 = vunpack.c.l.b16 %v30
    %v39 = vunpack.c.l.b16 %v31
    %v40 = vpack.c.b16 %v37, %v36
    %v41 = vpack.c.b16 %v39, %v38
    %vm44 = vcmask 261120
    %v46 = vsel %vm44, %v27, 0
    %48 = vmatprep.subr.bf16.mxu0 0
    %49 = vmatpush1.bf16.msra.mxu0 0
    %50 = vmatprep.subr.bf16.mxu0 0
    %51 = vmatpush1.bf16.msra.mxu0 0
    %52 = vmatprep.subr.bf16.mxu0 0
    %53 = vmatpush1.bf16.msra.mxu0 0
    %54 = vmatprep.subr.bf16.mxu0 0
    %55 = vmatpush1.bf16.msra.mxu0 0
    %56 = vmatprep.subr.bf16.mxu0 0
    %57 = vmatpush1.bf16.msra.mxu0 0
    %58 = vmatprep.subr.bf16.mxu0 0
    %59 = vmatpush1.bf16.msra.mxu0 0
    %60 = vmatprep.subr.bf16.mxu0 0
    %61 = vmatpush1.bf16.msra.mxu0 %v41
    %62 = vmatprep.subr.bf16.mxu0 0
    %63 = vmatpush1.bf16.msra.mxu0 %v40
    %64 = vmatprep.subr.bf16.mxu0 0
    %65 = vmatpush2.bf16.msra.mxu0 0
    %66 = vmatprep.subr.bf16.mxu0 0
    %67 = vmatpush2.bf16.msra.mxu0 0
    %68 = vmatprep.subr.bf16.mxu0 0
    %69 = vmatpush2.bf16.msra.mxu0 0
    %70 = vmatprep.subr.bf16.mxu0 0
    %71 = vmatpush2.bf16.msra.mxu0 0
    %72 = vmatprep.subr.bf16.mxu0 0
    %73 = vmatpush2.bf16.msra.mxu0 0
    %74 = vmatprep.subr.bf16.mxu0 0
    %75 = vmatpush2.bf16.msra.mxu0 0
    %76 = vmatprep.subr.bf16.mxu0 0
    %77 = vmatpush2.bf16.msra.mxu0 0
    %78 = vmatprep.subr.bf16.mxu0 0
    %79 = vmatpush2.bf16.msra.mxu0 0
    %80 = vmatprep.mubr.bf16.mxu0 0
    %81 = vmatmul.mubr.bf16.gmra.mxu0 %v46
    %v82 = vpop.f32.mrf.mxu0
    %v83 = vadd.f32 0.0, %v82
    %v84 = vpop.f32.mrf.mxu0
    %v85 = vpop.f32.mrf.mxu0
    %v86 = vadd.f32 0.0, %v85
    %v87 = vpop.f32.mrf.mxu0
    %88 = vdwg.mxu0
    %v89 = vadd.f32 %v25, %v83
    %v90 = vadd.f32 %v26, %v86
    %91 = vst.msk [vmem:[#allocation2] sm:$0xff] %vm44, %v89
    %92 = vst.msk [vmem:[#allocation2 + $0x8] sm:$0xff] %vm44, %v90
    // Predicated region
    $region18: #{_lambda_.75} parent=1 // pred_check
      %p93 = pneg %p16
    $region19: #{_lambda_.75} parent=1 // pred_check_branch
      %95 = sbr.rel (%p93) target = $region21
    $region20: #{_lambda_.75} parent=1 // pred_region
      %v96 = vld [vmem:[#allocation2] sm:$0xff]
      %v97 = vld [vmem:[#allocation2 + $0x8] sm:$0xff]
      %v98 = vld [vmem:[%s2] sm:$0x1]
      %v100 = vlaneseq
      %v101 = vshrl.u32 %v100, 7
      %v102 = vsub.s32 0, %v101
      %v103 = vrot.slane %v98, %v102
      %v105 = vadd.f32 %v96, %v103
      %v106 = vadd.f32 %v97, %v103
      %107 = vst.msk [vmem:[#allocation3] sm:$0xff] %vm44, %v105
      %108 = vst.msk [vmem:[#allocation3 + $0x8] sm:$0xff] %vm44, %v106
    $region21: #{_lambda_.75} parent=1 // pred_fallthru
      _
    // Predicated region
    $region22: #{_lambda_.75} parent=1 // pred_check
      _
    $region23: #{_lambda_.75} parent=1 // pred_check_branch
      %110 = sbr.rel (0) target = $region25
    $region24: #{_lambda_.75} parent=1 // pred_region
      %s112 = ssub.s32 256, 256
      %113 = vsyncadd [#allocation4], %s112
      %s114 = sshll.u32 [#allocation3], 4
      %s115 = int_to_ptr.vmem [resolvable:$true] %s114
      %120 = dma.vmem_to_hbm [thread:$0]  %s115, 256, %s3, [#allocation4], 128, 128, 8
    $region25: #{_lambda_.75} parent=1 // pred_fallthru
      _
    // Predicated region
    $region26: #{_lambda_.75} parent=1 // pred_check
      _
    $region27: #{_lambda_.75} parent=1 // pred_check_branch
      %122 = sbr.rel (0) target = $region29
    $region28: #{_lambda_.75} parent=1 // pred_region
      %123 = dma.done [#allocation4], 256
    $region29: #{_lambda_.75} parent=1 // pred_fallthru
      _
    %124 = vsyncpa [#allocation4], 1

// kernel: _lambda_.61
$region0: #{_lambda_.61}
  #allocation0 [shape = 'u32[]', space=smem, size = 0x4, offset = 0x4, fixed_abs, tag = 'smem constant byte address 0x4 - core index']
  #allocation1 [shape = 'u32[144,128]{1,0:T(1,128)}', space=vmem, size = 0x12000, scoped, tag = 'internal scratch']
  %s0 = inlined_call_operand.vmem [shape: bf16[2,8,32], index: 0, kind: input, shape index: {}]
  %s1 = inlined_call_operand.vmem [shape: bf16[2,8,64], index: 1, kind: input, shape index: {}]
  %s2 = inlined_call_operand.vmem [shape: f32[2,8,8], index: 2, kind: input, shape index: {}]
  %s3 = inlined_call_operand.vmem [shape: bf16[2,8,32], index: 3, kind: output, shape index: {}]
  %s4 = sld [smem:[#allocation0]]
  $region45: #{_lambda_.61} parent=0
    _
  %s6 = ssub.s32 1, %s4
  %s7 = scalar_select 0, %s6, %s4
  loop: start=0, step=1, limit=4
  $region2: #{_lambda_.61} parent=0 // loop_pre_header
    _
  $region3: #{_lambda_.61} parent=0 // loop_header
    %s9 = sphi 0, %s13
    %p10 = scmp.ge.s32.totalorder %s9, 4
    %s16 = sphi 0, %s28
    %s17 = sphi 0, %s24
    %s18 = sphi 0, %s16
    %s19 = sphi 0, %s17
    %s20 = sphi 0, %s18
    %s21 = sphi 0, %s19
    %s33 = sphi 0, %s35
    %s36 = sphi 0, %s33
    %s37 = sphi 0, %s36
    %s53 = sphi 0, %s37
    %s59 = sphi 0, %s61
    %s62 = sphi 0, %s59
    %s63 = sphi 0, %s62
    %s79 = sphi 0, %s63
    %s87 = sphi 0, %s89
    %s90 = sphi 0, %s87
    %s91 = sphi 0, %s90
    %s107 = sphi 0, %s91
    %s115 = sphi 0, %s117
    %s118 = sphi 0, %s115
    %s119 = sphi 0, %s118
    %s135 = sphi 0, %s119
  $region4: #{_lambda_.61} parent=0 // loop_header_branch
    %12 = sbr.rel (%p10) target = $region8
  $region5: #{_lambda_.61} parent=0 // loop_body
    %s14 = ssub.s32 %s9, 1
    %s15 = ssub.s32 %s9, 2
    %s22 = sadd.s32 1, %s17
    %p23 = scmp.ge.s32.totalorder %s22, 1
    %s24 = scalar_select %p23, 0, %s22
    %s25 = sadd.s32 1, %s16
    %s26 = scalar_select %p23, %s25, %s16
    %p27 = scmp.ge.s32.totalorder %s26, 2
    %s28 = scalar_select %p27, 0, %s26
    %s29 = ssub.s32 %s16, %s28
    %s30 = ssub.s32 %s17, %s24
    %s31 = sor.u32 %s29, %s30
    %p32 = scmp.eq.s32.totalorder %s31, 0
    %s34 = sadd.s32 %s33, 1
    %s35 = scalar_select %p32, %s33, %s34
    %p38 = pneg %p32
    %p39 = scmp.eq.s32.totalorder %s9, 1
    %p40 = por %p38, %p39
    %p41 = scmp.ne.s32.totalorder %s33, %s36
    %p42 = scmp.eq.s32.totalorder %s9, 0
    %p43 = por %p41, %p42
    %p44 = scmp.ne.s32.totalorder %s33, %s36
    %p45 = scmp.eq.s32.totalorder %s14, 1
    %p46 = por %p44, %p45
    %p47 = scmp.ne.s32.totalorder %s36, %s37
    %p48 = scmp.eq.s32.totalorder %s14, 0
    %p49 = por %p47, %p48
    %p50 = scmp.ne.s32.totalorder %s36, %s37
    %p51 = scmp.eq.s32.totalorder %s15, 1
    %p52 = por %p50, %p51
    %p54 = scmp.ne.s32.totalorder %s37, %s53
    %p55 = scmp.eq.s32.totalorder %s15, 0
    %p56 = por %p54, %p55
    %s57 = ssub.s32 %s16, %s28
    %p58 = scmp.eq.s32.totalorder %s57, 0
    %s60 = sadd.s32 %s59, 1
    %s61 = scalar_select %p58, %s59, %s60
    %p64 = pneg %p58
    %p65 = scmp.eq.s32.totalorder %s9, 1
    %p66 = por %p64, %p65
    %p67 = scmp.ne.s32.totalorder %s59, %s62
    %p68 = scmp.eq.s32.totalorder %s9, 0
    %p69 = por %p67, %p68
    %p70 = scmp.ne.s32.totalorder %s59, %s62
    %p71 = scmp.eq.s32.totalorder %s14, 1
    %p72 = por %p70, %p71
    %p73 = scmp.ne.s32.totalorder %s62, %s63
    %p74 = scmp.eq.s32.totalorder %s14, 0
    %p75 = por %p73, %p74
    %p76 = scmp.ne.s32.totalorder %s62, %s63
    %p77 = scmp.eq.s32.totalorder %s15, 1
    %p78 = por %p76, %p77
    %p80 = scmp.ne.s32.totalorder %s63, %s79
    %p81 = scmp.eq.s32.totalorder %s15, 0
    %p82 = por %p80, %p81
    %s83 = ssub.s32 %s16, %s28
    %s84 = ssub.s32 %s17, %s24
    %s85 = sor.u32 %s83, %s84
    %p86 = scmp.eq.s32.totalorder %s85, 0
    %s88 = sadd.s32 %s87, 1
    %s89 = scalar_select %p86, %s87, %s88
    %p92 = pneg %p86
    %p93 = scmp.eq.s32.totalorder %s9, 1
    %p94 = por %p92, %p93
    %p95 = scmp.ne.s32.totalorder %s87, %s90
    %p96 = scmp.eq.s32.totalorder %s9, 0
    %p97 = por %p95, %p96
    %p98 = scmp.ne.s32.totalorder %s87, %s90
    %p99 = scmp.eq.s32.totalorder %s14, 1
    %p100 = por %p98, %p99
    %p101 = scmp.ne.s32.totalorder %s90, %s91
    %p102 = scmp.eq.s32.totalorder %s14, 0
    %p103 = por %p101, %p102
    %p104 = scmp.ne.s32.totalorder %s90, %s91
    %p105 = scmp.eq.s32.totalorder %s15, 1
    %p106 = por %p104, %p105
    %p108 = scmp.ne.s32.totalorder %s91, %s107
    %p109 = scmp.eq.s32.totalorder %s15, 0
    %p110 = por %p108, %p109
    %s111 = ssub.s32 %s16, %s28
    %s112 = ssub.s32 %s17, %s24
    %s113 = sor.u32 %s111, %s112
    %p114 = scmp.eq.s32.totalorder %s113, 0
    %s116 = sadd.s32 %s115, 1
    %s117 = scalar_select %p114, %s115, %s116
    %p120 = pneg %p114
    %p121 = scmp.eq.s32.totalorder %s9, 1
    %p122 = por %p120, %p121
    %p123 = scmp.ne.s32.totalorder %s115, %s118
    %p124 = scmp.eq.s32.totalorder %s9, 0
    %p125 = por %p123, %p124
    %p126 = scmp.ne.s32.totalorder %s115, %s118
    %p127 = scmp.eq.s32.totalorder %s14, 1
    %p128 = por %p126, %p127
    %p129 = scmp.ne.s32.totalorder %s118, %s119
    %p130 = scmp.eq.s32.totalorder %s14, 0
    %p131 = por %p129, %p130
    %p132 = scmp.ne.s32.totalorder %s118, %s119
    %p133 = scmp.eq.s32.totalorder %s15, 1
    %p134 = por %p132, %p133
    %p136 = scmp.ne.s32.totalorder %s119, %s135
    %p137 = scmp.eq.s32.totalorder %s15, 0
    %p138 = por %p136, %p137
    %p139 = scmp.le.s32.totalorder 1, %s9
    %p140 = scmp.lt.s32.totalorder %s9, 3
    %p141 = pnand %p139, %p140
    %p142 = pneg %p141
    // Predicated region
    $region9: #{_lambda_.61} parent=5 // pred_check
      _
    $region10: #{_lambda_.61} parent=5 // pred_check_branch
      %144 = sbr.rel (%p141) target = $region12
    $region11: #{_lambda_.61} parent=5 // pred_region
      %s145 = ssub.s32 %s9, 1
    $region12: #{_lambda_.61} parent=5 // pred_fallthru
      _
    %p146 = scmp.lt.s32.totalorder %s9, 2
    // Predicated region
    $region13: #{_lambda_.61} parent=5 // pred_check
      %p147 = pneg %p146
    $region14: #{_lambda_.61} parent=5 // pred_check_branch
      %149 = sbr.rel (%p147) target = $region16
    $region15: #{_lambda_.61} parent=5 // pred_region
      // Predicated region
      $region17: #{_lambda_.61} parent=15 // pred_check
        %p150 = pneg %p43
      $region18: #{_lambda_.61} parent=15 // pred_check_branch
        %152 = sbr.rel (%p150) target = $region20
      $region19: #{_lambda_.61} parent=15 // pred_region
        %p153 = scmp.lt.s32.totalorder %s16, 1
        %s154 = scalar_select %p153, %s16, 1
        %p155 = scmp.lt.s32.totalorder %s17, 0
        %s156 = scalar_select %p155, %s17, 0
        %s157 = sadd.s32 %s156, %s154
        %s158 = smul.addr %s157, 4
        %s159 = scalar_lea.vmem %s0, %s158
      $region20: #{_lambda_.61} parent=15 // pred_fallthru
        _
      // Predicated region
      $region21: #{_lambda_.61} parent=15 // pred_check
        %p160 = pneg %p69
      $region22: #{_lambda_.61} parent=15 // pred_check_branch
        %162 = sbr.rel (%p160) target = $region24
      $region23: #{_lambda_.61} parent=15 // pred_region
        %p163 = scmp.lt.s32.totalorder %s16, 1
        %s164 = scalar_select %p163, %s16, 1
        %s165 = smul.addr %s164, 4
        %s166 = scalar_lea.vmem %s1, %s165
      $region24: #{_lambda_.61} parent=15 // pred_fallthru
        _
      // Predicated region
      $region25: #{_lambda_.61} parent=15 // pred_check
        %p167 = pneg %p97
      $region26: #{_lambda_.61} parent=15 // pred_check_branch
        %169 = sbr.rel (%p167) target = $region28
      $region27: #{_lambda_.61} parent=15 // pred_region
        %p170 = scmp.lt.s32.totalorder %s16, 1
        %s171 = scalar_select %p170, %s16, 1
        %p172 = scmp.lt.s32.totalorder %s17, 0
        %s173 = scalar_select %p172, %s17, 0
        %s174 = sadd.s32 %s173, %s171
        %s175 = smul.addr %s174, 8
        %s176 = scalar_lea.vmem %s2, %s175
      $region28: #{_lambda_.61} parent=15 // pred_fallthru
        _
    $region16: #{_lambda_.61} parent=5 // pred_fallthru
      _
    %p177 = scmp.le.s32.totalorder 1, %s9
    %p178 = scmp.lt.s32.totalorder %s9, 3
    %p179 = pnand %p177, %p178
    %p180 = pneg %p179
    // Predicated region
    $region29: #{_lambda_.61} parent=5 // pred_check
      _
    $region30: #{_lambda_.61} parent=5 // pred_check_branch
      %182 = sbr.rel (%p179) target = $region32
    $region31: #{_lambda_.61} parent=5 // pred_region
      %s183 = ssub.s32 %s9, 1
      %p184 = scmp.lt.s32.totalorder %s18, 1
      %s185 = scalar_select %p184, %s18, 1
      %p186 = scmp.lt.s32.totalorder %s19, 0
      %s187 = scalar_select %p186, %s19, 0
      %s188 = sadd.s32 %s187, %s185
      %s189 = smul.addr %s188, 4
      %s190 = scalar_lea.vmem %s0, %s189
      %p191 = pneg %p49
      %p192 = pneg %p46
      %p193 = scmp.lt.s32.totalorder %s18, 1
      %s194 = scalar_select %p193, %s18, 1
      %s195 = smul.addr %s194, 4
      %s196 = scalar_lea.vmem %s1, %s195
      %p197 = pneg %p75
      %p198 = pneg %p72
      %p199 = scmp.lt.s32.totalorder %s18, 1
      %s200 = scalar_select %p199, %s18, 1
      %p201 = scmp.lt.s32.totalorder %s19, 0
      %s202 = scalar_select %p201, %s19, 0
      %s203 = sadd.s32 %s202, %s200
      %s204 = smul.addr %s203, 8
      %s205 = scalar_lea.vmem %s2, %s204
      %p206 = pneg %p103
      %p207 = pneg %p100
      %p208 = pneg %p131
      %p209 = pneg %p128
      %p210 = scmp.lt.s32.totalorder %s18, 1
      %s211 = scalar_select %p210, %s18, 1
      %p212 = scmp.lt.s32.totalorder %s19, 0
      %s213 = scalar_select %p212, %s19, 0
      %s214 = sadd.s32 %s213, %s211
      %s215 = smul.addr %s214, 4
      %s216 = scalar_lea.vmem %s3, %s215
      %p217 = scmp.lt.s32.totalorder %s18, 1
      %s218 = scalar_select %p217, %s18, 1
      %p219 = scmp.lt.s32.totalorder %s19, 0
      %s220 = scalar_select %p219, %s19, 0
      %s221 = sadd.s32 %s220, %s218
      %s222 = smul.addr %s221, 4
      %s223 = scalar_lea.vmem %s0, %s222
      %p224 = scmp.lt.s32.totalorder %s18, 1
      %s225 = scalar_select %p224, %s18, 1
      %s226 = smul.addr %s225, 4
      %s227 = scalar_lea.vmem %s1, %s226
      %p228 = scmp.lt.s32.totalorder %s18, 1
      %s229 = scalar_select %p228, %s18, 1
      %p230 = scmp.lt.s32.totalorder %s19, 0
      %s231 = scalar_select %p230, %s19, 0
      %s232 = sadd.s32 %s231, %s229
      %s233 = smul.addr %s232, 8
      %s234 = scalar_lea.vmem %s2, %s233
      %p235 = scmp.lt.s32.totalorder %s18, 1
      %s236 = scalar_select %p235, %s18, 1
      %p237 = scmp.lt.s32.totalorder %s19, 0
      %s238 = scalar_select %p237, %s19, 0
      %s239 = sadd.s32 %s238, %s236
      %s240 = smul.addr %s239, 4
      %s241 = scalar_lea.vmem %s3, %s240
      %v243 = vld [vmem:[%s223] sm:$0xf]
      %v244 = vld [vmem:[%s227] sm:$0xf]
      %v245 = vld [vmem:[%s234] sm:$0xff]
      %vm246 = vcmask 64512
      %v248 = vsel %vm246, %v243, 0
      %v251 = vsel %vm246, %v244, 0
      %253 = vmatprep.subr.bf16.mxu0 0
      %254 = vmatpush1.bf16.xpose.msra.mxu0 0
      %255 = vmatprep.subr.bf16.mxu0 0
      %256 = vmatpush1.bf16.xpose.msra.mxu0 0
      %257 = vmatprep.subr.bf16.mxu0 0
      %258 = vmatpush1.bf16.xpose.msra.mxu0 0
      %259 = vmatprep.subr.bf16.mxu0 0
      %260 = vmatpush1.bf16.xpose.msra.mxu0 0
      %261 = vmatprep.subr.bf16.mxu0 0
      %262 = vmatpush1.bf16.xpose.msra.mxu0 0
      %263 = vmatprep.subr.bf16.mxu0 0
      %264 = vmatpush1.bf16.xpose.msra.mxu0 0
      %265 = vmatprep.subr.bf16.mxu0 0
      %266 = vmatpush1.bf16.xpose.msra.mxu0 0
      %267 = vmatprep.subr.bf16.mxu0 0
      %268 = vmatpush1.bf16.xpose.msra.mxu0 %v251
      %269 = vmatprep.subr.bf16.mxu0 0
      %270 = vmatpush2.bf16.xpose.msra.mxu0 0
      %271 = vmatprep.subr.bf16.mxu0 0
      %272 = vmatpush2.bf16.xpose.msra.mxu0 0
      %273 = vmatprep.subr.bf16.mxu0 0
      %274 = vmatpush2.bf16.xpose.msra.mxu0 0
      %275 = vmatprep.subr.bf16.mxu0 0
      %276 = vmatpush2.bf16.xpose.msra.mxu0 0
      %277 = vmatprep.subr.bf16.mxu0 0
      %278 = vmatpush2.bf16.xpose.msra.mxu0 0
      %279 = vmatprep.subr.bf16.mxu0 0
      %280 = vmatpush2.bf16.xpose.msra.mxu0 0
      %281 = vmatprep.subr.bf16.mxu0 0
      %282 = vmatpush2.bf16.xpose.msra.mxu0 0
      %283 = vmatprep.subr.bf16.mxu0 0
      %284 = vmatpush2.bf16.xpose.msra.mxu0 0
      %285 = vmatprep.mubr.bf16.mxu0 0
      %286 = vmatmul.mubr.bf16.gmra.mxu0 %v248
      %v287 = vpop.f32.mrf.mxu0
      %v288 = vadd.f32 0.0, %v287
      %v289 = vpop.f32.mrf.mxu0
      %v290 = vpop.f32.mrf.mxu0
      %v291 = vpop.f32.mrf.mxu0
      %292 = vdwg.mxu0
      %v293 = vmul.f32 %v288, 0.35355338
      %v294 = vadd.f32 %v293, %v245
      %v295 = vsel %vm246, %v294, -inf
      %296 = vmax.xlane.f32.xlu0 %v295
      %v297 = vpop.xlane.xlu0 %296
      %v298 = vsub.f32 %v294, %v297
      %v299 = vmul.f32 %v298, 1.442695
      %v300 = vpow.pop %v299
      %v301 = vsel %vm246, %v300, 0.0
      %302 = vadd.xlane.f32.xlu0 %v301
      %v303 = vpop.xlane.xlu0 %302
      %v304 = vrcp.pop %v303
      %v305 = vmul.f32 %v300, %v304
      %v306 = vpack.c.bf16 %v305, %v305
      %v308 = vunpack.c.l.b16 %v244
      %v309 = vpack.c.b16 %v308, %v308
      %310 = vrot.lane.b32.xlu0 %v309, 96
      %v311 = vpop.permute.xlu0 %310
      %v313 = vsel %vm246, %v306, 0
      %vm315 = vcmask 1043456
      %v317 = vsel %vm315, %v311, 0
      %319 = vmatprep.subr.bf16.mxu0 0
      %320 = vmatpush1.bf16.msra.mxu0 0
      %321 = vmatprep.subr.bf16.mxu0 0
      %322 = vmatpush1.bf16.msra.mxu0 0
      %323 = vmatprep.subr.bf16.mxu0 0
      %324 = vmatpush1.bf16.msra.mxu0 0
      %325 = vmatprep.subr.bf16.mxu0 0
      %326 = vmatpush1.bf16.msra.mxu0 0
      %327 = vmatprep.subr.bf16.mxu0 0
      %328 = vmatpush1.bf16.msra.mxu0 0
      %329 = vmatprep.subr.bf16.mxu0 0
      %330 = vmatpush1.bf16.msra.mxu0 0
      %331 = vmatprep.subr.bf16.mxu0 0
      %332 = vmatpush1.bf16.msra.mxu0 0
      %333 = vmatprep.subr.bf16.mxu0 0
      %334 = vmatpush1.bf16.msra.mxu0 %v317
      %335 = vmatprep.subr.bf16.mxu0 0
      %336 = vmatpush2.bf16.msra.mxu0 0
      %337 = vmatprep.subr.bf16.mxu0 0
      %338 = vmatpush2.bf16.msra.mxu0 0
      %339 = vmatprep.subr.bf16.mxu0 0
      %340 = vmatpush2.bf16.msra.mxu0 0
      %341 = vmatprep.subr.bf16.mxu0 0
      %342 = vmatpush2.bf16.msra.mxu0 0
      %343 = vmatprep.subr.bf16.mxu0 0
      %344 = vmatpush2.bf16.msra.mxu0 0
      %345 = vmatprep.subr.bf16.mxu0 0
      %346 = vmatpush2.bf16.msra.mxu0 0
      %347 = vmatprep.subr.bf16.mxu0 0
      %348 = vmatpush2.bf16.msra.mxu0 0
      %349 = vmatprep.subr.bf16.mxu0 0
      %350 = vmatpush2.bf16.msra.mxu0 0
      %351 = vmatprep.mubr.bf16.mxu0 0
      %352 = vmatmul.mubr.bf16.gmra.mxu0 %v313
      %v353 = vpop.f32.mrf.mxu0
      %v354 = vadd.f32 0.0, %v353
      %v355 = vpop.f32.mrf.mxu0
      %v356 = vpop.f32.mrf.mxu0
      %v357 = vpop.f32.mrf.mxu0
      %358 = vdwg.mxu0
      %v359 = vpack.c.bf16 %v354, %v354
      %vm360 = vcmask 60416
      %361 = vst.msk [vmem:[%s241] sm:$0xf] %vm360, %v359
      %v363 = vunpack.c.l.b16 %v243
      %v364 = vpack.c.b16 %v363, %v363
      %365 = vrot.lane.b32.xlu0 %v364, 120
      %v366 = vpop.permute.xlu0 %365
      %367 = vrot.lane.b32.xlu0 %v309, 120
      %v368 = vpop.permute.xlu0 %367
      %v370 = vsel %vm246, %v366, 0
      %v373 = vsel %vm246, %v368, 0
      %375 = vmatprep.subr.bf16.mxu0 0
      %376 = vmatpush1.bf16.xpose.msra.mxu0 0
      %377 = vmatprep.subr.bf16.mxu0 0
      %378 = vmatpush1.bf16.xpose.msra.mxu0 0
      %379 = vmatprep.subr.bf16.mxu0 0
      %380 = vmatpush1.bf16.xpose.msra.mxu0 0
      %381 = vmatprep.subr.bf16.mxu0 0
      %382 = vmatpush1.bf16.xpose.msra.mxu0 0
      %383 = vmatprep.subr.bf16.mxu0 0
      %384 = vmatpush1.bf16.xpose.msra.mxu0 0
      %385 = vmatprep.subr.bf16.mxu0 0
      %386 = vmatpush1.bf16.xpose.msra.mxu0 0
      %387 = vmatprep.subr.bf16.mxu0 0
      %388 = vmatpush1.bf16.xpose.msra.mxu0 0
      %389 = vmatprep.subr.bf16.mxu0 0
      %390 = vmatpush1.bf16.xpose.msra.mxu0 %v373
      %391 = vmatprep.subr.bf16.mxu0 0
      %392 = vmatpush2.bf16.xpose.msra.mxu0 0
      %393 = vmatprep.subr.bf16.mxu0 0
      %394 = vmatpush2.bf16.xpose.msra.mxu0 0
      %395 = vmatprep.subr.bf16.mxu0 0
      %396 = vmatpush2.bf16.xpose.msra.mxu0 0
      %397 = vmatprep.subr.bf16.mxu0 0
      %398 = vmatpush2.bf16.xpose.msra.mxu0 0
      %399 = vmatprep.subr.bf16.mxu0 0
      %400 = vmatpush2.bf16.xpose.msra.mxu0 0
      %401 = vmatprep.subr.bf16.mxu0 0
      %402 = vmatpush2.bf16.xpose.msra.mxu0 0
      %403 = vmatprep.subr.bf16.mxu0 0
      %404 = vmatpush2.bf16.xpose.msra.mxu0 0
      %405 = vmatprep.subr.bf16.mxu0 0
      %406 = vmatpush2.bf16.xpose.msra.mxu0 0
      %407 = vmatprep.mubr.bf16.mxu0 0
      %408 = vmatmul.mubr.bf16.gmra.mxu0 %v370
      %v409 = vpop.f32.mrf.mxu0
      %v410 = vadd.f32 0.0, %v409
      %v411 = vpop.f32.mrf.mxu0
      %v412 = vpop.f32.mrf.mxu0
      %v413 = vpop.f32.mrf.mxu0
      %414 = vdwg.mxu0
      %v415 = vmul.f32 %v410, 0.35355338
      %v416 = vadd.f32 %v415, %v245
      %v417 = vsel %vm246, %v416, -inf
      %418 = vmax.xlane.f32.xlu0 %v417
      %v419 = vpop.xlane.xlu0 %418
      %v420 = vsub.f32 %v416, %v419
      %v421 = vmul.f32 %v420, 1.442695
      %v422 = vpow.pop %v421
      %v423 = vsel %vm246, %v422, 0.0
      %424 = vadd.xlane.f32.xlu0 %v423
      %v425 = vpop.xlane.xlu0 %424
      %v426 = vrcp.pop %v425
      %v427 = vmul.f32 %v422, %v426
      %v428 = vpack.c.bf16 %v427, %v427
      %429 = vrot.lane.b32.xlu0 %v309, 88
      %v430 = vpop.permute.xlu0 %429
      %v432 = vsel %vm246, %v428, 0
      %v435 = vsel %vm315, %v430, 0
      %437 = vmatprep.subr.bf16.mxu0 0
      %438 = vmatpush1.bf16.msra.mxu0 0
      %439 = vmatprep.subr.bf16.mxu0 0
      %440 = vmatpush1.bf16.msra.mxu0 0
      %441 = vmatprep.subr.bf16.mxu0 0
      %442 = vmatpush1.bf16.msra.mxu0 0
      %443 = vmatprep.subr.bf16.mxu0 0
      %444 = vmatpush1.bf16.msra.mxu0 0
      %445 = vmatprep.subr.bf16.mxu0 0
      %446 = vmatpush1.bf16.msra.mxu0 0
      %447 = vmatprep.subr.bf16.mxu0 0
      %448 = vmatpush1.bf16.msra.mxu0 0
      %449 = vmatprep.subr.bf16.mxu0 0
      %450 = vmatpush1.bf16.msra.mxu0 0
      %451 = vmatprep.subr.bf16.mxu0 0
      %452 = vmatpush1.bf16.msra.mxu0 %v435
      %453 = vmatprep.subr.bf16.mxu0 0
      %454 = vmatpush2.bf16.msra.mxu0 0
      %455 = vmatprep.subr.bf16.mxu0 0
      %456 = vmatpush2.bf16.msra.mxu0 0
      %457 = vmatprep.subr.bf16.mxu0 0
      %458 = vmatpush2.bf16.msra.mxu0 0
      %459 = vmatprep.subr.bf16.mxu0 0
      %460 = vmatpush2.bf16.msra.mxu0 0
      %461 = vmatprep.subr.bf16.mxu0 0
      %462 = vmatpush2.bf16.msra.mxu0 0
      %463 = vmatprep.subr.bf16.mxu0 0
      %464 = vmatpush2.bf16.msra.mxu0 0
      %465 = vmatprep.subr.bf16.mxu0 0
      %466 = vmatpush2.bf16.msra.mxu0 0
      %467 = vmatprep.subr.bf16.mxu0 0
      %468 = vmatpush2.bf16.msra.mxu0 0
      %469 = vmatprep.mubr.bf16.mxu0 0
      %470 = vmatmul.mubr.bf16.gmra.mxu0 %v432
      %v471 = vpop.f32.mrf.mxu0
      %v472 = vadd.f32 0.0, %v471
      %v473 = vpop.f32.mrf.mxu0
      %v474 = vpop.f32.mrf.mxu0
      %v475 = vpop.f32.mrf.mxu0
      %476 = vdwg.mxu0
      %v477 = vpack.c.bf16 %v472, %v472
      %v479 = vunpack.c.l.b16 %v477
      %v480 = vpack.c.b16 %v479, %v479
      %481 = vrot.lane.b32.xlu0 %v480, 8
      %v482 = vpop.permute.xlu0 %481
      %vm484 = vcmask 126016
      %485 = vst.msk [vmem:[%s241] sm:$0xf] %vm484, %v482
      %486 = vrot.lane.b32.xlu0 %v364, 112
      %v487 = vpop.permute.xlu0 %486
      %488 = vrot.lane.b32.xlu0 %v309, 112
      %v489 = vpop.permute.xlu0 %488
      %v491 = vsel %vm246, %v487, 0
      %v494 = vsel %vm246, %v489, 0
      %496 = vmatprep.subr.bf16.mxu0 0
      %497 = vmatpush1.bf16.xpose.msra.mxu0 0
      %498 = vmatprep.subr.bf16.mxu0 0
      %499 = vmatpush1.bf16.xpose.msra.mxu0 0
      %500 = vmatprep.subr.bf16.mxu0 0
      %501 = vmatpush1.bf16.xpose.msra.mxu0 0
      %502 = vmatprep.subr.bf16.mxu0 0
      %503 = vmatpush1.bf16.xpose.msra.mxu0 0
      %504 = vmatprep.subr.bf16.mxu0 0
      %505 = vmatpush1.bf16.xpose.msra.mxu0 0
      %506 = vmatprep.subr.bf16.mxu0 0
      %507 = vmatpush1.bf16.xpose.msra.mxu0 0
      %508 = vmatprep.subr.bf16.mxu0 0
      %509 = vmatpush1.bf16.xpose.msra.mxu0 0
      %510 = vmatprep.subr.bf16.mxu0 0
      %511 = vmatpush1.bf16.xpose.msra.mxu0 %v494
      %512 = vmatprep.subr.bf16.mxu0 0
      %513 = vmatpush2.bf16.xpose.msra.mxu0 0
      %514 = vmatprep.subr.bf16.mxu0 0
      %515 = vmatpush2.bf16.xpose.msra.mxu0 0
      %516 = vmatprep.subr.bf16.mxu0 0
      %517 = vmatpush2.bf16.xpose.msra.mxu0 0
      %518 = vmatprep.subr.bf16.mxu0 0
      %519 = vmatpush2.bf16.xpose.msra.mxu0 0
      %520 = vmatprep.subr.bf16.mxu0 0
      %521 = vmatpush2.bf16.xpose.msra.mxu0 0
      %522 = vmatprep.subr.bf16.mxu0 0
      %523 = vmatpush2.bf16.xpose.msra.mxu0 0
      %524 = vmatprep.subr.bf16.mxu0 0
      %525 = vmatpush2.bf16.xpose.msra.mxu0 0
      %526 = vmatprep.subr.bf16.mxu0 0
      %527 = vmatpush2.bf16.xpose.msra.mxu0 0
      %528 = vmatprep.mubr.bf16.mxu0 0
      %529 = vmatmul.mubr.bf16.gmra.mxu0 %v491
      %v530 = vpop.f32.mrf.mxu0
      %v531 = vadd.f32 0.0, %v530
      %v532 = vpop.f32.mrf.mxu0
      %v533 = vpop.f32.mrf.mxu0
      %v534 = vpop.f32.mrf.mxu0
      %535 = vdwg.mxu0
      %v536 = vmul.f32 %v531, 0.35355338
      %v537 = vadd.f32 %v536, %v245
      %v538 = vsel %vm246, %v537, -inf
      %539 = vmax.xlane.f32.xlu0 %v538
      %v540 = vpop.xlane.xlu0 %539
      %v541 = vsub.f32 %v537, %v540
      %v542 = vmul.f32 %v541, 1.442695
      %v543 = vpow.pop %v542
      %v544 = vsel %vm246, %v543, 0.0
      %545 = vadd.xlane.f32.xlu0 %v544
      %v546 = vpop.xlane.xlu0 %545
      %v547 = vrcp.pop %v546
      %v548 = vmul.f32 %v543, %v547
      %v549 = vpack.c.bf16 %v548, %v548
      %550 = vrot.lane.b32.xlu0 %v309, 80
      %v551 = vpop.permute.xlu0 %550
      %v553 = vsel %vm246, %v549, 0
      %v556 = vsel %vm315, %v551, 0
      %558 = vmatprep.subr.bf16.mxu0 0
      %559 = vmatpush1.bf16.msra.mxu0 0
      %560 = vmatprep.subr.bf16.mxu0 0
      %561 = vmatpush1.bf16.msra.mxu0 0
      %562 = vmatprep.subr.bf16.mxu0 0
      %563 = vmatpush1.bf16.msra.mxu0 0
      %564 = vmatprep.subr.bf16.mxu0 0
      %565 = vmatpush1.bf16.msra.mxu0 0
      %566 = vmatprep.subr.bf16.mxu0 0
      %567 = vmatpush1.bf16.msra.mxu0 0
      %568 = vmatprep.subr.bf16.mxu0 0
      %569 = vmatpush1.bf16.msra.mxu0 0
      %570 = vmatprep.subr.bf16.mxu0 0
      %571 = vmatpush1.bf16.msra.mxu0 0
      %572 = vmatprep.subr.bf16.mxu0 0
      %573 = vmatpush1.bf16.msra.mxu0 %v556
      %574 = vmatprep.subr.bf16.mxu0 0
      %575 = vmatpush2.bf16.msra.mxu0 0
      %576 = vmatprep.subr.bf16.mxu0 0
      %577 = vmatpush2.bf16.msra.mxu0 0
      %578 = vmatprep.subr.bf16.mxu0 0
      %579 = vmatpush2.bf16.msra.mxu0 0
      %580 = vmatprep.subr.bf16.mxu0 0
      %581 = vmatpush2.bf16.msra.mxu0 0
      %582 = vmatprep.subr.bf16.mxu0 0
      %583 = vmatpush2.bf16.msra.mxu0 0
      %584 = vmatprep.subr.bf16.mxu0 0
      %585 = vmatpush2.bf16.msra.mxu0 0
      %586 = vmatprep.subr.bf16.mxu0 0
      %587 = vmatpush2.bf16.msra.mxu0 0
      %588 = vmatprep.subr.bf16.mxu0 0
      %589 = vmatpush2.bf16.msra.mxu0 0
      %590 = vmatprep.mubr.bf16.mxu0 0
      %591 = vmatmul.mubr.bf16.gmra.mxu0 %v553
      %v592 = vpop.f32.mrf.mxu0
      %v593 = vadd.f32 0.0, %v592
      %v594 = vpop.f32.mrf.mxu0
      %v595 = vpop.f32.mrf.mxu0
      %v596 = vpop.f32.mrf.mxu0
      %597 = vdwg.mxu0
      %v598 = vpack.c.bf16 %v593, %v593
      %v600 = vunpack.c.l.b16 %v598
      %v601 = vpack.c.b16 %v600, %v600
      %602 = vrot.lane.b32.xlu0 %v601, 16
      %v603 = vpop.permute.xlu0 %602
      %vm605 = vcmask 191616
      %606 = vst.msk [vmem:[%s241] sm:$0xf] %vm605, %v603
      %607 = vrot.lane.b32.xlu0 %v364, 104
      %v608 = vpop.permute.xlu0 %607
      %609 = vrot.lane.b32.xlu0 %v309, 104
      %v610 = vpop.permute.xlu0 %609
      %v612 = vsel %vm246, %v608, 0
      %v615 = vsel %vm246, %v610, 0
      %617 = vmatprep.subr.bf16.mxu0 0
      %618 = vmatpush1.bf16.xpose.msra.mxu0 0
      %619 = vmatprep.subr.bf16.mxu0 0
      %620 = vmatpush1.bf16.xpose.msra.mxu0 0
      %621 = vmatprep.subr.bf16.mxu0 0
      %622 = vmatpush1.bf16.xpose.msra.mxu0 0
      %623 = vmatprep.subr.bf16.mxu0 0
      %624 = vmatpush1.bf16.xpose.msra.mxu0 0
      %625 = vmatprep.subr.bf16.mxu0 0
      %626 = vmatpush1.bf16.xpose.msra.mxu0 0
      %627 = vmatprep.subr.bf16.mxu0 0
      %628 = vmatpush1.bf16.xpose.msra.mxu0 0
      %629 = vmatprep.subr.bf16.mxu0 0
      %630 = vmatpush1.bf16.xpose.msra.mxu0 0
      %631 = vmatprep.subr.bf16.mxu0 0
      %632 = vmatpush1.bf16.xpose.msra.mxu0 %v615
      %633 = vmatprep.subr.bf16.mxu0 0
      %634 = vmatpush2.bf16.xpose.msra.mxu0 0
      %635 = vmatprep.subr.bf16.mxu0 0
      %636 = vmatpush2.bf16.xpose.msra.mxu0 0
      %637 = vmatprep.subr.bf16.mxu0 0
      %638 = vmatpush2.bf16.xpose.msra.mxu0 0
      %639 = vmatprep.subr.bf16.mxu0 0
      %640 = vmatpush2.bf16.xpose.msra.mxu0 0
      %641 = vmatprep.subr.bf16.mxu0 0
      %642 = vmatpush2.bf16.xpose.msra.mxu0 0
      %643 = vmatprep.subr.bf16.mxu0 0
      %644 = vmatpush2.bf16.xpose.msra.mxu0 0
      %645 = vmatprep.subr.bf16.mxu0 0
      %646 = vmatpush2.bf16.xpose.msra.mxu0 0
      %647 = vmatprep.subr.bf16.mxu0 0
      %648 = vmatpush2.bf16.xpose.msra.mxu0 0
      %649 = vmatprep.mubr.bf16.mxu0 0
      %650 = vmatmul.mubr.bf16.gmra.mxu0 %v612
      %v651 = vpop.f32.mrf.mxu0
      %v652 = vadd.f32 0.0, %v651
      %v653 = vpop.f32.mrf.mxu0
      %v654 = vpop.f32.mrf.mxu0
      %v655 = vpop.f32.mrf.mxu0
      %656 = vdwg.mxu0
      %v657 = vmul.f32 %v652, 0.35355338
      %v658 = vadd.f32 %v657, %v245
      %v659 = vsel %vm246, %v658, -inf
      %660 = vmax.xlane.f32.xlu0 %v659
      %v661 = vpop.xlane.xlu0 %660
      %v662 = vsub.f32 %v658, %v661
      %v663 = vmul.f32 %v662, 1.442695
      %v664 = vpow.pop %v663
      %v665 = vsel %vm246, %v664, 0.0
      %666 = vadd.xlane.f32.xlu0 %v665
      %v667 = vpop.xlane.xlu0 %666
      %v668 = vrcp.pop %v667
      %v669 = vmul.f32 %v664, %v668
      %v670 = vpack.c.bf16 %v669, %v669
      %671 = vrot.lane.b32.xlu0 %v309, 72
      %v672 = vpop.permute.xlu0 %671
      %v674 = vsel %vm246, %v670, 0
      %v677 = vsel %vm315, %v672, 0
      %679 = vmatprep.subr.bf16.mxu0 0
      %680 = vmatpush1.bf16.msra.mxu0 0
      %681 = vmatprep.subr.bf16.mxu0 0
      %682 = vmatpush1.bf16.msra.mxu0 0
      %683 = vmatprep.subr.bf16.mxu0 0
      %684 = vmatpush1.bf16.msra.mxu0 0
      %685 = vmatprep.subr.bf16.mxu0 0
      %686 = vmatpush1.bf16.msra.mxu0 0
      %687 = vmatprep.subr.bf16.mxu0 0
      %688 = vmatpush1.bf16.msra.mxu0 0
      %689 = vmatprep.subr.bf16.mxu0 0
      %690 = vmatpush1.bf16.msra.mxu0 0
      %691 = vmatprep.subr.bf16.mxu0 0
      %692 = vmatpush1.bf16.msra.mxu0 0
      %693 = vmatprep.subr.bf16.mxu0 0
      %694 = vmatpush1.bf16.msra.mxu0 %v677
      %695 = vmatprep.subr.bf16.mxu0 0
      %696 = vmatpush2.bf16.msra.mxu0 0
      %697 = vmatprep.subr.bf16.mxu0 0
      %698 = vmatpush2.bf16.msra.mxu0 0
      %699 = vmatprep.subr.bf16.mxu0 0
      %700 = vmatpush2.bf16.msra.mxu0 0
      %701 = vmatprep.subr.bf16.mxu0 0
      %702 = vmatpush2.bf16.msra.mxu0 0
      %703 = vmatprep.subr.bf16.mxu0 0
      %704 = vmatpush2.bf16.msra.mxu0 0
      %705 = vmatprep.subr.bf16.mxu0 0
      %706 = vmatpush2.bf16.msra.mxu0 0
      %707 = vmatprep.subr.bf16.mxu0 0
      %708 = vmatpush2.bf16.msra.mxu0 0
      %709 = vmatprep.subr.bf16.mxu0 0
      %710 = vmatpush2.bf16.msra.mxu0 0
      %711 = vmatprep.mubr.bf16.mxu0 0
      %712 = vmatmul.mubr.bf16.gmra.mxu0 %v674
      %v713 = vpop.f32.mrf.mxu0
      %v714 = vadd.f32 0.0, %v713
      %v715 = vpop.f32.mrf.mxu0
      %v716 = vpop.f32.mrf.mxu0
      %v717 = vpop.f32.mrf.mxu0
      %718 = vdwg.mxu0
      %v719 = vpack.c.bf16 %v714, %v714
      %v721 = vunpack.c.l.b16 %v719
      %v722 = vpack.c.b16 %v721, %v721
      %723 = vrot.lane.b32.xlu0 %v722, 24
      %v724 = vpop.permute.xlu0 %723
      %vm726 = vcmask 257216
      %727 = vst.msk [vmem:[%s241] sm:$0xf] %vm726, %v724
      %p728 = scmp.lt.s32.totalorder %s18, 1
      %s729 = scalar_select %p728, %s18, 1
      %p730 = scmp.lt.s32.totalorder %s19, 0
      %s731 = scalar_select %p730, %s19, 0
      %s732 = sadd.s32 %s731, %s729
      %s733 = smul.addr %s732, 4
      %s734 = scalar_lea.vmem %s3, %s733
      // Predicated region
      $region33: #{_lambda_.61} parent=31 // pred_check
        %p735 = pneg %p128
      $region34: #{_lambda_.61} parent=31 // pred_check_branch
        %737 = sbr.rel (%p735) target = $region36
      $region35: #{_lambda_.61} parent=31 // pred_region
        _
      $region36: #{_lambda_.61} parent=31 // pred_fallthru
        _
    $region32: #{_lambda_.61} parent=5 // pred_fallthru
      _
    %p738 = scmp.le.s32.totalorder 2, %s9
    // Predicated region
    $region37: #{_lambda_.61} parent=5 // pred_check
      %p739 = pneg %p738
    $region38: #{_lambda_.61} parent=5 // pred_check_branch
      %741 = sbr.rel (%p739) target = $region40
    $region39: #{_lambda_.61} parent=5 // pred_region
      %s742 = ssub.s32 %s9, 2
      // Predicated region
      $region41: #{_lambda_.61} parent=39 // pred_check
        %p743 = pneg %p134
      $region42: #{_lambda_.61} parent=39 // pred_check_branch
        %745 = sbr.rel (%p743) target = $region44
      $region43: #{_lambda_.61} parent=39 // pred_region
        %p746 = scmp.lt.s32.totalorder %s20, 1
        %s747 = scalar_select %p746, %s20, 1
        %p748 = scmp.lt.s32.totalorder %s21, 0
        %s749 = scalar_select %p748, %s21, 0
        %s750 = sadd.s32 %s749, %s747
        %s751 = smul.addr %s750, 4
        %s752 = scalar_lea.vmem %s3, %s751
      $region44: #{_lambda_.61} parent=39 // pred_fallthru
        _
    $region40: #{_lambda_.61} parent=5 // pred_fallthru
      _
  $region6: #{_lambda_.61} parent=0 // loop_footer
    %s13 = sadd.s32 1, %s9
  $region7: #{_lambda_.61} parent=0 // loop_footer_branch
    %8 = sbr.rel target = $region3
  $region8: #{_lambda_.61} parent=0 // loop_exit
    _

</llo_original>
